<compile_context>
chip_gen: v7x
topology: tpu7x:2x2x1
jax: 0.10.0
libtpu: 0.0.40
codegen_flags: <defaults>
</compile_context>

<pallas_src>
import jax
import jax.numpy as jnp
from jax import lax
from jax.experimental import pallas as pl
from jax.experimental.pallas import tpu as pltpu

EPS = 1e-5  # nn.BatchNorm2d default eps


def _shift2d(x, dy, dx):
    """patch[n,h,w,c] = x[n, h+dy, w+dx, c], zero outside bounds (dy,dx in {-1,0,1})."""
    N, H, W, C = x.shape
    if dy != 0:
        zrow = jnp.zeros((N, 1, W, C), x.dtype)
        if dy > 0:
            x = jnp.concatenate([x[:, dy:, :, :], zrow], axis=1)
        else:
            x = jnp.concatenate([zrow, x[:, :H + dy, :, :]], axis=1)
    if dx != 0:
        zcol = jnp.zeros((N, H, 1, C), x.dtype)
        if dx > 0:
            x = jnp.concatenate([x[:, :, dx:, :], zcol], axis=2)
        else:
            x = jnp.concatenate([zcol, x[:, :, :W + dx, :]], axis=2)
    return x


def _conv3x3_im2col(x_nhwc, w_ref):
    """3x3 'same' conv (stride 1) as a single MXU matmul.

    x_nhwc: (N,H,W,C) in native dtype.  w_ref: (9*Cin, Cout), tap-major rows
    (tap t = ky*3 + kx).  Returns (N*H*W, Cout) float32.
    """
    N, H, W, C = x_nhwc.shape
    M = N * H * W
    taps = []
    for dy in (-1, 0, 1):
        for dx in (-1, 0, 1):
            taps.append(_shift2d(x_nhwc, dy, dx).reshape(M, C))
    patches = jnp.concatenate(taps, axis=1)                 # (M, 9C)
    return jnp.dot(patches, w_ref[...],
                   preferred_element_type=jnp.float32)      # (M, Cout) f32


def _bn_train(y, g_ref, b_ref, m_inv):
    """Train-mode BatchNorm over axis 0 of y:(M,C), one-pass stats, f32 math."""
    s = jnp.sum(y, axis=0, keepdims=True)                   # (1, C)
    ss = jnp.sum(y * y, axis=0, keepdims=True)              # (1, C)
    mean = s * m_inv
    var = ss * m_inv - mean * mean                          # biased variance
    scale = lax.rsqrt(var + EPS) * g_ref[...]
    shift = b_ref[...] - mean * scale
    return y * scale + shift


def _resblock_kernel(x_ref, w1_ref, g1_ref, b1_ref, w2_ref, g2_ref, b2_ref,
                     out_ref):
    N, H, W, C = x_ref.shape
    M = N * H * W
    m_inv = 1.0 / M

    x = x_ref[...]                                          # (N,H,W,C), native dtype

    # conv1 -> bn1 -> relu
    y1 = _conv3x3_im2col(x, w1_ref)                         # (M, C) f32
    h = jnp.maximum(_bn_train(y1, g1_ref, b1_ref, m_inv), 0.0)

    # conv2 -> bn2 (MXU operands back in the input dtype)
    h = h.astype(x.dtype).reshape(N, H, W, C)
    y2 = _conv3x3_im2col(h, w2_ref)                         # (M, C) f32
    o = _bn_train(y2, g2_ref, b2_ref, m_inv)

    # residual add (unpadded input block) + relu; lane-dense store
    o = jnp.maximum(o + x.reshape(M, C).astype(jnp.float32), 0.0)
    out_ref[...] = o.reshape(N, H, W, C).astype(out_ref.dtype)


def _full_spec(shape):
    n = len(shape)
    return pl.BlockSpec(shape, lambda i, n=n: (0,) * n)


@jax.jit
def resblock_forward(x_nchw, w1, g1, b1, w2, g2, b2):
    """ResBlock forward. x_nchw: (N,C,H,W); w*: (Cout,Cin,3,3); g*,b*: (C,)."""
    N, C, H, W = x_nchw.shape
    x = jnp.transpose(x_nchw, (0, 2, 3, 1))                 # NHWC (one relayout in)

    # OIHW -> (ky,kx,Cin,Cout) -> (9*Cin, Cout); row block t = ky*3 + kx
    w1t = jnp.transpose(w1, (2, 3, 1, 0)).reshape(9 * C, C)
    w2t = jnp.transpose(w2, (2, 3, 1, 0)).reshape(9 * C, C)
    g1r, b1r = g1.reshape(1, C), b1.reshape(1, C)
    g2r, b2r = g2.reshape(1, C), b2.reshape(1, C)

    out_nhwc = pl.pallas_call(
        _resblock_kernel,
        out_shape=jax.ShapeDtypeStruct((N, H, W, C), x.dtype),
        grid=(1,),
        in_specs=[_full_spec((N, H, W, C)),
                  _full_spec(w1t.shape), _full_spec(g1r.shape), _full_spec(b1r.shape),
                  _full_spec(w2t.shape), _full_spec(g2r.shape), _full_spec(b2r.shape)],
        out_specs=_full_spec((N, H, W, C)),
        compiler_params=pltpu.CompilerParams(
            dimension_semantics=("arbitrary",),
            vmem_limit_bytes=64 * 1024 * 1024),
    )(x, w1t, g1r, b1r, w2t, g2r, b2r)

    return jnp.transpose(out_nhwc, (0, 3, 1, 2))            # back to NCHW


def resblock_reference(x, w1, g1, b1, w2, g2, b2):
    """Plain-JAX reference matching the PyTorch module (train-mode BN)."""
    def conv(y, w):
        return lax.conv_general_dilated(
            y, w, window_strides=(1, 1), padding=((1, 1), (1, 1)),
            dimension_numbers=("NCHW", "OIHW", "NCHW"))

    def bn(y, g, b):
        mean = jnp.mean(y, axis=(0, 2, 3), keepdims=True)
        var = jnp.mean((y - mean) ** 2, axis=(0, 2, 3), keepdims=True)
        return ((y - mean) * lax.rsqrt(var + EPS) * g.reshape(1, -1, 1, 1)
                + b.reshape(1, -1, 1, 1))

    h = jax.nn.relu(bn(conv(x, w1), g1, b1))
    o = bn(conv(h, w2), g2, b2)
    return jax.nn.relu(o + x)


if __name__ == "__main__":
    # Chess-board spatial (8x8); C=128 keeps the lane axis dense while staying
    # small relative to the module default of 256 channels.
    N, C, H, W = 4, 128, 8, 8
    key = jax.random.PRNGKey(0)
    kx, k1, k2, kg1, kb1, kg2, kb2 = jax.random.split(key, 7)

    x = jax.random.normal(kx, (N, C, H, W), jnp.float32)
    w1 = jax.random.normal(k1, (C, C, 3, 3), jnp.float32) * 0.05
    w2 = jax.random.normal(k2, (C, C, 3, 3), jnp.float32) * 0.05
    g1 = 1.0 + 0.1 * jax.random.normal(kg1, (C,), jnp.float32)
    b1 = 0.1 * jax.random.normal(kb1, (C,), jnp.float32)
    g2 = 1.0 + 0.1 * jax.random.normal(kg2, (C,), jnp.float32)
    b2 = 0.1 * jax.random.normal(kb2, (C,), jnp.float32)

    out = jax.block_until_ready(resblock_forward(x, w1, g1, b1, w2, g2, b2))

    ref = resblock_reference(x, w1, g1, b1, w2, g2, b2)
    assert out.shape == (N, C, H, W)
    max_err = jnp.max(jnp.abs(out - ref))
    assert jnp.allclose(out, ref, atol=3e-2, rtol=3e-2), f"max abs err {max_err}"

    print("KERNEL_OK")
</pallas_src>

<mosaic_0001>
module attributes {stable_mosaic.version = 11 : i64} {
  func.func @_resblock_kernel(%arg0: i32, %arg1: memref<4x8x8x128xf32, #tpu.memory_space<vmem>>, %arg2: memref<1152x128xf32, #tpu.memory_space<vmem>>, %arg3: memref<1x128xf32, #tpu.memory_space<vmem>>, %arg4: memref<1x128xf32, #tpu.memory_space<vmem>>, %arg5: memref<1152x128xf32, #tpu.memory_space<vmem>>, %arg6: memref<1x128xf32, #tpu.memory_space<vmem>>, %arg7: memref<1x128xf32, #tpu.memory_space<vmem>>, %arg8: memref<4x8x8x128xf32, #tpu.memory_space<vmem>>) attributes {dimension_semantics = [#tpu.dimension_semantics<arbitrary>], iteration_bounds = array<i64: 1>, scalar_prefetch = 0 : i64, scratch_operands = 0 : i64, tpu.core_type = #tpu.core_type<tc>, window_params = [{pipeline_mode = #tpu.pipeline_mode<synchronous>, transform_indices = @transform_0, window_bounds = array<i64: 4, 8, 8, 128>}, {pipeline_mode = #tpu.pipeline_mode<synchronous>, transform_indices = @transform_1, window_bounds = array<i64: 1152, 128>}, {pipeline_mode = #tpu.pipeline_mode<synchronous>, transform_indices = @transform_2, window_bounds = array<i64: 1, 128>}, {pipeline_mode = #tpu.pipeline_mode<synchronous>, transform_indices = @transform_3, window_bounds = array<i64: 1, 128>}, {pipeline_mode = #tpu.pipeline_mode<synchronous>, transform_indices = @transform_4, window_bounds = array<i64: 1152, 128>}, {pipeline_mode = #tpu.pipeline_mode<synchronous>, transform_indices = @transform_5, window_bounds = array<i64: 1, 128>}, {pipeline_mode = #tpu.pipeline_mode<synchronous>, transform_indices = @transform_6, window_bounds = array<i64: 1, 128>}, {pipeline_mode = #tpu.pipeline_mode<synchronous>, transform_indices = @transform_7, window_bounds = array<i64: 4, 8, 8, 128>}]} {
    %c0 = arith.constant 0 : index
    %c0_0 = arith.constant 0 : index
    %c0_1 = arith.constant 0 : index
    %c0_2 = arith.constant 0 : index
    %0 = vector.load %arg1[%c0, %c0_0, %c0_1, %c0_2] : memref<4x8x8x128xf32, #tpu.memory_space<vmem>>, vector<4x8x8x128xf32>
    %cst = arith.constant 0.000000e+00 : f32
    %1 = vector.broadcast %cst : f32 to vector<4x1x8x128xf32>
    %2 = vector.extract_strided_slice %0 {offsets = [0, 0, 0, 0], sizes = [4, 7, 8, 128], strides = [1, 1, 1, 1]} : vector<4x8x8x128xf32> to vector<4x7x8x128xf32>
    %3 = tpu.concatenate %1, %2 in 1 : vector<4x1x8x128xf32>, vector<4x7x8x128xf32> -> vector<4x8x8x128xf32>
    %cst_3 = arith.constant 0.000000e+00 : f32
    %4 = vector.broadcast %cst_3 : f32 to vector<4x8x1x128xf32>
    %5 = vector.extract_strided_slice %3 {offsets = [0, 0, 0, 0], sizes = [4, 8, 7, 128], strides = [1, 1, 1, 1]} : vector<4x8x8x128xf32> to vector<4x8x7x128xf32>
    %6 = tpu.concatenate %4, %5 in 2 : vector<4x8x1x128xf32>, vector<4x8x7x128xf32> -> vector<4x8x8x128xf32>
    %7 = vector.shape_cast %6 : vector<4x8x8x128xf32> to vector<256x128xf32>
    %cst_4 = arith.constant 0.000000e+00 : f32
    %8 = vector.broadcast %cst_4 : f32 to vector<4x1x8x128xf32>
    %9 = vector.extract_strided_slice %0 {offsets = [0, 0, 0, 0], sizes = [4, 7, 8, 128], strides = [1, 1, 1, 1]} : vector<4x8x8x128xf32> to vector<4x7x8x128xf32>
    %10 = tpu.concatenate %8, %9 in 1 : vector<4x1x8x128xf32>, vector<4x7x8x128xf32> -> vector<4x8x8x128xf32>
    %11 = vector.shape_cast %10 : vector<4x8x8x128xf32> to vector<256x128xf32>
    %cst_5 = arith.constant 0.000000e+00 : f32
    %12 = vector.broadcast %cst_5 : f32 to vector<4x1x8x128xf32>
    %13 = vector.extract_strided_slice %0 {offsets = [0, 0, 0, 0], sizes = [4, 7, 8, 128], strides = [1, 1, 1, 1]} : vector<4x8x8x128xf32> to vector<4x7x8x128xf32>
    %14 = tpu.concatenate %12, %13 in 1 : vector<4x1x8x128xf32>, vector<4x7x8x128xf32> -> vector<4x8x8x128xf32>
    %cst_6 = arith.constant 0.000000e+00 : f32
    %15 = vector.broadcast %cst_6 : f32 to vector<4x8x1x128xf32>
    %16 = vector.extract_strided_slice %14 {offsets = [0, 0, 1, 0], sizes = [4, 8, 7, 128], strides = [1, 1, 1, 1]} : vector<4x8x8x128xf32> to vector<4x8x7x128xf32>
    %17 = tpu.concatenate %16, %15 in 2 : vector<4x8x7x128xf32>, vector<4x8x1x128xf32> -> vector<4x8x8x128xf32>
    %18 = vector.shape_cast %17 : vector<4x8x8x128xf32> to vector<256x128xf32>
    %cst_7 = arith.constant 0.000000e+00 : f32
    %19 = vector.broadcast %cst_7 : f32 to vector<4x8x1x128xf32>
    %20 = vector.extract_strided_slice %0 {offsets = [0, 0, 0, 0], sizes = [4, 8, 7, 128], strides = [1, 1, 1, 1]} : vector<4x8x8x128xf32> to vector<4x8x7x128xf32>
    %21 = tpu.concatenate %19, %20 in 2 : vector<4x8x1x128xf32>, vector<4x8x7x128xf32> -> vector<4x8x8x128xf32>
    %22 = vector.shape_cast %21 : vector<4x8x8x128xf32> to vector<256x128xf32>
    %23 = vector.shape_cast %0 : vector<4x8x8x128xf32> to vector<256x128xf32>
    %cst_8 = arith.constant 0.000000e+00 : f32
    %24 = vector.broadcast %cst_8 : f32 to vector<4x8x1x128xf32>
    %25 = vector.extract_strided_slice %0 {offsets = [0, 0, 1, 0], sizes = [4, 8, 7, 128], strides = [1, 1, 1, 1]} : vector<4x8x8x128xf32> to vector<4x8x7x128xf32>
    %26 = tpu.concatenate %25, %24 in 2 : vector<4x8x7x128xf32>, vector<4x8x1x128xf32> -> vector<4x8x8x128xf32>
    %27 = vector.shape_cast %26 : vector<4x8x8x128xf32> to vector<256x128xf32>
    %cst_9 = arith.constant 0.000000e+00 : f32
    %28 = vector.broadcast %cst_9 : f32 to vector<4x1x8x128xf32>
    %29 = vector.extract_strided_slice %0 {offsets = [0, 1, 0, 0], sizes = [4, 7, 8, 128], strides = [1, 1, 1, 1]} : vector<4x8x8x128xf32> to vector<4x7x8x128xf32>
    %30 = tpu.concatenate %29, %28 in 1 : vector<4x7x8x128xf32>, vector<4x1x8x128xf32> -> vector<4x8x8x128xf32>
    %cst_10 = arith.constant 0.000000e+00 : f32
    %31 = vector.broadcast %cst_10 : f32 to vector<4x8x1x128xf32>
    %32 = vector.extract_strided_slice %30 {offsets = [0, 0, 0, 0], sizes = [4, 8, 7, 128], strides = [1, 1, 1, 1]} : vector<4x8x8x128xf32> to vector<4x8x7x128xf32>
    %33 = tpu.concatenate %31, %32 in 2 : vector<4x8x1x128xf32>, vector<4x8x7x128xf32> -> vector<4x8x8x128xf32>
    %34 = vector.shape_cast %33 : vector<4x8x8x128xf32> to vector<256x128xf32>
    %cst_11 = arith.constant 0.000000e+00 : f32
    %35 = vector.broadcast %cst_11 : f32 to vector<4x1x8x128xf32>
    %36 = vector.extract_strided_slice %0 {offsets = [0, 1, 0, 0], sizes = [4, 7, 8, 128], strides = [1, 1, 1, 1]} : vector<4x8x8x128xf32> to vector<4x7x8x128xf32>
    %37 = tpu.concatenate %36, %35 in 1 : vector<4x7x8x128xf32>, vector<4x1x8x128xf32> -> vector<4x8x8x128xf32>
    %38 = vector.shape_cast %37 : vector<4x8x8x128xf32> to vector<256x128xf32>
    %cst_12 = arith.constant 0.000000e+00 : f32
    %39 = vector.broadcast %cst_12 : f32 to vector<4x1x8x128xf32>
    %40 = vector.extract_strided_slice %0 {offsets = [0, 1, 0, 0], sizes = [4, 7, 8, 128], strides = [1, 1, 1, 1]} : vector<4x8x8x128xf32> to vector<4x7x8x128xf32>
    %41 = tpu.concatenate %40, %39 in 1 : vector<4x7x8x128xf32>, vector<4x1x8x128xf32> -> vector<4x8x8x128xf32>
    %cst_13 = arith.constant 0.000000e+00 : f32
    %42 = vector.broadcast %cst_13 : f32 to vector<4x8x1x128xf32>
    %43 = vector.extract_strided_slice %41 {offsets = [0, 0, 1, 0], sizes = [4, 8, 7, 128], strides = [1, 1, 1, 1]} : vector<4x8x8x128xf32> to vector<4x8x7x128xf32>
    %44 = tpu.concatenate %43, %42 in 2 : vector<4x8x7x128xf32>, vector<4x8x1x128xf32> -> vector<4x8x8x128xf32>
    %45 = vector.shape_cast %44 : vector<4x8x8x128xf32> to vector<256x128xf32>
    %46 = tpu.concatenate %7, %11, %18, %22, %23, %27, %34, %38, %45 in 1 : vector<256x128xf32>, vector<256x128xf32>, vector<256x128xf32>, vector<256x128xf32>, vector<256x128xf32>, vector<256x128xf32>, vector<256x128xf32>, vector<256x128xf32>, vector<256x128xf32> -> vector<256x1152xf32>
    %c0_14 = arith.constant 0 : index
    %c0_15 = arith.constant 0 : index
    %47 = vector.load %arg2[%c0_14, %c0_15] : memref<1152x128xf32, #tpu.memory_space<vmem>>, vector<1152x128xf32>
    %cst_16 = arith.constant dense<0.000000e+00> : vector<256x128xf32>
    %48 = tpu.matmul %46, %47, %cst_16 {dimension_numbers = #tpu.dot_dimension_numbers<[1], [0], [0], [1], [0, 0, 1, 1], [], []>} : vector<256x1152xf32>, vector<1152x128xf32>, vector<256x128xf32> -> vector<256x128xf32>
    %cst_17 = arith.constant dense<0.000000e+00> : vector<128xf32>
    %49 = vector.multi_reduction <add>, %48, %cst_17 [0] : vector<256x128xf32> to vector<128xf32>
    %50 = vector.shape_cast %49 : vector<128xf32> to vector<1x128xf32>
    %51 = arith.mulf %48, %48 : vector<256x128xf32>
    %cst_18 = arith.constant dense<0.000000e+00> : vector<128xf32>
    %52 = vector.multi_reduction <add>, %51, %cst_18 [0] : vector<256x128xf32> to vector<128xf32>
    %53 = vector.shape_cast %52 : vector<128xf32> to vector<1x128xf32>
    %cst_19 = arith.constant 3.906250e-03 : f32
    %54 = vector.broadcast %cst_19 : f32 to vector<1x128xf32>
    %55 = arith.mulf %50, %54 : vector<1x128xf32>
    %cst_20 = arith.constant 3.906250e-03 : f32
    %56 = vector.broadcast %cst_20 : f32 to vector<1x128xf32>
    %57 = arith.mulf %53, %56 : vector<1x128xf32>
    %58 = arith.mulf %55, %55 : vector<1x128xf32>
    %59 = arith.subf %57, %58 : vector<1x128xf32>
    %cst_21 = arith.constant 9.99999974E-6 : f32
    %60 = vector.broadcast %cst_21 : f32 to vector<1x128xf32>
    %61 = arith.addf %59, %60 : vector<1x128xf32>
    %62 = math.rsqrt %61 : vector<1x128xf32>
    %c0_22 = arith.constant 0 : index
    %c0_23 = arith.constant 0 : index
    %63 = vector.load %arg3[%c0_22, %c0_23] : memref<1x128xf32, #tpu.memory_space<vmem>>, vector<1x128xf32>
    %64 = arith.mulf %62, %63 : vector<1x128xf32>
    %c0_24 = arith.constant 0 : index
    %c0_25 = arith.constant 0 : index
    %65 = vector.load %arg4[%c0_24, %c0_25] : memref<1x128xf32, #tpu.memory_space<vmem>>, vector<1x128xf32>
    %66 = arith.mulf %55, %64 : vector<1x128xf32>
    %67 = arith.subf %65, %66 : vector<1x128xf32>
    %68 = vector.broadcast %64 : vector<1x128xf32> to vector<256x128xf32>
    %69 = arith.mulf %48, %68 : vector<256x128xf32>
    %70 = vector.broadcast %67 : vector<1x128xf32> to vector<256x128xf32>
    %71 = arith.addf %69, %70 : vector<256x128xf32>
    %cst_26 = arith.constant 0.000000e+00 : f32
    %72 = vector.broadcast %cst_26 : f32 to vector<256x128xf32>
    %73 = arith.maximumf %71, %72 : vector<256x128xf32>
    %74 = vector.shape_cast %73 : vector<256x128xf32> to vector<4x8x8x128xf32>
    %cst_27 = arith.constant 0.000000e+00 : f32
    %75 = vector.broadcast %cst_27 : f32 to vector<4x1x8x128xf32>
    %76 = vector.extract_strided_slice %74 {offsets = [0, 0, 0, 0], sizes = [4, 7, 8, 128], strides = [1, 1, 1, 1]} : vector<4x8x8x128xf32> to vector<4x7x8x128xf32>
    %77 = tpu.concatenate %75, %76 in 1 : vector<4x1x8x128xf32>, vector<4x7x8x128xf32> -> vector<4x8x8x128xf32>
    %cst_28 = arith.constant 0.000000e+00 : f32
    %78 = vector.broadcast %cst_28 : f32 to vector<4x8x1x128xf32>
    %79 = vector.extract_strided_slice %77 {offsets = [0, 0, 0, 0], sizes = [4, 8, 7, 128], strides = [1, 1, 1, 1]} : vector<4x8x8x128xf32> to vector<4x8x7x128xf32>
    %80 = tpu.concatenate %78, %79 in 2 : vector<4x8x1x128xf32>, vector<4x8x7x128xf32> -> vector<4x8x8x128xf32>
    %81 = vector.shape_cast %80 : vector<4x8x8x128xf32> to vector<256x128xf32>
    %cst_29 = arith.constant 0.000000e+00 : f32
    %82 = vector.broadcast %cst_29 : f32 to vector<4x1x8x128xf32>
    %83 = vector.extract_strided_slice %74 {offsets = [0, 0, 0, 0], sizes = [4, 7, 8, 128], strides = [1, 1, 1, 1]} : vector<4x8x8x128xf32> to vector<4x7x8x128xf32>
    %84 = tpu.concatenate %82, %83 in 1 : vector<4x1x8x128xf32>, vector<4x7x8x128xf32> -> vector<4x8x8x128xf32>
    %85 = vector.shape_cast %84 : vector<4x8x8x128xf32> to vector<256x128xf32>
    %cst_30 = arith.constant 0.000000e+00 : f32
    %86 = vector.broadcast %cst_30 : f32 to vector<4x1x8x128xf32>
    %87 = vector.extract_strided_slice %74 {offsets = [0, 0, 0, 0], sizes = [4, 7, 8, 128], strides = [1, 1, 1, 1]} : vector<4x8x8x128xf32> to vector<4x7x8x128xf32>
    %88 = tpu.concatenate %86, %87 in 1 : vector<4x1x8x128xf32>, vector<4x7x8x128xf32> -> vector<4x8x8x128xf32>
    %cst_31 = arith.constant 0.000000e+00 : f32
    %89 = vector.broadcast %cst_31 : f32 to vector<4x8x1x128xf32>
    %90 = vector.extract_strided_slice %88 {offsets = [0, 0, 1, 0], sizes = [4, 8, 7, 128], strides = [1, 1, 1, 1]} : vector<4x8x8x128xf32> to vector<4x8x7x128xf32>
    %91 = tpu.concatenate %90, %89 in 2 : vector<4x8x7x128xf32>, vector<4x8x1x128xf32> -> vector<4x8x8x128xf32>
    %92 = vector.shape_cast %91 : vector<4x8x8x128xf32> to vector<256x128xf32>
    %cst_32 = arith.constant 0.000000e+00 : f32
    %93 = vector.broadcast %cst_32 : f32 to vector<4x8x1x128xf32>
    %94 = vector.extract_strided_slice %74 {offsets = [0, 0, 0, 0], sizes = [4, 8, 7, 128], strides = [1, 1, 1, 1]} : vector<4x8x8x128xf32> to vector<4x8x7x128xf32>
    %95 = tpu.concatenate %93, %94 in 2 : vector<4x8x1x128xf32>, vector<4x8x7x128xf32> -> vector<4x8x8x128xf32>
    %96 = vector.shape_cast %95 : vector<4x8x8x128xf32> to vector<256x128xf32>
    %97 = vector.shape_cast %74 : vector<4x8x8x128xf32> to vector<256x128xf32>
    %cst_33 = arith.constant 0.000000e+00 : f32
    %98 = vector.broadcast %cst_33 : f32 to vector<4x8x1x128xf32>
    %99 = vector.extract_strided_slice %74 {offsets = [0, 0, 1, 0], sizes = [4, 8, 7, 128], strides = [1, 1, 1, 1]} : vector<4x8x8x128xf32> to vector<4x8x7x128xf32>
    %100 = tpu.concatenate %99, %98 in 2 : vector<4x8x7x128xf32>, vector<4x8x1x128xf32> -> vector<4x8x8x128xf32>
    %101 = vector.shape_cast %100 : vector<4x8x8x128xf32> to vector<256x128xf32>
    %cst_34 = arith.constant 0.000000e+00 : f32
    %102 = vector.broadcast %cst_34 : f32 to vector<4x1x8x128xf32>
    %103 = vector.extract_strided_slice %74 {offsets = [0, 1, 0, 0], sizes = [4, 7, 8, 128], strides = [1, 1, 1, 1]} : vector<4x8x8x128xf32> to vector<4x7x8x128xf32>
    %104 = tpu.concatenate %103, %102 in 1 : vector<4x7x8x128xf32>, vector<4x1x8x128xf32> -> vector<4x8x8x128xf32>
    %cst_35 = arith.constant 0.000000e+00 : f32
    %105 = vector.broadcast %cst_35 : f32 to vector<4x8x1x128xf32>
    %106 = vector.extract_strided_slice %104 {offsets = [0, 0, 0, 0], sizes = [4, 8, 7, 128], strides = [1, 1, 1, 1]} : vector<4x8x8x128xf32> to vector<4x8x7x128xf32>
    %107 = tpu.concatenate %105, %106 in 2 : vector<4x8x1x128xf32>, vector<4x8x7x128xf32> -> vector<4x8x8x128xf32>
    %108 = vector.shape_cast %107 : vector<4x8x8x128xf32> to vector<256x128xf32>
    %cst_36 = arith.constant 0.000000e+00 : f32
    %109 = vector.broadcast %cst_36 : f32 to vector<4x1x8x128xf32>
    %110 = vector.extract_strided_slice %74 {offsets = [0, 1, 0, 0], sizes = [4, 7, 8, 128], strides = [1, 1, 1, 1]} : vector<4x8x8x128xf32> to vector<4x7x8x128xf32>
    %111 = tpu.concatenate %110, %109 in 1 : vector<4x7x8x128xf32>, vector<4x1x8x128xf32> -> vector<4x8x8x128xf32>
    %112 = vector.shape_cast %111 : vector<4x8x8x128xf32> to vector<256x128xf32>
    %cst_37 = arith.constant 0.000000e+00 : f32
    %113 = vector.broadcast %cst_37 : f32 to vector<4x1x8x128xf32>
    %114 = vector.extract_strided_slice %74 {offsets = [0, 1, 0, 0], sizes = [4, 7, 8, 128], strides = [1, 1, 1, 1]} : vector<4x8x8x128xf32> to vector<4x7x8x128xf32>
    %115 = tpu.concatenate %114, %113 in 1 : vector<4x7x8x128xf32>, vector<4x1x8x128xf32> -> vector<4x8x8x128xf32>
    %cst_38 = arith.constant 0.000000e+00 : f32
    %116 = vector.broadcast %cst_38 : f32 to vector<4x8x1x128xf32>
    %117 = vector.extract_strided_slice %115 {offsets = [0, 0, 1, 0], sizes = [4, 8, 7, 128], strides = [1, 1, 1, 1]} : vector<4x8x8x128xf32> to vector<4x8x7x128xf32>
    %118 = tpu.concatenate %117, %116 in 2 : vector<4x8x7x128xf32>, vector<4x8x1x128xf32> -> vector<4x8x8x128xf32>
    %119 = vector.shape_cast %118 : vector<4x8x8x128xf32> to vector<256x128xf32>
    %120 = tpu.concatenate %81, %85, %92, %96, %97, %101, %108, %112, %119 in 1 : vector<256x128xf32>, vector<256x128xf32>, vector<256x128xf32>, vector<256x128xf32>, vector<256x128xf32>, vector<256x128xf32>, vector<256x128xf32>, vector<256x128xf32>, vector<256x128xf32> -> vector<256x1152xf32>
    %c0_39 = arith.constant 0 : index
    %c0_40 = arith.constant 0 : index
    %121 = vector.load %arg5[%c0_39, %c0_40] : memref<1152x128xf32, #tpu.memory_space<vmem>>, vector<1152x128xf32>
    %cst_41 = arith.constant dense<0.000000e+00> : vector<256x128xf32>
    %122 = tpu.matmul %120, %121, %cst_41 {dimension_numbers = #tpu.dot_dimension_numbers<[1], [0], [0], [1], [0, 0, 1, 1], [], []>} : vector<256x1152xf32>, vector<1152x128xf32>, vector<256x128xf32> -> vector<256x128xf32>
    %cst_42 = arith.constant dense<0.000000e+00> : vector<128xf32>
    %123 = vector.multi_reduction <add>, %122, %cst_42 [0] : vector<256x128xf32> to vector<128xf32>
    %124 = vector.shape_cast %123 : vector<128xf32> to vector<1x128xf32>
    %125 = arith.mulf %122, %122 : vector<256x128xf32>
    %cst_43 = arith.constant dense<0.000000e+00> : vector<128xf32>
    %126 = vector.multi_reduction <add>, %125, %cst_43 [0] : vector<256x128xf32> to vector<128xf32>
    %127 = vector.shape_cast %126 : vector<128xf32> to vector<1x128xf32>
    %cst_44 = arith.constant 3.906250e-03 : f32
    %128 = vector.broadcast %cst_44 : f32 to vector<1x128xf32>
    %129 = arith.mulf %124, %128 : vector<1x128xf32>
    %cst_45 = arith.constant 3.906250e-03 : f32
    %130 = vector.broadcast %cst_45 : f32 to vector<1x128xf32>
    %131 = arith.mulf %127, %130 : vector<1x128xf32>
    %132 = arith.mulf %129, %129 : vector<1x128xf32>
    %133 = arith.subf %131, %132 : vector<1x128xf32>
    %cst_46 = arith.constant 9.99999974E-6 : f32
    %134 = vector.broadcast %cst_46 : f32 to vector<1x128xf32>
    %135 = arith.addf %133, %134 : vector<1x128xf32>
    %136 = math.rsqrt %135 : vector<1x128xf32>
    %c0_47 = arith.constant 0 : index
    %c0_48 = arith.constant 0 : index
    %137 = vector.load %arg6[%c0_47, %c0_48] : memref<1x128xf32, #tpu.memory_space<vmem>>, vector<1x128xf32>
    %138 = arith.mulf %136, %137 : vector<1x128xf32>
    %c0_49 = arith.constant 0 : index
    %c0_50 = arith.constant 0 : index
    %139 = vector.load %arg7[%c0_49, %c0_50] : memref<1x128xf32, #tpu.memory_space<vmem>>, vector<1x128xf32>
    %140 = arith.mulf %129, %138 : vector<1x128xf32>
    %141 = arith.subf %139, %140 : vector<1x128xf32>
    %142 = vector.broadcast %138 : vector<1x128xf32> to vector<256x128xf32>
    %143 = arith.mulf %122, %142 : vector<256x128xf32>
    %144 = vector.broadcast %141 : vector<1x128xf32> to vector<256x128xf32>
    %145 = arith.addf %143, %144 : vector<256x128xf32>
    %146 = vector.shape_cast %0 : vector<4x8x8x128xf32> to vector<256x128xf32>
    %147 = arith.addf %145, %146 : vector<256x128xf32>
    %cst_51 = arith.constant 0.000000e+00 : f32
    %148 = vector.broadcast %cst_51 : f32 to vector<256x128xf32>
    %149 = arith.maximumf %147, %148 : vector<256x128xf32>
    %150 = vector.shape_cast %149 : vector<256x128xf32> to vector<4x8x8x128xf32>
    %c0_52 = arith.constant 0 : index
    %c0_53 = arith.constant 0 : index
    %c0_54 = arith.constant 0 : index
    %c0_55 = arith.constant 0 : index
    %151 = vector.load %arg8[%c0_52, %c0_53, %c0_54, %c0_55] : memref<4x8x8x128xf32, #tpu.memory_space<vmem>>, vector<4x8x8x128xf32>
    tpu.vector_store %arg8[%c0_52, %c0_53, %c0_54, %c0_55], %150 {strides = array<i32>} : memref<4x8x8x128xf32, #tpu.memory_space<vmem>>, vector<4x8x8x128xf32>,
    return
  }
  func.func @transform_0(%arg0: i32) -> (i32, i32, i32, i32) {
    %c0_i32 = arith.constant 0 : i32
    %c0_i32_0 = arith.constant 0 : i32
    %c0_i32_1 = arith.constant 0 : i32
    %c0_i32_2 = arith.constant 0 : i32
    %c0_i32_3 = arith.constant 0 : i32
    return %c0_i32, %c0_i32_0, %c0_i32_1, %c0_i32_2 : i32, i32, i32, i32
  }
  func.func @transform_1(%arg0: i32) -> (i32, i32) {
    %c0_i32 = arith.constant 0 : i32
    %c0_i32_0 = arith.constant 0 : i32
    %c0_i32_1 = arith.constant 0 : i32
    return %c0_i32, %c0_i32_0 : i32, i32
  }
  func.func @transform_2(%arg0: i32) -> (i32, i32) {
    %c0_i32 = arith.constant 0 : i32
    %c0_i32_0 = arith.constant 0 : i32
    %c0_i32_1 = arith.constant 0 : i32
    return %c0_i32, %c0_i32_0 : i32, i32
  }
  func.func @transform_3(%arg0: i32) -> (i32, i32) {
    %c0_i32 = arith.constant 0 : i32
    %c0_i32_0 = arith.constant 0 : i32
    %c0_i32_1 = arith.constant 0 : i32
    return %c0_i32, %c0_i32_0 : i32, i32
  }
  func.func @transform_4(%arg0: i32) -> (i32, i32) {
    %c0_i32 = arith.constant 0 : i32
    %c0_i32_0 = arith.constant 0 : i32
    %c0_i32_1 = arith.constant 0 : i32
    return %c0_i32, %c0_i32_0 : i32, i32
  }
  func.func @transform_5(%arg0: i32) -> (i32, i32) {
    %c0_i32 = arith.constant 0 : i32
    %c0_i32_0 = arith.constant 0 : i32
    %c0_i32_1 = arith.constant 0 : i32
    return %c0_i32, %c0_i32_0 : i32, i32
  }
  func.func @transform_6(%arg0: i32) -> (i32, i32) {
    %c0_i32 = arith.constant 0 : i32
    %c0_i32_0 = arith.constant 0 : i32
    %c0_i32_1 = arith.constant 0 : i32
    return %c0_i32, %c0_i32_0 : i32, i32
  }
  func.func @transform_7(%arg0: i32) -> (i32, i32, i32, i32) {
    %c0_i32 = arith.constant 0 : i32
    %c0_i32_0 = arith.constant 0 : i32
    %c0_i32_1 = arith.constant 0 : i32
    %c0_i32_2 = arith.constant 0 : i32
    %c0_i32_3 = arith.constant 0 : i32
    return %c0_i32, %c0_i32_0, %c0_i32_1, %c0_i32_2 : i32, i32, i32, i32
  }
}

</mosaic_0001>

<llo_original>
// kernel: resblock_forward.1
$region0: #{resblock_forward.1}
  #allocation0 [shape = 'u32[]', space=smem, size = 0x4, offset = 0x4, fixed_abs, tag = 'smem constant byte address 0x4 - core index']
  #allocation1 [shape = 'u32[144,128]{1,0:T(1,128)}', space=vmem, size = 0x12000, scoped, tag = 'internal scratch']
  %s0 = inlined_call_operand.hbm [shape: f32[4,8,8,128], index: 0, kind: input, shape index: {}]
  %s1 = inlined_call_operand.hbm [shape: f32[1152,128], index: 1, kind: input, shape index: {}]
  %s2 = inlined_call_operand.hbm [shape: f32[1,128], index: 2, kind: input, shape index: {}]
  %s3 = inlined_call_operand.hbm [shape: f32[1,128], index: 3, kind: input, shape index: {}]
  %s4 = inlined_call_operand.hbm [shape: f32[1152,128], index: 4, kind: input, shape index: {}]
  %s5 = inlined_call_operand.hbm [shape: f32[1,128], index: 5, kind: input, shape index: {}]
  %s6 = inlined_call_operand.hbm [shape: f32[1,128], index: 6, kind: input, shape index: {}]
  %s7 = inlined_call_operand.hbm [shape: f32[4,8,8,128], index: 7, kind: output, shape index: {}]
  %s8 = sld [smem:[#allocation0]]
  $region66: #{resblock_forward.1} parent=0
    _
  %s10 = ssub.s32 1, %s8
  %s11 = scalar_select 0, %s10, %s8
  $region1: #{resblock_forward.1} parent=0
    #allocation2 [shape = 'u8[131072]{0}', space=vmem, size = 0x20000, scoped, tag = 'input window, operand 0, single buffered']
    #allocation3 [shape = 's32[1]{0}', space=sflag, size = 0x4, scoped, tag = 'scoped memory for resblock_forward.1']
    #allocation4 [shape = 's32[1]{0}', space=sflag, size = 0x4, scoped, tag = 'scoped memory for resblock_forward.1']
    #allocation5 [shape = 'u8[589824]{0}', space=vmem, size = 0x90000, scoped, tag = 'input window, operand 1, single buffered']
    #allocation6 [shape = 's32[1]{0}', space=sflag, size = 0x4, scoped, tag = 'scoped memory for resblock_forward.1']
    #allocation7 [shape = 'u8[512]{0}', space=vmem, size = 0x400, scoped, tag = 'input window, operand 2, single buffered']
    #allocation8 [shape = 'u8[512]{0}', space=vmem, size = 0x400, scoped, tag = 'input window, operand 3, single buffered']
    #allocation9 [shape = 's32[1]{0}', space=sflag, size = 0x4, scoped, tag = 'scoped memory for resblock_forward.1']
    #allocation10 [shape = 'u8[589824]{0}', space=vmem, size = 0x90000, scoped, tag = 'input window, operand 4, single buffered']
    #allocation11 [shape = 'u8[512]{0}', space=vmem, size = 0x400, scoped, tag = 'input window, operand 5, single buffered']
    #allocation12 [shape = 's32[1]{0}', space=sflag, size = 0x4, scoped, tag = 'scoped memory for resblock_forward.1']
    #allocation13 [shape = 'u8[512]{0}', space=vmem, size = 0x400, scoped, tag = 'input window, operand 6, single buffered']
    #allocation14 [shape = 'u8[131072]{0}', space=vmem, size = 0x20000, scoped, tag = 'output window, operand 0, single buffered']
    %12 = vsyncpa [#allocation3], 0
    %13 = vsyncpa [#allocation6], 0
    %14 = vsyncpa [#allocation9], 0
    %15 = vsyncpa [#allocation12], 0
    %16 = vsyncpa [#allocation4], 0
    // Predicated region
    $region2: #{resblock_forward.1} parent=1 // pred_check
      _
    $region3: #{resblock_forward.1} parent=1 // pred_check_branch
      %18 = sbr.rel (0) target = $region5
    $region4: #{resblock_forward.1} parent=1 // pred_region
      %s20 = ssub.s32 4096, 4096
      %21 = vsyncadd [#allocation3], %s20
      %s22 = sshll.u32 [#allocation2], 4
      %s23 = int_to_ptr.vmem [resolvable:$true] %s22
      %28 = dma.hbm_to_vmem [thread:$0]  %s0, 4096, %s23, [#allocation3], 128, 128, 8
    $region5: #{resblock_forward.1} parent=1 // pred_fallthru
      _
    // Predicated region
    $region6: #{resblock_forward.1} parent=1 // pred_check
      _
    $region7: #{resblock_forward.1} parent=1 // pred_check_branch
      %30 = sbr.rel (0) target = $region9
    $region8: #{resblock_forward.1} parent=1 // pred_region
      %s32 = ssub.s32 18432, 18432
      %33 = vsyncadd [#allocation6], %s32
      %s34 = sshll.u32 [#allocation5], 4
      %s35 = int_to_ptr.vmem [resolvable:$true] %s34
      %40 = dma.hbm_to_vmem [thread:$0]  %s1, 18432, %s35, [#allocation6], 128, 128, 8
    $region9: #{resblock_forward.1} parent=1 // pred_fallthru
      _
    // Predicated region
    $region10: #{resblock_forward.1} parent=1 // pred_check
      _
    $region11: #{resblock_forward.1} parent=1 // pred_check_branch
      %42 = sbr.rel (0) target = $region13
    $region12: #{resblock_forward.1} parent=1 // pred_region
      %s44 = ssub.s32 16, 16
      %45 = vsyncadd [#allocation6], %s44
      %s47 = sshll.u32 [#allocation7], 4
      %s48 = int_to_ptr.vmem [resolvable:$true] %s47
      %50 = dma.hbm_to_vmem [thread:$0]  %s2, 16, %s48, [#allocation6]
    $region13: #{resblock_forward.1} parent=1 // pred_fallthru
      _
    // Predicated region
    $region14: #{resblock_forward.1} parent=1 // pred_check
      _
    $region15: #{resblock_forward.1} parent=1 // pred_check_branch
      %52 = sbr.rel (0) target = $region17
    $region16: #{resblock_forward.1} parent=1 // pred_region
      %s54 = ssub.s32 16, 16
      %55 = vsyncadd [#allocation9], %s54
      %s57 = sshll.u32 [#allocation8], 4
      %s58 = int_to_ptr.vmem [resolvable:$true] %s57
      %60 = dma.hbm_to_vmem [thread:$0]  %s3, 16, %s58, [#allocation9]
    $region17: #{resblock_forward.1} parent=1 // pred_fallthru
      _
    // Predicated region
    $region18: #{resblock_forward.1} parent=1 // pred_check
      _
    $region19: #{resblock_forward.1} parent=1 // pred_check_branch
      %62 = sbr.rel (0) target = $region21
    $region20: #{resblock_forward.1} parent=1 // pred_region
      %s64 = ssub.s32 18432, 18432
      %65 = vsyncadd [#allocation9], %s64
      %s66 = sshll.u32 [#allocation10], 4
      %s67 = int_to_ptr.vmem [resolvable:$true] %s66
      %72 = dma.hbm_to_vmem [thread:$0]  %s4, 18432, %s67, [#allocation9], 128, 128, 8
    $region21: #{resblock_forward.1} parent=1 // pred_fallthru
      _
    // Predicated region
    $region22: #{resblock_forward.1} parent=1 // pred_check
      _
    $region23: #{resblock_forward.1} parent=1 // pred_check_branch
      %74 = sbr.rel (0) target = $region25
    $region24: #{resblock_forward.1} parent=1 // pred_region
      %s76 = ssub.s32 16, 16
      %77 = vsyncadd [#allocation12], %s76
      %s79 = sshll.u32 [#allocation11], 4
      %s80 = int_to_ptr.vmem [resolvable:$true] %s79
      %82 = dma.hbm_to_vmem [thread:$0]  %s5, 16, %s80, [#allocation12]
    $region25: #{resblock_forward.1} parent=1 // pred_fallthru
      _
    // Predicated region
    $region26: #{resblock_forward.1} parent=1 // pred_check
      _
    $region27: #{resblock_forward.1} parent=1 // pred_check_branch
      %84 = sbr.rel (0) target = $region29
    $region28: #{resblock_forward.1} parent=1 // pred_region
      %s86 = ssub.s32 16, 16
      %87 = vsyncadd [#allocation12], %s86
      %s89 = sshll.u32 [#allocation13], 4
      %s90 = int_to_ptr.vmem [resolvable:$true] %s89
      %92 = dma.hbm_to_vmem [thread:$0]  %s6, 16, %s90, [#allocation12]
    $region29: #{resblock_forward.1} parent=1 // pred_fallthru
      _
    // Predicated region
    $region30: #{resblock_forward.1} parent=1 // pred_check
      _
    $region31: #{resblock_forward.1} parent=1 // pred_check_branch
      %94 = sbr.rel (0) target = $region33
    $region32: #{resblock_forward.1} parent=1 // pred_region
      %95 = dma.done [#allocation3], 4096
    $region33: #{resblock_forward.1} parent=1 // pred_fallthru
      _
    // Predicated region
    $region34: #{resblock_forward.1} parent=1 // pred_check
      _
    $region35: #{resblock_forward.1} parent=1 // pred_check_branch
      %97 = sbr.rel (0) target = $region37
    $region36: #{resblock_forward.1} parent=1 // pred_region
      %98 = dma.done [#allocation6], 18432
    $region37: #{resblock_forward.1} parent=1 // pred_fallthru
      _
    // Predicated region
    $region38: #{resblock_forward.1} parent=1 // pred_check
      _
    $region39: #{resblock_forward.1} parent=1 // pred_check_branch
      %100 = sbr.rel (0) target = $region41
    $region40: #{resblock_forward.1} parent=1 // pred_region
      %101 = dma.done [#allocation6], 16
    $region41: #{resblock_forward.1} parent=1 // pred_fallthru
      _
    // Predicated region
    $region42: #{resblock_forward.1} parent=1 // pred_check
      _
    $region43: #{resblock_forward.1} parent=1 // pred_check_branch
      %103 = sbr.rel (0) target = $region45
    $region44: #{resblock_forward.1} parent=1 // pred_region
      %104 = dma.done [#allocation9], 16
    $region45: #{resblock_forward.1} parent=1 // pred_fallthru
      _
    // Predicated region
    $region46: #{resblock_forward.1} parent=1 // pred_check
      _
    $region47: #{resblock_forward.1} parent=1 // pred_check_branch
      %106 = sbr.rel (0) target = $region49
    $region48: #{resblock_forward.1} parent=1 // pred_region
      %107 = dma.done [#allocation9], 18432
    $region49: #{resblock_forward.1} parent=1 // pred_fallthru
      _
    // Predicated region
    $region50: #{resblock_forward.1} parent=1 // pred_check
      _
    $region51: #{resblock_forward.1} parent=1 // pred_check_branch
      %109 = sbr.rel (0) target = $region53
    $region52: #{resblock_forward.1} parent=1 // pred_region
      %110 = dma.done [#allocation12], 16
    $region53: #{resblock_forward.1} parent=1 // pred_fallthru
      _
    // Predicated region
    $region54: #{resblock_forward.1} parent=1 // pred_check
      _
    $region55: #{resblock_forward.1} parent=1 // pred_check_branch
      %112 = sbr.rel (0) target = $region57
    $region56: #{resblock_forward.1} parent=1 // pred_region
      %113 = dma.done [#allocation12], 16
    $region57: #{resblock_forward.1} parent=1 // pred_fallthru
      _
    %v114 = vld [vmem:[#allocation2] sm:$0xff]
    %v115 = vld [vmem:[#allocation2 + $0x8] sm:$0xff]
    %v116 = vld [vmem:[#allocation2 + $0x10] sm:$0xff]
    %v117 = vld [vmem:[#allocation2 + $0x18] sm:$0xff]
    %v118 = vld [vmem:[#allocation2 + $0x20] sm:$0xff]
    %v119 = vld [vmem:[#allocation2 + $0x28] sm:$0xff]
    %v120 = vld [vmem:[#allocation2 + $0x30] sm:$0xff]
    %v121 = vld [vmem:[#allocation2 + $0x38] sm:$0xff]
    %v122 = vld [vmem:[#allocation2 + $0x40] sm:$0xff]
    %v123 = vld [vmem:[#allocation2 + $0x48] sm:$0xff]
    %v124 = vld [vmem:[#allocation2 + $0x50] sm:$0xff]
    %v125 = vld [vmem:[#allocation2 + $0x58] sm:$0xff]
    %v126 = vld [vmem:[#allocation2 + $0x60] sm:$0xff]
    %v127 = vld [vmem:[#allocation2 + $0x68] sm:$0xff]
    %v128 = vld [vmem:[#allocation2 + $0x70] sm:$0xff]
    %v129 = vld [vmem:[#allocation2 + $0x78] sm:$0xff]
    %v130 = vld [vmem:[#allocation2 + $0x80] sm:$0xff]
    %v131 = vld [vmem:[#allocation2 + $0x88] sm:$0xff]
    %v132 = vld [vmem:[#allocation2 + $0x90] sm:$0xff]
    %v133 = vld [vmem:[#allocation2 + $0x98] sm:$0xff]
    %v134 = vld [vmem:[#allocation2 + $0xa0] sm:$0xff]
    %v135 = vld [vmem:[#allocation2 + $0xa8] sm:$0xff]
    %v136 = vld [vmem:[#allocation2 + $0xb0] sm:$0xff]
    %v137 = vld [vmem:[#allocation2 + $0xb8] sm:$0xff]
    %v138 = vld [vmem:[#allocation2 + $0xc0] sm:$0xff]
    %v139 = vld [vmem:[#allocation2 + $0xc8] sm:$0xff]
    %v140 = vld [vmem:[#allocation2 + $0xd0] sm:$0xff]
    %v141 = vld [vmem:[#allocation2 + $0xd8] sm:$0xff]
    %v142 = vld [vmem:[#allocation2 + $0xe0] sm:$0xff]
    %v143 = vld [vmem:[#allocation2 + $0xe8] sm:$0xff]
    %v144 = vld [vmem:[#allocation2 + $0xf0] sm:$0xff]
    %v145 = vld [vmem:[#allocation2 + $0xf8] sm:$0xff]
    %v175 = vrot.slane 0.0, 7
    %v176 = vrot.slane %v114, 7
    %v177 = vrot.slane %v115, 7
    %v178 = vrot.slane %v116, 7
    %v179 = vrot.slane %v117, 7
    %v180 = vrot.slane %v118, 7
    %v181 = vrot.slane %v119, 7
    %v182 = vrot.slane %v120, 7
    %v183 = vrot.slane %v122, 7
    %v184 = vrot.slane %v123, 7
    %v185 = vrot.slane %v124, 7
    %v186 = vrot.slane %v125, 7
    %v187 = vrot.slane %v126, 7
    %v188 = vrot.slane %v127, 7
    %v189 = vrot.slane %v128, 7
    %v190 = vrot.slane %v130, 7
    %v191 = vrot.slane %v131, 7
    %v192 = vrot.slane %v132, 7
    %v193 = vrot.slane %v133, 7
    %v194 = vrot.slane %v134, 7
    %v195 = vrot.slane %v135, 7
    %v196 = vrot.slane %v136, 7
    %v197 = vrot.slane %v138, 7
    %v198 = vrot.slane %v139, 7
    %v199 = vrot.slane %v140, 7
    %v200 = vrot.slane %v141, 7
    %v201 = vrot.slane %v142, 7
    %v202 = vrot.slane %v143, 7
    %v203 = vrot.slane %v144, 7
    %vm233 = vcmask 1040384
    %v234 = vsel %vm233, 0.0, %v175
    %v235 = vsel %vm233, 0.0, %v176
    %v236 = vsel %vm233, 0.0, %v177
    %v237 = vsel %vm233, 0.0, %v178
    %v238 = vsel %vm233, 0.0, %v179
    %v239 = vsel %vm233, 0.0, %v180
    %v240 = vsel %vm233, 0.0, %v181
    %v241 = vsel %vm233, 0.0, %v182
    %v242 = vsel %vm233, 0.0, %v183
    %v243 = vsel %vm233, 0.0, %v184
    %v244 = vsel %vm233, 0.0, %v185
    %v245 = vsel %vm233, 0.0, %v186
    %v246 = vsel %vm233, 0.0, %v187
    %v247 = vsel %vm233, 0.0, %v188
    %v248 = vsel %vm233, 0.0, %v189
    %v249 = vsel %vm233, 0.0, %v190
    %v250 = vsel %vm233, 0.0, %v191
    %v251 = vsel %vm233, 0.0, %v192
    %v252 = vsel %vm233, 0.0, %v193
    %v253 = vsel %vm233, 0.0, %v194
    %v254 = vsel %vm233, 0.0, %v195
    %v255 = vsel %vm233, 0.0, %v196
    %v256 = vsel %vm233, 0.0, %v197
    %v257 = vsel %vm233, 0.0, %v198
    %v258 = vsel %vm233, 0.0, %v199
    %v259 = vsel %vm233, 0.0, %v200
    %v260 = vsel %vm233, 0.0, %v201
    %v261 = vsel %vm233, 0.0, %v202
    %v262 = vsel %vm233, 0.0, %v203
    %v263 = vrot.slane 0.0, 1
    %v264 = vrot.slane %v114, 1
    %v265 = vrot.slane %v115, 1
    %v266 = vrot.slane %v116, 1
    %v267 = vrot.slane %v117, 1
    %v268 = vrot.slane %v118, 1
    %v269 = vrot.slane %v119, 1
    %v270 = vrot.slane %v120, 1
    %v271 = vrot.slane %v122, 1
    %v272 = vrot.slane %v123, 1
    %v273 = vrot.slane %v124, 1
    %v274 = vrot.slane %v125, 1
    %v275 = vrot.slane %v126, 1
    %v276 = vrot.slane %v127, 1
    %v277 = vrot.slane %v128, 1
    %v278 = vrot.slane %v130, 1
    %v279 = vrot.slane %v131, 1
    %v280 = vrot.slane %v132, 1
    %v281 = vrot.slane %v133, 1
    %v282 = vrot.slane %v134, 1
    %v283 = vrot.slane %v135, 1
    %v284 = vrot.slane %v136, 1
    %v285 = vrot.slane %v138, 1
    %v286 = vrot.slane %v139, 1
    %v287 = vrot.slane %v140, 1
    %v288 = vrot.slane %v141, 1
    %v289 = vrot.slane %v142, 1
    %v290 = vrot.slane %v143, 1
    %v291 = vrot.slane %v144, 1
    %vm321 = vcmask 1046528
    %v322 = vsel %vm321, %v263, 0.0
    %v323 = vsel %vm321, %v264, 0.0
    %v324 = vsel %vm321, %v265, 0.0
    %v325 = vsel %vm321, %v266, 0.0
    %v326 = vsel %vm321, %v267, 0.0
    %v327 = vsel %vm321, %v268, 0.0
    %v328 = vsel %vm321, %v269, 0.0
    %v329 = vsel %vm321, %v270, 0.0
    %v330 = vsel %vm321, %v271, 0.0
    %v331 = vsel %vm321, %v272, 0.0
    %v332 = vsel %vm321, %v273, 0.0
    %v333 = vsel %vm321, %v274, 0.0
    %v334 = vsel %vm321, %v275, 0.0
    %v335 = vsel %vm321, %v276, 0.0
    %v336 = vsel %vm321, %v277, 0.0
    %v337 = vsel %vm321, %v278, 0.0
    %v338 = vsel %vm321, %v279, 0.0
    %v339 = vsel %vm321, %v280, 0.0
    %v340 = vsel %vm321, %v281, 0.0
    %v341 = vsel %vm321, %v282, 0.0
    %v342 = vsel %vm321, %v283, 0.0
    %v343 = vsel %vm321, %v284, 0.0
    %v344 = vsel %vm321, %v285, 0.0
    %v345 = vsel %vm321, %v286, 0.0
    %v346 = vsel %vm321, %v287, 0.0
    %v347 = vsel %vm321, %v288, 0.0
    %v348 = vsel %vm321, %v289, 0.0
    %v349 = vsel %vm321, %v290, 0.0
    %v350 = vsel %vm321, %v291, 0.0
    %v355 = vrot.slane %v121, 7
    %v356 = vrot.slane %v129, 7
    %v357 = vrot.slane %v137, 7
    %v358 = vrot.slane %v145, 7
    %v363 = vsel %vm233, 0.0, %v355
    %v364 = vsel %vm233, 0.0, %v356
    %v365 = vsel %vm233, 0.0, %v357
    %v366 = vsel %vm233, 0.0, %v358
    %v367 = vrot.slane %v121, 1
    %v368 = vrot.slane %v129, 1
    %v369 = vrot.slane %v137, 1
    %v370 = vrot.slane %v145, 1
    %v375 = vsel %vm321, %v367, 0.0
    %v376 = vsel %vm321, %v368, 0.0
    %v377 = vsel %vm321, %v369, 0.0
    %v378 = vsel %vm321, %v370, 0.0
    %v379 = vld [vmem:[#allocation5] sm:$0xff]
    %v380 = vld [vmem:[#allocation5 + $0x8] sm:$0xff]
    %v381 = vld [vmem:[#allocation5 + $0x10] sm:$0xff]
    %v382 = vld [vmem:[#allocation5 + $0x18] sm:$0xff]
    %v383 = vld [vmem:[#allocation5 + $0x20] sm:$0xff]
    %v384 = vld [vmem:[#allocation5 + $0x28] sm:$0xff]
    %v385 = vld [vmem:[#allocation5 + $0x30] sm:$0xff]
    %v386 = vld [vmem:[#allocation5 + $0x38] sm:$0xff]
    %v387 = vld [vmem:[#allocation5 + $0x40] sm:$0xff]
    %v388 = vld [vmem:[#allocation5 + $0x48] sm:$0xff]
    %v389 = vld [vmem:[#allocation5 + $0x50] sm:$0xff]
    %v390 = vld [vmem:[#allocation5 + $0x58] sm:$0xff]
    %v391 = vld [vmem:[#allocation5 + $0x60] sm:$0xff]
    %v392 = vld [vmem:[#allocation5 + $0x68] sm:$0xff]
    %v393 = vld [vmem:[#allocation5 + $0x70] sm:$0xff]
    %v394 = vld [vmem:[#allocation5 + $0x78] sm:$0xff]
    %v395 = vld [vmem:[#allocation5 + $0x80] sm:$0xff]
    %v396 = vld [vmem:[#allocation5 + $0x88] sm:$0xff]
    %v397 = vld [vmem:[#allocation5 + $0x90] sm:$0xff]
    %v398 = vld [vmem:[#allocation5 + $0x98] sm:$0xff]
    %v399 = vld [vmem:[#allocation5 + $0xa0] sm:$0xff]
    %v400 = vld [vmem:[#allocation5 + $0xa8] sm:$0xff]
    %v401 = vld [vmem:[#allocation5 + $0xb0] sm:$0xff]
    %v402 = vld [vmem:[#allocation5 + $0xb8] sm:$0xff]
    %v403 = vld [vmem:[#allocation5 + $0xc0] sm:$0xff]
    %v404 = vld [vmem:[#allocation5 + $0xc8] sm:$0xff]
    %v405 = vld [vmem:[#allocation5 + $0xd0] sm:$0xff]
    %v406 = vld [vmem:[#allocation5 + $0xd8] sm:$0xff]
    %v407 = vld [vmem:[#allocation5 + $0xe0] sm:$0xff]
    %v408 = vld [vmem:[#allocation5 + $0xe8] sm:$0xff]
    %v409 = vld [vmem:[#allocation5 + $0xf0] sm:$0xff]
    %v410 = vld [vmem:[#allocation5 + $0xf8] sm:$0xff]
    %v411 = vld [vmem:[#allocation5 + $0x100] sm:$0xff]
    %v412 = vld [vmem:[#allocation5 + $0x108] sm:$0xff]
    %v413 = vld [vmem:[#allocation5 + $0x110] sm:$0xff]
    %v414 = vld [vmem:[#allocation5 + $0x118] sm:$0xff]
    %v415 = vld [vmem:[#allocation5 + $0x120] sm:$0xff]
    %v416 = vld [vmem:[#allocation5 + $0x128] sm:$0xff]
    %v417 = vld [vmem:[#allocation5 + $0x130] sm:$0xff]
    %v418 = vld [vmem:[#allocation5 + $0x138] sm:$0xff]
    %v419 = vld [vmem:[#allocation5 + $0x140] sm:$0xff]
    %v420 = vld [vmem:[#allocation5 + $0x148] sm:$0xff]
    %v421 = vld [vmem:[#allocation5 + $0x150] sm:$0xff]
    %v422 = vld [vmem:[#allocation5 + $0x158] sm:$0xff]
    %v423 = vld [vmem:[#allocation5 + $0x160] sm:$0xff]
    %v424 = vld [vmem:[#allocation5 + $0x168] sm:$0xff]
    %v425 = vld [vmem:[#allocation5 + $0x170] sm:$0xff]
    %v426 = vld [vmem:[#allocation5 + $0x178] sm:$0xff]
    %v427 = vld [vmem:[#allocation5 + $0x180] sm:$0xff]
    %v428 = vld [vmem:[#allocation5 + $0x188] sm:$0xff]
    %v429 = vld [vmem:[#allocation5 + $0x190] sm:$0xff]
    %v430 = vld [vmem:[#allocation5 + $0x198] sm:$0xff]
    %v431 = vld [vmem:[#allocation5 + $0x1a0] sm:$0xff]
    %v432 = vld [vmem:[#allocation5 + $0x1a8] sm:$0xff]
    %v433 = vld [vmem:[#allocation5 + $0x1b0] sm:$0xff]
    %v434 = vld [vmem:[#allocation5 + $0x1b8] sm:$0xff]
    %v435 = vld [vmem:[#allocation5 + $0x1c0] sm:$0xff]
    %v436 = vld [vmem:[#allocation5 + $0x1c8] sm:$0xff]
    %v437 = vld [vmem:[#allocation5 + $0x1d0] sm:$0xff]
    %v438 = vld [vmem:[#allocation5 + $0x1d8] sm:$0xff]
    %v439 = vld [vmem:[#allocation5 + $0x1e0] sm:$0xff]
    %v440 = vld [vmem:[#allocation5 + $0x1e8] sm:$0xff]
    %v441 = vld [vmem:[#allocation5 + $0x1f0] sm:$0xff]
    %v442 = vld [vmem:[#allocation5 + $0x1f8] sm:$0xff]
    %v443 = vld [vmem:[#allocation5 + $0x200] sm:$0xff]
    %v444 = vld [vmem:[#allocation5 + $0x208] sm:$0xff]
    %v445 = vld [vmem:[#allocation5 + $0x210] sm:$0xff]
    %v446 = vld [vmem:[#allocation5 + $0x218] sm:$0xff]
    %v447 = vld [vmem:[#allocation5 + $0x220] sm:$0xff]
    %v448 = vld [vmem:[#allocation5 + $0x228] sm:$0xff]
    %v449 = vld [vmem:[#allocation5 + $0x230] sm:$0xff]
    %v450 = vld [vmem:[#allocation5 + $0x238] sm:$0xff]
    %v451 = vld [vmem:[#allocation5 + $0x240] sm:$0xff]
    %v452 = vld [vmem:[#allocation5 + $0x248] sm:$0xff]
    %v453 = vld [vmem:[#allocation5 + $0x250] sm:$0xff]
    %v454 = vld [vmem:[#allocation5 + $0x258] sm:$0xff]
    %v455 = vld [vmem:[#allocation5 + $0x260] sm:$0xff]
    %v456 = vld [vmem:[#allocation5 + $0x268] sm:$0xff]
    %v457 = vld [vmem:[#allocation5 + $0x270] sm:$0xff]
    %v458 = vld [vmem:[#allocation5 + $0x278] sm:$0xff]
    %v459 = vld [vmem:[#allocation5 + $0x280] sm:$0xff]
    %v460 = vld [vmem:[#allocation5 + $0x288] sm:$0xff]
    %v461 = vld [vmem:[#allocation5 + $0x290] sm:$0xff]
    %v462 = vld [vmem:[#allocation5 + $0x298] sm:$0xff]
    %v463 = vld [vmem:[#allocation5 + $0x2a0] sm:$0xff]
    %v464 = vld [vmem:[#allocation5 + $0x2a8] sm:$0xff]
    %v465 = vld [vmem:[#allocation5 + $0x2b0] sm:$0xff]
    %v466 = vld [vmem:[#allocation5 + $0x2b8] sm:$0xff]
    %v467 = vld [vmem:[#allocation5 + $0x2c0] sm:$0xff]
    %v468 = vld [vmem:[#allocation5 + $0x2c8] sm:$0xff]
    %v469 = vld [vmem:[#allocation5 + $0x2d0] sm:$0xff]
    %v470 = vld [vmem:[#allocation5 + $0x2d8] sm:$0xff]
    %v471 = vld [vmem:[#allocation5 + $0x2e0] sm:$0xff]
    %v472 = vld [vmem:[#allocation5 + $0x2e8] sm:$0xff]
    %v473 = vld [vmem:[#allocation5 + $0x2f0] sm:$0xff]
    %v474 = vld [vmem:[#allocation5 + $0x2f8] sm:$0xff]
    %v475 = vld [vmem:[#allocation5 + $0x300] sm:$0xff]
    %v476 = vld [vmem:[#allocation5 + $0x308] sm:$0xff]
    %v477 = vld [vmem:[#allocation5 + $0x310] sm:$0xff]
    %v478 = vld [vmem:[#allocation5 + $0x318] sm:$0xff]
    %v479 = vld [vmem:[#allocation5 + $0x320] sm:$0xff]
    %v480 = vld [vmem:[#allocation5 + $0x328] sm:$0xff]
    %v481 = vld [vmem:[#allocation5 + $0x330] sm:$0xff]
    %v482 = vld [vmem:[#allocation5 + $0x338] sm:$0xff]
    %v483 = vld [vmem:[#allocation5 + $0x340] sm:$0xff]
    %v484 = vld [vmem:[#allocation5 + $0x348] sm:$0xff]
    %v485 = vld [vmem:[#allocation5 + $0x350] sm:$0xff]
    %v486 = vld [vmem:[#allocation5 + $0x358] sm:$0xff]
    %v487 = vld [vmem:[#allocation5 + $0x360] sm:$0xff]
    %v488 = vld [vmem:[#allocation5 + $0x368] sm:$0xff]
    %v489 = vld [vmem:[#allocation5 + $0x370] sm:$0xff]
    %v490 = vld [vmem:[#allocation5 + $0x378] sm:$0xff]
    %v491 = vld [vmem:[#allocation5 + $0x380] sm:$0xff]
    %v492 = vld [vmem:[#allocation5 + $0x388] sm:$0xff]
    %v493 = vld [vmem:[#allocation5 + $0x390] sm:$0xff]
    %v494 = vld [vmem:[#allocation5 + $0x398] sm:$0xff]
    %v495 = vld [vmem:[#allocation5 + $0x3a0] sm:$0xff]
    %v496 = vld [vmem:[#allocation5 + $0x3a8] sm:$0xff]
    %v497 = vld [vmem:[#allocation5 + $0x3b0] sm:$0xff]
    %v498 = vld [vmem:[#allocation5 + $0x3b8] sm:$0xff]
    %v499 = vld [vmem:[#allocation5 + $0x3c0] sm:$0xff]
    %v500 = vld [vmem:[#allocation5 + $0x3c8] sm:$0xff]
    %v501 = vld [vmem:[#allocation5 + $0x3d0] sm:$0xff]
    %v502 = vld [vmem:[#allocation5 + $0x3d8] sm:$0xff]
    %v503 = vld [vmem:[#allocation5 + $0x3e0] sm:$0xff]
    %v504 = vld [vmem:[#allocation5 + $0x3e8] sm:$0xff]
    %v505 = vld [vmem:[#allocation5 + $0x3f0] sm:$0xff]
    %v506 = vld [vmem:[#allocation5 + $0x3f8] sm:$0xff]
    %v507 = vld [vmem:[#allocation5 + $0x400] sm:$0xff]
    %v508 = vld [vmem:[#allocation5 + $0x408] sm:$0xff]
    %v509 = vld [vmem:[#allocation5 + $0x410] sm:$0xff]
    %v510 = vld [vmem:[#allocation5 + $0x418] sm:$0xff]
    %v511 = vld [vmem:[#allocation5 + $0x420] sm:$0xff]
    %v512 = vld [vmem:[#allocation5 + $0x428] sm:$0xff]
    %v513 = vld [vmem:[#allocation5 + $0x430] sm:$0xff]
    %v514 = vld [vmem:[#allocation5 + $0x438] sm:$0xff]
    %v515 = vld [vmem:[#allocation5 + $0x440] sm:$0xff]
    %v516 = vld [vmem:[#allocation5 + $0x448] sm:$0xff]
    %v517 = vld [vmem:[#allocation5 + $0x450] sm:$0xff]
    %v518 = vld [vmem:[#allocation5 + $0x458] sm:$0xff]
    %v519 = vld [vmem:[#allocation5 + $0x460] sm:$0xff]
    %v520 = vld [vmem:[#allocation5 + $0x468] sm:$0xff]
    %v521 = vld [vmem:[#allocation5 + $0x470] sm:$0xff]
    %v522 = vld [vmem:[#allocation5 + $0x478] sm:$0xff]
    %523 = vmatprep.subr.mxu0 0.0
    %524 = vmatpush1.msra.mxu0 %v379
    %525 = vmatprep.subr.mxu0 0.0
    %526 = vmatpush1.msra.mxu0 %v380
    %527 = vmatprep.subr.mxu0 0.0
    %528 = vmatpush1.msra.mxu0 %v381
    %529 = vmatprep.subr.mxu0 0.0
    %530 = vmatpush1.msra.mxu0 %v382
    %531 = vmatprep.subr.mxu0 0.0
    %532 = vmatpush1.msra.mxu0 %v383
    %533 = vmatprep.subr.mxu0 0.0
    %534 = vmatpush1.msra.mxu0 %v384
    %535 = vmatprep.subr.mxu0 0.0
    %536 = vmatpush1.msra.mxu0 %v385
    %537 = vmatprep.subr.mxu0 0.0
    %538 = vmatpush1.msra.mxu0 %v386
    %539 = vmatprep.subr.mxu0 0.0
    %540 = vmatpush1.msra.mxu0 %v387
    %541 = vmatprep.subr.mxu0 0.0
    %542 = vmatpush1.msra.mxu0 %v388
    %543 = vmatprep.subr.mxu0 0.0
    %544 = vmatpush1.msra.mxu0 %v389
    %545 = vmatprep.subr.mxu0 0.0
    %546 = vmatpush1.msra.mxu0 %v390
    %547 = vmatprep.subr.mxu0 0.0
    %548 = vmatpush1.msra.mxu0 %v391
    %549 = vmatprep.subr.mxu0 0.0
    %550 = vmatpush1.msra.mxu0 %v392
    %551 = vmatprep.subr.mxu0 0.0
    %552 = vmatpush1.msra.mxu0 %v393
    %553 = vmatprep.subr.mxu0 0.0
    %554 = vmatpush1.msra.mxu0 %v394
    %555 = vmatprep.subr.mxu0 0.0
    %556 = vmatpush1.msra.mxu0 %v395
    %557 = vmatprep.subr.mxu0 0.0
    %558 = vmatpush1.msra.mxu0 %v396
    %559 = vmatprep.subr.mxu0 0.0
    %560 = vmatpush1.msra.mxu0 %v397
    %561 = vmatprep.subr.mxu0 0.0
    %562 = vmatpush1.msra.mxu0 %v398
    %563 = vmatprep.subr.mxu0 0.0
    %564 = vmatpush1.msra.mxu0 %v399
    %565 = vmatprep.subr.mxu0 0.0
    %566 = vmatpush1.msra.mxu0 %v400
    %567 = vmatprep.subr.mxu0 0.0
    %568 = vmatpush1.msra.mxu0 %v401
    %569 = vmatprep.subr.mxu0 0.0
    %570 = vmatpush1.msra.mxu0 %v402
    %571 = vmatprep.subr.mxu0 0.0
    %572 = vmatpush1.msra.mxu0 %v403
    %573 = vmatprep.subr.mxu0 0.0
    %574 = vmatpush1.msra.mxu0 %v404
    %575 = vmatprep.subr.mxu0 0.0
    %576 = vmatpush1.msra.mxu0 %v405
    %577 = vmatprep.subr.mxu0 0.0
    %578 = vmatpush1.msra.mxu0 %v406
    %579 = vmatprep.subr.mxu0 0.0
    %580 = vmatpush1.msra.mxu0 %v407
    %581 = vmatprep.subr.mxu0 0.0
    %582 = vmatpush1.msra.mxu0 %v408
    %583 = vmatprep.subr.mxu0 0.0
    %584 = vmatpush1.msra.mxu0 %v409
    %585 = vmatprep.subr.mxu0 0.0
    %586 = vmatpush1.msra.mxu0 %v410
    %587 = vmatprep.mubr.f32.mxu0 0.0
    %588 = vmatmul.mubr.f32.gmra.mrb[0].mxu0 %v234
    %v589 = vpop.f32.mrb[0].mxu0
    %v590 = vadd.f32 0.0, %v589
    %v591 = vpop.f32.mrb[0].mxu0
    %592 = vmatprep.mubr.f32.mxu0 %v114
    %593 = vmatmul.mubr.f32.gmra.mrb[0].mxu0 %v235
    %v594 = vpop.f32.mrb[0].mxu0
    %v595 = vadd.f32 0.0, %v594
    %v596 = vpop.f32.mrb[0].mxu0
    %597 = vmatprep.mubr.f32.mxu0 %v115
    %598 = vmatmul.mubr.f32.gmra.mrb[0].mxu0 %v236
    %v599 = vpop.f32.mrb[0].mxu0
    %v600 = vadd.f32 0.0, %v599
    %v601 = vpop.f32.mrb[0].mxu0
    %602 = vmatprep.mubr.f32.mxu0 %v116
    %603 = vmatmul.mubr.f32.gmra.mrb[0].mxu0 %v237
    %v604 = vpop.f32.mrb[0].mxu0
    %v605 = vadd.f32 0.0, %v604
    %v606 = vpop.f32.mrb[0].mxu0
    %607 = vmatprep.mubr.f32.mxu0 %v117
    %608 = vmatmul.mubr.f32.gmra.mrb[0].mxu0 %v238
    %v609 = vpop.f32.mrb[0].mxu0
    %v610 = vadd.f32 0.0, %v609
    %v611 = vpop.f32.mrb[0].mxu0
    %612 = vmatprep.mubr.f32.mxu0 %v118
    %613 = vmatmul.mubr.f32.gmra.mrb[0].mxu0 %v239
    %v614 = vpop.f32.mrb[0].mxu0
    %v615 = vadd.f32 0.0, %v614
    %v616 = vpop.f32.mrb[0].mxu0
    %617 = vmatprep.mubr.f32.mxu0 %v119
    %618 = vmatmul.mubr.f32.gmra.mrb[0].mxu0 %v240
    %v619 = vpop.f32.mrb[0].mxu0
    %v620 = vadd.f32 0.0, %v619
    %v621 = vpop.f32.mrb[0].mxu0
    %622 = vmatprep.mubr.f32.mxu0 %v120
    %623 = vmatmul.mubr.f32.gmra.mrb[0].mxu0 %v241
    %v624 = vpop.f32.mrb[0].mxu0
    %v625 = vadd.f32 0.0, %v624
    %v626 = vpop.f32.mrb[0].mxu0
    %627 = vmatprep.mubr.f32.mxu0 0.0
    %628 = vmatmul.mubr.f32.gmra.mrb[0].mxu0 %v234
    %v629 = vpop.f32.mrb[0].mxu0
    %v630 = vadd.f32 0.0, %v629
    %v631 = vpop.f32.mrb[0].mxu0
    %632 = vmatprep.mubr.f32.mxu0 %v122
    %633 = vmatmul.mubr.f32.gmra.mrb[0].mxu0 %v242
    %v634 = vpop.f32.mrb[0].mxu0
    %v635 = vadd.f32 0.0, %v634
    %v636 = vpop.f32.mrb[0].mxu0
    %637 = vmatprep.mubr.f32.mxu0 %v123
    %638 = vmatmul.mubr.f32.gmra.mrb[0].mxu0 %v243
    %v639 = vpop.f32.mrb[0].mxu0
    %v640 = vadd.f32 0.0, %v639
    %v641 = vpop.f32.mrb[0].mxu0
    %642 = vmatprep.mubr.f32.mxu0 %v124
    %643 = vmatmul.mubr.f32.gmra.mrb[0].mxu0 %v244
    %v644 = vpop.f32.mrb[0].mxu0
    %v645 = vadd.f32 0.0, %v644
    %v646 = vpop.f32.mrb[0].mxu0
    %647 = vmatprep.mubr.f32.mxu0 %v125
    %648 = vmatmul.mubr.f32.gmra.mrb[0].mxu0 %v245
    %v649 = vpop.f32.mrb[0].mxu0
    %v650 = vadd.f32 0.0, %v649
    %v651 = vpop.f32.mrb[0].mxu0
    %652 = vmatprep.mubr.f32.mxu0 %v126
    %653 = vmatmul.mubr.f32.gmra.mrb[0].mxu0 %v246
    %v654 = vpop.f32.mrb[0].mxu0
    %v655 = vadd.f32 0.0, %v654
    %v656 = vpop.f32.mrb[0].mxu0
    %657 = vmatprep.mubr.f32.mxu0 %v127
    %658 = vmatmul.mubr.f32.gmra.mrb[0].mxu0 %v247
    %v659 = vpop.f32.mrb[0].mxu0
    %v660 = vadd.f32 0.0, %v659
    %v661 = vpop.f32.mrb[0].mxu0
    %662 = vmatprep.mubr.f32.mxu0 %v128
    %663 = vmatmul.mubr.f32.gmra.mrb[0].mxu0 %v248
    %v664 = vpop.f32.mrb[0].mxu0
    %v665 = vadd.f32 0.0, %v664
    %v666 = vpop.f32.mrb[0].mxu0
    %667 = vmatprep.mubr.f32.mxu0 0.0
    %668 = vmatmul.mubr.f32.gmra.mrb[0].mxu0 %v234
    %v669 = vpop.f32.mrb[0].mxu0
    %v670 = vadd.f32 0.0, %v669
    %v671 = vpop.f32.mrb[0].mxu0
    %672 = vmatprep.mubr.f32.mxu0 %v130
    %673 = vmatmul.mubr.f32.gmra.mrb[0].mxu0 %v249
    %v674 = vpop.f32.mrb[0].mxu0
    %v675 = vadd.f32 0.0, %v674
    %v676 = vpop.f32.mrb[0].mxu0
    %677 = vmatprep.mubr.f32.mxu0 %v131
    %678 = vmatmul.mubr.f32.gmra.mrb[0].mxu0 %v250
    %v679 = vpop.f32.mrb[0].mxu0
    %v680 = vadd.f32 0.0, %v679
    %v681 = vpop.f32.mrb[0].mxu0
    %682 = vmatprep.mubr.f32.mxu0 %v132
    %683 = vmatmul.mubr.f32.gmra.mrb[0].mxu0 %v251
    %v684 = vpop.f32.mrb[0].mxu0
    %v685 = vadd.f32 0.0, %v684
    %v686 = vpop.f32.mrb[0].mxu0
    %687 = vmatprep.mubr.f32.mxu0 %v133
    %688 = vmatmul.mubr.f32.gmra.mrb[0].mxu0 %v252
    %v689 = vpop.f32.mrb[0].mxu0
    %v690 = vadd.f32 0.0, %v689
    %v691 = vpop.f32.mrb[0].mxu0
    %692 = vmatprep.mubr.f32.mxu0 %v134
    %693 = vmatmul.mubr.f32.gmra.mrb[0].mxu0 %v253
    %v694 = vpop.f32.mrb[0].mxu0
    %v695 = vadd.f32 0.0, %v694
    %v696 = vpop.f32.mrb[0].mxu0
    %697 = vmatprep.mubr.f32.mxu0 %v135
    %698 = vmatmul.mubr.f32.gmra.mrb[0].mxu0 %v254
    %v699 = vpop.f32.mrb[0].mxu0
    %v700 = vadd.f32 0.0, %v699
    %v701 = vpop.f32.mrb[0].mxu0
    %702 = vmatprep.mubr.f32.mxu0 %v136
    %703 = vmatmul.mubr.f32.gmra.mrb[0].mxu0 %v255
    %v704 = vpop.f32.mrb[0].mxu0
    %v705 = vadd.f32 0.0, %v704
    %v706 = vpop.f32.mrb[0].mxu0
    %707 = vmatprep.mubr.f32.mxu0 0.0
    %708 = vmatmul.mubr.f32.gmra.mrb[0].mxu0 %v234
    %v709 = vpop.f32.mrb[0].mxu0
    %v710 = vadd.f32 0.0, %v709
    %v711 = vpop.f32.mrb[0].mxu0
    %712 = vmatprep.mubr.f32.mxu0 %v138
    %713 = vmatmul.mubr.f32.gmra.mrb[0].mxu0 %v256
    %v714 = vpop.f32.mrb[0].mxu0
    %v715 = vadd.f32 0.0, %v714
    %v716 = vpop.f32.mrb[0].mxu0
    %717 = vmatprep.mubr.f32.mxu0 %v139
    %718 = vmatmul.mubr.f32.gmra.mrb[0].mxu0 %v257
    %v719 = vpop.f32.mrb[0].mxu0
    %v720 = vadd.f32 0.0, %v719
    %v721 = vpop.f32.mrb[0].mxu0
    %722 = vmatprep.mubr.f32.mxu0 %v140
    %723 = vmatmul.mubr.f32.gmra.mrb[0].mxu0 %v258
    %v724 = vpop.f32.mrb[0].mxu0
    %v725 = vadd.f32 0.0, %v724
    %v726 = vpop.f32.mrb[0].mxu0
    %727 = vmatprep.mubr.f32.mxu0 %v141
    %728 = vmatmul.mubr.f32.gmra.mrb[0].mxu0 %v259
    %v729 = vpop.f32.mrb[0].mxu0
    %v730 = vadd.f32 0.0, %v729
    %v731 = vpop.f32.mrb[0].mxu0
    %732 = vmatprep.mubr.f32.mxu0 %v142
    %733 = vmatmul.mubr.f32.gmra.mrb[0].mxu0 %v260
    %v734 = vpop.f32.mrb[0].mxu0
    %v735 = vadd.f32 0.0, %v734
    %v736 = vpop.f32.mrb[0].mxu0
    %737 = vmatprep.mubr.f32.mxu0 %v143
    %738 = vmatmul.mubr.f32.gmra.mrb[0].mxu0 %v261
    %v739 = vpop.f32.mrb[0].mxu0
    %v740 = vadd.f32 0.0, %v739
    %v741 = vpop.f32.mrb[0].mxu0
    %742 = vmatprep.mubr.f32.mxu0 %v144
    %743 = vmatmul.mubr.f32.gmra.mrb[0].mxu0 %v262
    %v744 = vpop.f32.mrb[0].mxu0
    %v745 = vadd.f32 0.0, %v744
    %v746 = vpop.f32.mrb[0].mxu0
    %747 = vdwg.mxu0
    %748 = vmatprep.subr.mxu0 0.0
    %749 = vmatpush1.msra.mxu0 %v411
    %750 = vmatprep.subr.mxu0 0.0
    %751 = vmatpush1.msra.mxu0 %v412
    %752 = vmatprep.subr.mxu0 0.0
    %753 = vmatpush1.msra.mxu0 %v413
    %754 = vmatprep.subr.mxu0 0.0
    %755 = vmatpush1.msra.mxu0 %v414
    %756 = vmatprep.subr.mxu0 0.0
    %757 = vmatpush1.msra.mxu0 %v415
    %758 = vmatprep.subr.mxu0 0.0
    %759 = vmatpush1.msra.mxu0 %v416
    %760 = vmatprep.subr.mxu0 0.0
    %761 = vmatpush1.msra.mxu0 %v417
    %762 = vmatprep.subr.mxu0 0.0
    %763 = vmatpush1.msra.mxu0 %v418
    %764 = vmatprep.subr.mxu0 0.0
    %765 = vmatpush1.msra.mxu0 %v419
    %766 = vmatprep.subr.mxu0 0.0
    %767 = vmatpush1.msra.mxu0 %v420
    %768 = vmatprep.subr.mxu0 0.0
    %769 = vmatpush1.msra.mxu0 %v421
    %770 = vmatprep.subr.mxu0 0.0
    %771 = vmatpush1.msra.mxu0 %v422
    %772 = vmatprep.subr.mxu0 0.0
    %773 = vmatpush1.msra.mxu0 %v423
    %774 = vmatprep.subr.mxu0 0.0
    %775 = vmatpush1.msra.mxu0 %v424
    %776 = vmatprep.subr.mxu0 0.0
    %777 = vmatpush1.msra.mxu0 %v425
    %778 = vmatprep.subr.mxu0 0.0
    %779 = vmatpush1.msra.mxu0 %v426
    %780 = vmatprep.subr.mxu0 0.0
    %781 = vmatpush1.msra.mxu0 %v427
    %782 = vmatprep.subr.mxu0 0.0
    %783 = vmatpush1.msra.mxu0 %v428
    %784 = vmatprep.subr.mxu0 0.0
    %785 = vmatpush1.msra.mxu0 %v429
    %786 = vmatprep.subr.mxu0 0.0
    %787 = vmatpush1.msra.mxu0 %v430
    %788 = vmatprep.subr.mxu0 0.0
    %789 = vmatpush1.msra.mxu0 %v431
    %790 = vmatprep.subr.mxu0 0.0
    %791 = vmatpush1.msra.mxu0 %v432
    %792 = vmatprep.subr.mxu0 0.0
    %793 = vmatpush1.msra.mxu0 %v433
    %794 = vmatprep.subr.mxu0 0.0
    %795 = vmatpush1.msra.mxu0 %v434
    %796 = vmatprep.subr.mxu0 0.0
    %797 = vmatpush1.msra.mxu0 %v435
    %798 = vmatprep.subr.mxu0 0.0
    %799 = vmatpush1.msra.mxu0 %v436
    %800 = vmatprep.subr.mxu0 0.0
    %801 = vmatpush1.msra.mxu0 %v437
    %802 = vmatprep.subr.mxu0 0.0
    %803 = vmatpush1.msra.mxu0 %v438
    %804 = vmatprep.subr.mxu0 0.0
    %805 = vmatpush1.msra.mxu0 %v439
    %806 = vmatprep.subr.mxu0 0.0
    %807 = vmatpush1.msra.mxu0 %v440
    %808 = vmatprep.subr.mxu0 0.0
    %809 = vmatpush1.msra.mxu0 %v441
    %810 = vmatprep.subr.mxu0 0.0
    %811 = vmatpush1.msra.mxu0 %v442
    %812 = vmatprep.mubr.f32.mxu0 %v235
    %813 = vmatmul.mubr.f32.gmra.mrb[0].mxu0 %v322
    %v814 = vpop.f32.mrb[0].mxu0
    %v815 = vadd.f32 %v590, %v814
    %v816 = vpop.f32.mrb[0].mxu0
    %817 = vmatprep.mubr.f32.mxu0 %v236
    %818 = vmatmul.mubr.f32.gmra.mrb[0].mxu0 %v323
    %v819 = vpop.f32.mrb[0].mxu0
    %v820 = vadd.f32 %v595, %v819
    %v821 = vpop.f32.mrb[0].mxu0
    %822 = vmatprep.mubr.f32.mxu0 %v237
    %823 = vmatmul.mubr.f32.gmra.mrb[0].mxu0 %v324
    %v824 = vpop.f32.mrb[0].mxu0
    %v825 = vadd.f32 %v600, %v824
    %v826 = vpop.f32.mrb[0].mxu0
    %827 = vmatprep.mubr.f32.mxu0 %v238
    %828 = vmatmul.mubr.f32.gmra.mrb[0].mxu0 %v325
    %v829 = vpop.f32.mrb[0].mxu0
    %v830 = vadd.f32 %v605, %v829
    %v831 = vpop.f32.mrb[0].mxu0
    %832 = vmatprep.mubr.f32.mxu0 %v239
    %833 = vmatmul.mubr.f32.gmra.mrb[0].mxu0 %v326
    %v834 = vpop.f32.mrb[0].mxu0
    %v835 = vadd.f32 %v610, %v834
    %v836 = vpop.f32.mrb[0].mxu0
    %837 = vmatprep.mubr.f32.mxu0 %v240
    %838 = vmatmul.mubr.f32.gmra.mrb[0].mxu0 %v327
    %v839 = vpop.f32.mrb[0].mxu0
    %v840 = vadd.f32 %v615, %v839
    %v841 = vpop.f32.mrb[0].mxu0
    %842 = vmatprep.mubr.f32.mxu0 %v241
    %843 = vmatmul.mubr.f32.gmra.mrb[0].mxu0 %v328
    %v844 = vpop.f32.mrb[0].mxu0
    %v845 = vadd.f32 %v620, %v844
    %v846 = vpop.f32.mrb[0].mxu0
    %847 = vmatprep.mubr.f32.mxu0 %v363
    %848 = vmatmul.mubr.f32.gmra.mrb[0].mxu0 %v329
    %v849 = vpop.f32.mrb[0].mxu0
    %v850 = vadd.f32 %v625, %v849
    %v851 = vpop.f32.mrb[0].mxu0
    %852 = vmatprep.mubr.f32.mxu0 %v242
    %853 = vmatmul.mubr.f32.gmra.mrb[0].mxu0 %v322
    %v854 = vpop.f32.mrb[0].mxu0
    %v855 = vadd.f32 %v630, %v854
    %v856 = vpop.f32.mrb[0].mxu0
    %857 = vmatprep.mubr.f32.mxu0 %v243
    %858 = vmatmul.mubr.f32.gmra.mrb[0].mxu0 %v330
    %v859 = vpop.f32.mrb[0].mxu0
    %v860 = vadd.f32 %v635, %v859
    %v861 = vpop.f32.mrb[0].mxu0
    %862 = vmatprep.mubr.f32.mxu0 %v244
    %863 = vmatmul.mubr.f32.gmra.mrb[0].mxu0 %v331
    %v864 = vpop.f32.mrb[0].mxu0
    %v865 = vadd.f32 %v640, %v864
    %v866 = vpop.f32.mrb[0].mxu0
    %867 = vmatprep.mubr.f32.mxu0 %v245
    %868 = vmatmul.mubr.f32.gmra.mrb[0].mxu0 %v332
    %v869 = vpop.f32.mrb[0].mxu0
    %v870 = vadd.f32 %v645, %v869
    %v871 = vpop.f32.mrb[0].mxu0
    %872 = vmatprep.mubr.f32.mxu0 %v246
    %873 = vmatmul.mubr.f32.gmra.mrb[0].mxu0 %v333
    %v874 = vpop.f32.mrb[0].mxu0
    %v875 = vadd.f32 %v650, %v874
    %v876 = vpop.f32.mrb[0].mxu0
    %877 = vmatprep.mubr.f32.mxu0 %v247
    %878 = vmatmul.mubr.f32.gmra.mrb[0].mxu0 %v334
    %v879 = vpop.f32.mrb[0].mxu0
    %v880 = vadd.f32 %v655, %v879
    %v881 = vpop.f32.mrb[0].mxu0
    %882 = vmatprep.mubr.f32.mxu0 %v248
    %883 = vmatmul.mubr.f32.gmra.mrb[0].mxu0 %v335
    %v884 = vpop.f32.mrb[0].mxu0
    %v885 = vadd.f32 %v660, %v884
    %v886 = vpop.f32.mrb[0].mxu0
    %887 = vmatprep.mubr.f32.mxu0 %v364
    %888 = vmatmul.mubr.f32.gmra.mrb[0].mxu0 %v336
    %v889 = vpop.f32.mrb[0].mxu0
    %v890 = vadd.f32 %v665, %v889
    %v891 = vpop.f32.mrb[0].mxu0
    %892 = vmatprep.mubr.f32.mxu0 %v249
    %893 = vmatmul.mubr.f32.gmra.mrb[0].mxu0 %v322
    %v894 = vpop.f32.mrb[0].mxu0
    %v895 = vadd.f32 %v670, %v894
    %v896 = vpop.f32.mrb[0].mxu0
    %897 = vmatprep.mubr.f32.mxu0 %v250
    %898 = vmatmul.mubr.f32.gmra.mrb[0].mxu0 %v337
    %v899 = vpop.f32.mrb[0].mxu0
    %v900 = vadd.f32 %v675, %v899
    %v901 = vpop.f32.mrb[0].mxu0
    %902 = vmatprep.mubr.f32.mxu0 %v251
    %903 = vmatmul.mubr.f32.gmra.mrb[0].mxu0 %v338
    %v904 = vpop.f32.mrb[0].mxu0
    %v905 = vadd.f32 %v680, %v904
    %v906 = vpop.f32.mrb[0].mxu0
    %907 = vmatprep.mubr.f32.mxu0 %v252
    %908 = vmatmul.mubr.f32.gmra.mrb[0].mxu0 %v339
    %v909 = vpop.f32.mrb[0].mxu0
    %v910 = vadd.f32 %v685, %v909
    %v911 = vpop.f32.mrb[0].mxu0
    %912 = vmatprep.mubr.f32.mxu0 %v253
    %913 = vmatmul.mubr.f32.gmra.mrb[0].mxu0 %v340
    %v914 = vpop.f32.mrb[0].mxu0
    %v915 = vadd.f32 %v690, %v914
    %v916 = vpop.f32.mrb[0].mxu0
    %917 = vmatprep.mubr.f32.mxu0 %v254
    %918 = vmatmul.mubr.f32.gmra.mrb[0].mxu0 %v341
    %v919 = vpop.f32.mrb[0].mxu0
    %v920 = vadd.f32 %v695, %v919
    %v921 = vpop.f32.mrb[0].mxu0
    %922 = vmatprep.mubr.f32.mxu0 %v255
    %923 = vmatmul.mubr.f32.gmra.mrb[0].mxu0 %v342
    %v924 = vpop.f32.mrb[0].mxu0
    %v925 = vadd.f32 %v700, %v924
    %v926 = vpop.f32.mrb[0].mxu0
    %927 = vmatprep.mubr.f32.mxu0 %v365
    %928 = vmatmul.mubr.f32.gmra.mrb[0].mxu0 %v343
    %v929 = vpop.f32.mrb[0].mxu0
    %v930 = vadd.f32 %v705, %v929
    %v931 = vpop.f32.mrb[0].mxu0
    %932 = vmatprep.mubr.f32.mxu0 %v256
    %933 = vmatmul.mubr.f32.gmra.mrb[0].mxu0 %v322
    %v934 = vpop.f32.mrb[0].mxu0
    %v935 = vadd.f32 %v710, %v934
    %v936 = vpop.f32.mrb[0].mxu0
    %937 = vmatprep.mubr.f32.mxu0 %v257
    %938 = vmatmul.mubr.f32.gmra.mrb[0].mxu0 %v344
    %v939 = vpop.f32.mrb[0].mxu0
    %v940 = vadd.f32 %v715, %v939
    %v941 = vpop.f32.mrb[0].mxu0
    %942 = vmatprep.mubr.f32.mxu0 %v258
    %943 = vmatmul.mubr.f32.gmra.mrb[0].mxu0 %v345
    %v944 = vpop.f32.mrb[0].mxu0
    %v945 = vadd.f32 %v720, %v944
    %v946 = vpop.f32.mrb[0].mxu0
    %947 = vmatprep.mubr.f32.mxu0 %v259
    %948 = vmatmul.mubr.f32.gmra.mrb[0].mxu0 %v346
    %v949 = vpop.f32.mrb[0].mxu0
    %v950 = vadd.f32 %v725, %v949
    %v951 = vpop.f32.mrb[0].mxu0
    %952 = vmatprep.mubr.f32.mxu0 %v260
    %953 = vmatmul.mubr.f32.gmra.mrb[0].mxu0 %v347
    %v954 = vpop.f32.mrb[0].mxu0
    %v955 = vadd.f32 %v730, %v954
    %v956 = vpop.f32.mrb[0].mxu0
    %957 = vmatprep.mubr.f32.mxu0 %v261
    %958 = vmatmul.mubr.f32.gmra.mrb[0].mxu0 %v348
    %v959 = vpop.f32.mrb[0].mxu0
    %v960 = vadd.f32 %v735, %v959
    %v961 = vpop.f32.mrb[0].mxu0
    %962 = vmatprep.mubr.f32.mxu0 %v262
    %963 = vmatmul.mubr.f32.gmra.mrb[0].mxu0 %v349
    %v964 = vpop.f32.mrb[0].mxu0
    %v965 = vadd.f32 %v740, %v964
    %v966 = vpop.f32.mrb[0].mxu0
    %967 = vmatprep.mubr.f32.mxu0 %v366
    %968 = vmatmul.mubr.f32.gmra.mrb[0].mxu0 %v350
    %v969 = vpop.f32.mrb[0].mxu0
    %v970 = vadd.f32 %v745, %v969
    %v971 = vpop.f32.mrb[0].mxu0
    %972 = vdwg.mxu0
    %973 = vmatprep.subr.mxu0 0.0
    %974 = vmatpush1.msra.mxu0 %v443
    %975 = vmatprep.subr.mxu0 0.0
    %976 = vmatpush1.msra.mxu0 %v444
    %977 = vmatprep.subr.mxu0 0.0
    %978 = vmatpush1.msra.mxu0 %v445
    %979 = vmatprep.subr.mxu0 0.0
    %980 = vmatpush1.msra.mxu0 %v446
    %981 = vmatprep.subr.mxu0 0.0
    %982 = vmatpush1.msra.mxu0 %v447
    %983 = vmatprep.subr.mxu0 0.0
    %984 = vmatpush1.msra.mxu0 %v448
    %985 = vmatprep.subr.mxu0 0.0
    %986 = vmatpush1.msra.mxu0 %v449
    %987 = vmatprep.subr.mxu0 0.0
    %988 = vmatpush1.msra.mxu0 %v450
    %989 = vmatprep.subr.mxu0 0.0
    %990 = vmatpush1.msra.mxu0 %v451
    %991 = vmatprep.subr.mxu0 0.0
    %992 = vmatpush1.msra.mxu0 %v452
    %993 = vmatprep.subr.mxu0 0.0
    %994 = vmatpush1.msra.mxu0 %v453
    %995 = vmatprep.subr.mxu0 0.0
    %996 = vmatpush1.msra.mxu0 %v454
    %997 = vmatprep.subr.mxu0 0.0
    %998 = vmatpush1.msra.mxu0 %v455
    %999 = vmatprep.subr.mxu0 0.0
    %1000 = vmatpush1.msra.mxu0 %v456
    %1001 = vmatprep.subr.mxu0 0.0
    %1002 = vmatpush1.msra.mxu0 %v457
    %1003 = vmatprep.subr.mxu0 0.0
    %1004 = vmatpush1.msra.mxu0 %v458
    %1005 = vmatprep.subr.mxu0 0.0
    %1006 = vmatpush1.msra.mxu0 %v459
    %1007 = vmatprep.subr.mxu0 0.0
    %1008 = vmatpush1.msra.mxu0 %v460
    %1009 = vmatprep.subr.mxu0 0.0
    %1010 = vmatpush1.msra.mxu0 %v461
    %1011 = vmatprep.subr.mxu0 0.0
    %1012 = vmatpush1.msra.mxu0 %v462
    %1013 = vmatprep.subr.mxu0 0.0
    %1014 = vmatpush1.msra.mxu0 %v463
    %1015 = vmatprep.subr.mxu0 0.0
    %1016 = vmatpush1.msra.mxu0 %v464
    %1017 = vmatprep.subr.mxu0 0.0
    %1018 = vmatpush1.msra.mxu0 %v465
    %1019 = vmatprep.subr.mxu0 0.0
    %1020 = vmatpush1.msra.mxu0 %v466
    %1021 = vmatprep.subr.mxu0 0.0
    %1022 = vmatpush1.msra.mxu0 %v467
    %1023 = vmatprep.subr.mxu0 0.0
    %1024 = vmatpush1.msra.mxu0 %v468
    %1025 = vmatprep.subr.mxu0 0.0
    %1026 = vmatpush1.msra.mxu0 %v469
    %1027 = vmatprep.subr.mxu0 0.0
    %1028 = vmatpush1.msra.mxu0 %v470
    %1029 = vmatprep.subr.mxu0 0.0
    %1030 = vmatpush1.msra.mxu0 %v471
    %1031 = vmatprep.subr.mxu0 0.0
    %1032 = vmatpush1.msra.mxu0 %v472
    %1033 = vmatprep.subr.mxu0 0.0
    %1034 = vmatpush1.msra.mxu0 %v473
    %1035 = vmatprep.subr.mxu0 0.0
    %1036 = vmatpush1.msra.mxu0 %v474
    %1037 = vmatprep.mubr.f32.mxu0 %v323
    %1038 = vmatmul.mubr.f32.gmra.mrb[0].mxu0 %v114
    %v1039 = vpop.f32.mrb[0].mxu0
    %v1040 = vadd.f32 %v815, %v1039
    %v1041 = vpop.f32.mrb[0].mxu0
    %1042 = vmatprep.mubr.f32.mxu0 %v324
    %1043 = vmatmul.mubr.f32.gmra.mrb[0].mxu0 %v115
    %v1044 = vpop.f32.mrb[0].mxu0
    %v1045 = vadd.f32 %v820, %v1044
    %v1046 = vpop.f32.mrb[0].mxu0
    %1047 = vmatprep.mubr.f32.mxu0 %v325
    %1048 = vmatmul.mubr.f32.gmra.mrb[0].mxu0 %v116
    %v1049 = vpop.f32.mrb[0].mxu0
    %v1050 = vadd.f32 %v825, %v1049
    %v1051 = vpop.f32.mrb[0].mxu0
    %1052 = vmatprep.mubr.f32.mxu0 %v326
    %1053 = vmatmul.mubr.f32.gmra.mrb[0].mxu0 %v117
    %v1054 = vpop.f32.mrb[0].mxu0
    %v1055 = vadd.f32 %v830, %v1054
    %v1056 = vpop.f32.mrb[0].mxu0
    %1057 = vmatprep.mubr.f32.mxu0 %v327
    %1058 = vmatmul.mubr.f32.gmra.mrb[0].mxu0 %v118
    %v1059 = vpop.f32.mrb[0].mxu0
    %v1060 = vadd.f32 %v835, %v1059
    %v1061 = vpop.f32.mrb[0].mxu0
    %1062 = vmatprep.mubr.f32.mxu0 %v328
    %1063 = vmatmul.mubr.f32.gmra.mrb[0].mxu0 %v119
    %v1064 = vpop.f32.mrb[0].mxu0
    %v1065 = vadd.f32 %v840, %v1064
    %v1066 = vpop.f32.mrb[0].mxu0
    %1067 = vmatprep.mubr.f32.mxu0 %v329
    %1068 = vmatmul.mubr.f32.gmra.mrb[0].mxu0 %v120
    %v1069 = vpop.f32.mrb[0].mxu0
    %v1070 = vadd.f32 %v845, %v1069
    %v1071 = vpop.f32.mrb[0].mxu0
    %1072 = vmatprep.mubr.f32.mxu0 %v375
    %1073 = vmatmul.mubr.f32.gmra.mrb[0].mxu0 %v121
    %v1074 = vpop.f32.mrb[0].mxu0
    %v1075 = vadd.f32 %v850, %v1074
    %v1076 = vpop.f32.mrb[0].mxu0
    %1077 = vmatprep.mubr.f32.mxu0 %v330
    %1078 = vmatmul.mubr.f32.gmra.mrb[0].mxu0 %v122
    %v1079 = vpop.f32.mrb[0].mxu0
    %v1080 = vadd.f32 %v855, %v1079
    %v1081 = vpop.f32.mrb[0].mxu0
    %1082 = vmatprep.mubr.f32.mxu0 %v331
    %1083 = vmatmul.mubr.f32.gmra.mrb[0].mxu0 %v123
    %v1084 = vpop.f32.mrb[0].mxu0
    %v1085 = vadd.f32 %v860, %v1084
    %v1086 = vpop.f32.mrb[0].mxu0
    %1087 = vmatprep.mubr.f32.mxu0 %v332
    %1088 = vmatmul.mubr.f32.gmra.mrb[0].mxu0 %v124
    %v1089 = vpop.f32.mrb[0].mxu0
    %v1090 = vadd.f32 %v865, %v1089
    %v1091 = vpop.f32.mrb[0].mxu0
    %1092 = vmatprep.mubr.f32.mxu0 %v333
    %1093 = vmatmul.mubr.f32.gmra.mrb[0].mxu0 %v125
    %v1094 = vpop.f32.mrb[0].mxu0
    %v1095 = vadd.f32 %v870, %v1094
    %v1096 = vpop.f32.mrb[0].mxu0
    %1097 = vmatprep.mubr.f32.mxu0 %v334
    %1098 = vmatmul.mubr.f32.gmra.mrb[0].mxu0 %v126
    %v1099 = vpop.f32.mrb[0].mxu0
    %v1100 = vadd.f32 %v875, %v1099
    %v1101 = vpop.f32.mrb[0].mxu0
    %1102 = vmatprep.mubr.f32.mxu0 %v335
    %1103 = vmatmul.mubr.f32.gmra.mrb[0].mxu0 %v127
    %v1104 = vpop.f32.mrb[0].mxu0
    %v1105 = vadd.f32 %v880, %v1104
    %v1106 = vpop.f32.mrb[0].mxu0
    %1107 = vmatprep.mubr.f32.mxu0 %v336
    %1108 = vmatmul.mubr.f32.gmra.mrb[0].mxu0 %v128
    %v1109 = vpop.f32.mrb[0].mxu0
    %v1110 = vadd.f32 %v885, %v1109
    %v1111 = vpop.f32.mrb[0].mxu0
    %1112 = vmatprep.mubr.f32.mxu0 %v376
    %1113 = vmatmul.mubr.f32.gmra.mrb[0].mxu0 %v129
    %v1114 = vpop.f32.mrb[0].mxu0
    %v1115 = vadd.f32 %v890, %v1114
    %v1116 = vpop.f32.mrb[0].mxu0
    %1117 = vmatprep.mubr.f32.mxu0 %v337
    %1118 = vmatmul.mubr.f32.gmra.mrb[0].mxu0 %v130
    %v1119 = vpop.f32.mrb[0].mxu0
    %v1120 = vadd.f32 %v895, %v1119
    %v1121 = vpop.f32.mrb[0].mxu0
    %1122 = vmatprep.mubr.f32.mxu0 %v338
    %1123 = vmatmul.mubr.f32.gmra.mrb[0].mxu0 %v131
    %v1124 = vpop.f32.mrb[0].mxu0
    %v1125 = vadd.f32 %v900, %v1124
    %v1126 = vpop.f32.mrb[0].mxu0
    %1127 = vmatprep.mubr.f32.mxu0 %v339
    %1128 = vmatmul.mubr.f32.gmra.mrb[0].mxu0 %v132
    %v1129 = vpop.f32.mrb[0].mxu0
    %v1130 = vadd.f32 %v905, %v1129
    %v1131 = vpop.f32.mrb[0].mxu0
    %1132 = vmatprep.mubr.f32.mxu0 %v340
    %1133 = vmatmul.mubr.f32.gmra.mrb[0].mxu0 %v133
    %v1134 = vpop.f32.mrb[0].mxu0
    %v1135 = vadd.f32 %v910, %v1134
    %v1136 = vpop.f32.mrb[0].mxu0
    %1137 = vmatprep.mubr.f32.mxu0 %v341
    %1138 = vmatmul.mubr.f32.gmra.mrb[0].mxu0 %v134
    %v1139 = vpop.f32.mrb[0].mxu0
    %v1140 = vadd.f32 %v915, %v1139
    %v1141 = vpop.f32.mrb[0].mxu0
    %1142 = vmatprep.mubr.f32.mxu0 %v342
    %1143 = vmatmul.mubr.f32.gmra.mrb[0].mxu0 %v135
    %v1144 = vpop.f32.mrb[0].mxu0
    %v1145 = vadd.f32 %v920, %v1144
    %v1146 = vpop.f32.mrb[0].mxu0
    %1147 = vmatprep.mubr.f32.mxu0 %v343
    %1148 = vmatmul.mubr.f32.gmra.mrb[0].mxu0 %v136
    %v1149 = vpop.f32.mrb[0].mxu0
    %v1150 = vadd.f32 %v925, %v1149
    %v1151 = vpop.f32.mrb[0].mxu0
    %1152 = vmatprep.mubr.f32.mxu0 %v377
    %1153 = vmatmul.mubr.f32.gmra.mrb[0].mxu0 %v137
    %v1154 = vpop.f32.mrb[0].mxu0
    %v1155 = vadd.f32 %v930, %v1154
    %v1156 = vpop.f32.mrb[0].mxu0
    %1157 = vmatprep.mubr.f32.mxu0 %v344
    %1158 = vmatmul.mubr.f32.gmra.mrb[0].mxu0 %v138
    %v1159 = vpop.f32.mrb[0].mxu0
    %v1160 = vadd.f32 %v935, %v1159
    %v1161 = vpop.f32.mrb[0].mxu0
    %1162 = vmatprep.mubr.f32.mxu0 %v345
    %1163 = vmatmul.mubr.f32.gmra.mrb[0].mxu0 %v139
    %v1164 = vpop.f32.mrb[0].mxu0
    %v1165 = vadd.f32 %v940, %v1164
    %v1166 = vpop.f32.mrb[0].mxu0
    %1167 = vmatprep.mubr.f32.mxu0 %v346
    %1168 = vmatmul.mubr.f32.gmra.mrb[0].mxu0 %v140
    %v1169 = vpop.f32.mrb[0].mxu0
    %v1170 = vadd.f32 %v945, %v1169
    %v1171 = vpop.f32.mrb[0].mxu0
    %1172 = vmatprep.mubr.f32.mxu0 %v347
    %1173 = vmatmul.mubr.f32.gmra.mrb[0].mxu0 %v141
    %v1174 = vpop.f32.mrb[0].mxu0
    %v1175 = vadd.f32 %v950, %v1174
    %v1176 = vpop.f32.mrb[0].mxu0
    %1177 = vmatprep.mubr.f32.mxu0 %v348
    %1178 = vmatmul.mubr.f32.gmra.mrb[0].mxu0 %v142
    %v1179 = vpop.f32.mrb[0].mxu0
    %v1180 = vadd.f32 %v955, %v1179
    %v1181 = vpop.f32.mrb[0].mxu0
    %1182 = vmatprep.mubr.f32.mxu0 %v349
    %1183 = vmatmul.mubr.f32.gmra.mrb[0].mxu0 %v143
    %v1184 = vpop.f32.mrb[0].mxu0
    %v1185 = vadd.f32 %v960, %v1184
    %v1186 = vpop.f32.mrb[0].mxu0
    %1187 = vmatprep.mubr.f32.mxu0 %v350
    %1188 = vmatmul.mubr.f32.gmra.mrb[0].mxu0 %v144
    %v1189 = vpop.f32.mrb[0].mxu0
    %v1190 = vadd.f32 %v965, %v1189
    %v1191 = vpop.f32.mrb[0].mxu0
    %1192 = vmatprep.mubr.f32.mxu0 %v378
    %1193 = vmatmul.mubr.f32.gmra.mrb[0].mxu0 %v145
    %v1194 = vpop.f32.mrb[0].mxu0
    %v1195 = vadd.f32 %v970, %v1194
    %v1196 = vpop.f32.mrb[0].mxu0
    %1197 = vdwg.mxu0
    %1198 = vmatprep.subr.mxu0 0.0
    %1199 = vmatpush1.msra.mxu0 %v475
    %1200 = vmatprep.subr.mxu0 0.0
    %1201 = vmatpush1.msra.mxu0 %v476
    %1202 = vmatprep.subr.mxu0 0.0
    %1203 = vmatpush1.msra.mxu0 %v477
    %1204 = vmatprep.subr.mxu0 0.0
    %1205 = vmatpush1.msra.mxu0 %v478
    %1206 = vmatprep.subr.mxu0 0.0
    %1207 = vmatpush1.msra.mxu0 %v479
    %1208 = vmatprep.subr.mxu0 0.0
    %1209 = vmatpush1.msra.mxu0 %v480
    %1210 = vmatprep.subr.mxu0 0.0
    %1211 = vmatpush1.msra.mxu0 %v481
    %1212 = vmatprep.subr.mxu0 0.0
    %1213 = vmatpush1.msra.mxu0 %v482
    %1214 = vmatprep.subr.mxu0 0.0
    %1215 = vmatpush1.msra.mxu0 %v483
    %1216 = vmatprep.subr.mxu0 0.0
    %1217 = vmatpush1.msra.mxu0 %v484
    %1218 = vmatprep.subr.mxu0 0.0
    %1219 = vmatpush1.msra.mxu0 %v485
    %1220 = vmatprep.subr.mxu0 0.0
    %1221 = vmatpush1.msra.mxu0 %v486
    %1222 = vmatprep.subr.mxu0 0.0
    %1223 = vmatpush1.msra.mxu0 %v487
    %1224 = vmatprep.subr.mxu0 0.0
    %1225 = vmatpush1.msra.mxu0 %v488
    %1226 = vmatprep.subr.mxu0 0.0
    %1227 = vmatpush1.msra.mxu0 %v489
    %1228 = vmatprep.subr.mxu0 0.0
    %1229 = vmatpush1.msra.mxu0 %v490
    %1230 = vmatprep.subr.mxu0 0.0
    %1231 = vmatpush1.msra.mxu0 %v491
    %1232 = vmatprep.subr.mxu0 0.0
    %1233 = vmatpush1.msra.mxu0 %v492
    %1234 = vmatprep.subr.mxu0 0.0
    %1235 = vmatpush1.msra.mxu0 %v493
    %1236 = vmatprep.subr.mxu0 0.0
    %1237 = vmatpush1.msra.mxu0 %v494
    %1238 = vmatprep.subr.mxu0 0.0
    %1239 = vmatpush1.msra.mxu0 %v495
    %1240 = vmatprep.subr.mxu0 0.0
    %1241 = vmatpush1.msra.mxu0 %v496
    %1242 = vmatprep.subr.mxu0 0.0
    %1243 = vmatpush1.msra.mxu0 %v497
    %1244 = vmatprep.subr.mxu0 0.0
    %1245 = vmatpush1.msra.mxu0 %v498
    %1246 = vmatprep.subr.mxu0 0.0
    %1247 = vmatpush1.msra.mxu0 %v499
    %1248 = vmatprep.subr.mxu0 0.0
    %1249 = vmatpush1.msra.mxu0 %v500
    %1250 = vmatprep.subr.mxu0 0.0
    %1251 = vmatpush1.msra.mxu0 %v501
    %1252 = vmatprep.subr.mxu0 0.0
    %1253 = vmatpush1.msra.mxu0 %v502
    %1254 = vmatprep.subr.mxu0 0.0
    %1255 = vmatpush1.msra.mxu0 %v503
    %1256 = vmatprep.subr.mxu0 0.0
    %1257 = vmatpush1.msra.mxu0 %v504
    %1258 = vmatprep.subr.mxu0 0.0
    %1259 = vmatpush1.msra.mxu0 %v505
    %1260 = vmatprep.subr.mxu0 0.0
    %1261 = vmatpush1.msra.mxu0 %v506
    %1262 = vmatprep.mubr.f32.mxu0 %v115
    %1263 = vmatmul.mubr.f32.gmra.mrb[0].mxu0 %v236
    %v1264 = vpop.f32.mrb[0].mxu0
    %v1265 = vadd.f32 %v1040, %v1264
    %v1266 = vpop.f32.mrb[0].mxu0
    %1267 = vmatprep.mubr.f32.mxu0 %v116
    %1268 = vmatmul.mubr.f32.gmra.mrb[0].mxu0 %v237
    %v1269 = vpop.f32.mrb[0].mxu0
    %v1270 = vadd.f32 %v1045, %v1269
    %v1271 = vpop.f32.mrb[0].mxu0
    %1272 = vmatprep.mubr.f32.mxu0 %v117
    %1273 = vmatmul.mubr.f32.gmra.mrb[0].mxu0 %v238
    %v1274 = vpop.f32.mrb[0].mxu0
    %v1275 = vadd.f32 %v1050, %v1274
    %v1276 = vpop.f32.mrb[0].mxu0
    %1277 = vmatprep.mubr.f32.mxu0 %v118
    %1278 = vmatmul.mubr.f32.gmra.mrb[0].mxu0 %v239
    %v1279 = vpop.f32.mrb[0].mxu0
    %v1280 = vadd.f32 %v1055, %v1279
    %v1281 = vpop.f32.mrb[0].mxu0
    %1282 = vmatprep.mubr.f32.mxu0 %v119
    %1283 = vmatmul.mubr.f32.gmra.mrb[0].mxu0 %v240
    %v1284 = vpop.f32.mrb[0].mxu0
    %v1285 = vadd.f32 %v1060, %v1284
    %v1286 = vpop.f32.mrb[0].mxu0
    %1287 = vmatprep.mubr.f32.mxu0 %v120
    %1288 = vmatmul.mubr.f32.gmra.mrb[0].mxu0 %v241
    %v1289 = vpop.f32.mrb[0].mxu0
    %v1290 = vadd.f32 %v1065, %v1289
    %v1291 = vpop.f32.mrb[0].mxu0
    %1292 = vmatprep.mubr.f32.mxu0 %v121
    %1293 = vmatmul.mubr.f32.gmra.mrb[0].mxu0 %v363
    %v1294 = vpop.f32.mrb[0].mxu0
    %v1295 = vadd.f32 %v1070, %v1294
    %v1296 = vpop.f32.mrb[0].mxu0
    %1297 = vmatprep.mubr.f32.mxu0 0.0
    %1298 = vmatmul.mubr.f32.gmra.mrb[0].mxu0 %v234
    %v1299 = vpop.f32.mrb[0].mxu0
    %v1300 = vadd.f32 %v1075, %v1299
    %v1301 = vpop.f32.mrb[0].mxu0
    %1302 = vmatprep.mubr.f32.mxu0 %v123
    %1303 = vmatmul.mubr.f32.gmra.mrb[0].mxu0 %v243
    %v1304 = vpop.f32.mrb[0].mxu0
    %v1305 = vadd.f32 %v1080, %v1304
    %v1306 = vpop.f32.mrb[0].mxu0
    %1307 = vmatprep.mubr.f32.mxu0 %v124
    %1308 = vmatmul.mubr.f32.gmra.mrb[0].mxu0 %v244
    %v1309 = vpop.f32.mrb[0].mxu0
    %v1310 = vadd.f32 %v1085, %v1309
    %v1311 = vpop.f32.mrb[0].mxu0
    %1312 = vmatprep.mubr.f32.mxu0 %v125
    %1313 = vmatmul.mubr.f32.gmra.mrb[0].mxu0 %v245
    %v1314 = vpop.f32.mrb[0].mxu0
    %v1315 = vadd.f32 %v1090, %v1314
    %v1316 = vpop.f32.mrb[0].mxu0
    %1317 = vmatprep.mubr.f32.mxu0 %v126
    %1318 = vmatmul.mubr.f32.gmra.mrb[0].mxu0 %v246
    %v1319 = vpop.f32.mrb[0].mxu0
    %v1320 = vadd.f32 %v1095, %v1319
    %v1321 = vpop.f32.mrb[0].mxu0
    %1322 = vmatprep.mubr.f32.mxu0 %v127
    %1323 = vmatmul.mubr.f32.gmra.mrb[0].mxu0 %v247
    %v1324 = vpop.f32.mrb[0].mxu0
    %v1325 = vadd.f32 %v1100, %v1324
    %v1326 = vpop.f32.mrb[0].mxu0
    %1327 = vmatprep.mubr.f32.mxu0 %v128
    %1328 = vmatmul.mubr.f32.gmra.mrb[0].mxu0 %v248
    %v1329 = vpop.f32.mrb[0].mxu0
    %v1330 = vadd.f32 %v1105, %v1329
    %v1331 = vpop.f32.mrb[0].mxu0
    %1332 = vmatprep.mubr.f32.mxu0 %v129
    %1333 = vmatmul.mubr.f32.gmra.mrb[0].mxu0 %v364
    %v1334 = vpop.f32.mrb[0].mxu0
    %v1335 = vadd.f32 %v1110, %v1334
    %v1336 = vpop.f32.mrb[0].mxu0
    %1337 = vmatprep.mubr.f32.mxu0 0.0
    %1338 = vmatmul.mubr.f32.gmra.mrb[0].mxu0 %v234
    %v1339 = vpop.f32.mrb[0].mxu0
    %v1340 = vadd.f32 %v1115, %v1339
    %v1341 = vpop.f32.mrb[0].mxu0
    %1342 = vmatprep.mubr.f32.mxu0 %v131
    %1343 = vmatmul.mubr.f32.gmra.mrb[0].mxu0 %v250
    %v1344 = vpop.f32.mrb[0].mxu0
    %v1345 = vadd.f32 %v1120, %v1344
    %v1346 = vpop.f32.mrb[0].mxu0
    %1347 = vmatprep.mubr.f32.mxu0 %v132
    %1348 = vmatmul.mubr.f32.gmra.mrb[0].mxu0 %v251
    %v1349 = vpop.f32.mrb[0].mxu0
    %v1350 = vadd.f32 %v1125, %v1349
    %v1351 = vpop.f32.mrb[0].mxu0
    %1352 = vmatprep.mubr.f32.mxu0 %v133
    %1353 = vmatmul.mubr.f32.gmra.mrb[0].mxu0 %v252
    %v1354 = vpop.f32.mrb[0].mxu0
    %v1355 = vadd.f32 %v1130, %v1354
    %v1356 = vpop.f32.mrb[0].mxu0
    %1357 = vmatprep.mubr.f32.mxu0 %v134
    %1358 = vmatmul.mubr.f32.gmra.mrb[0].mxu0 %v253
    %v1359 = vpop.f32.mrb[0].mxu0
    %v1360 = vadd.f32 %v1135, %v1359
    %v1361 = vpop.f32.mrb[0].mxu0
    %1362 = vmatprep.mubr.f32.mxu0 %v135
    %1363 = vmatmul.mubr.f32.gmra.mrb[0].mxu0 %v254
    %v1364 = vpop.f32.mrb[0].mxu0
    %v1365 = vadd.f32 %v1140, %v1364
    %v1366 = vpop.f32.mrb[0].mxu0
    %1367 = vmatprep.mubr.f32.mxu0 %v136
    %1368 = vmatmul.mubr.f32.gmra.mrb[0].mxu0 %v255
    %v1369 = vpop.f32.mrb[0].mxu0
    %v1370 = vadd.f32 %v1145, %v1369
    %v1371 = vpop.f32.mrb[0].mxu0
    %1372 = vmatprep.mubr.f32.mxu0 %v137
    %1373 = vmatmul.mubr.f32.gmra.mrb[0].mxu0 %v365
    %v1374 = vpop.f32.mrb[0].mxu0
    %v1375 = vadd.f32 %v1150, %v1374
    %v1376 = vpop.f32.mrb[0].mxu0
    %1377 = vmatprep.mubr.f32.mxu0 0.0
    %1378 = vmatmul.mubr.f32.gmra.mrb[0].mxu0 %v234
    %v1379 = vpop.f32.mrb[0].mxu0
    %v1380 = vadd.f32 %v1155, %v1379
    %v1381 = vpop.f32.mrb[0].mxu0
    %1382 = vmatprep.mubr.f32.mxu0 %v139
    %1383 = vmatmul.mubr.f32.gmra.mrb[0].mxu0 %v257
    %v1384 = vpop.f32.mrb[0].mxu0
    %v1385 = vadd.f32 %v1160, %v1384
    %v1386 = vpop.f32.mrb[0].mxu0
    %1387 = vmatprep.mubr.f32.mxu0 %v140
    %1388 = vmatmul.mubr.f32.gmra.mrb[0].mxu0 %v258
    %v1389 = vpop.f32.mrb[0].mxu0
    %v1390 = vadd.f32 %v1165, %v1389
    %v1391 = vpop.f32.mrb[0].mxu0
    %1392 = vmatprep.mubr.f32.mxu0 %v141
    %1393 = vmatmul.mubr.f32.gmra.mrb[0].mxu0 %v259
    %v1394 = vpop.f32.mrb[0].mxu0
    %v1395 = vadd.f32 %v1170, %v1394
    %v1396 = vpop.f32.mrb[0].mxu0
    %1397 = vmatprep.mubr.f32.mxu0 %v142
    %1398 = vmatmul.mubr.f32.gmra.mrb[0].mxu0 %v260
    %v1399 = vpop.f32.mrb[0].mxu0
    %v1400 = vadd.f32 %v1175, %v1399
    %v1401 = vpop.f32.mrb[0].mxu0
    %1402 = vmatprep.mubr.f32.mxu0 %v143
    %1403 = vmatmul.mubr.f32.gmra.mrb[0].mxu0 %v261
    %v1404 = vpop.f32.mrb[0].mxu0
    %v1405 = vadd.f32 %v1180, %v1404
    %v1406 = vpop.f32.mrb[0].mxu0
    %1407 = vmatprep.mubr.f32.mxu0 %v144
    %1408 = vmatmul.mubr.f32.gmra.mrb[0].mxu0 %v262
    %v1409 = vpop.f32.mrb[0].mxu0
    %v1410 = vadd.f32 %v1185, %v1409
    %v1411 = vpop.f32.mrb[0].mxu0
    %1412 = vmatprep.mubr.f32.mxu0 %v145
    %1413 = vmatmul.mubr.f32.gmra.mrb[0].mxu0 %v366
    %v1414 = vpop.f32.mrb[0].mxu0
    %v1415 = vadd.f32 %v1190, %v1414
    %v1416 = vpop.f32.mrb[0].mxu0
    %1417 = vmatprep.mubr.f32.mxu0 0.0
    %1418 = vmatmul.mubr.f32.gmra.mrb[0].mxu0 %v234
    %v1419 = vpop.f32.mrb[0].mxu0
    %v1420 = vadd.f32 %v1195, %v1419
    %v1421 = vpop.f32.mrb[0].mxu0
    %1422 = vdwg.mxu0
    %1423 = vmatprep.subr.mxu0 0.0
    %1424 = vmatpush1.msra.mxu0 %v507
    %1425 = vmatprep.subr.mxu0 0.0
    %1426 = vmatpush1.msra.mxu0 %v508
    %1427 = vmatprep.subr.mxu0 0.0
    %1428 = vmatpush1.msra.mxu0 %v509
    %1429 = vmatprep.subr.mxu0 0.0
    %1430 = vmatpush1.msra.mxu0 %v510
    %1431 = vmatprep.subr.mxu0 0.0
    %1432 = vmatpush1.msra.mxu0 %v511
    %1433 = vmatprep.subr.mxu0 0.0
    %1434 = vmatpush1.msra.mxu0 %v512
    %1435 = vmatprep.subr.mxu0 0.0
    %1436 = vmatpush1.msra.mxu0 %v513
    %1437 = vmatprep.subr.mxu0 0.0
    %1438 = vmatpush1.msra.mxu0 %v514
    %1439 = vmatprep.subr.mxu0 0.0
    %1440 = vmatpush1.msra.mxu0 %v515
    %1441 = vmatprep.subr.mxu0 0.0
    %1442 = vmatpush1.msra.mxu0 %v516
    %1443 = vmatprep.subr.mxu0 0.0
    %1444 = vmatpush1.msra.mxu0 %v517
    %1445 = vmatprep.subr.mxu0 0.0
    %1446 = vmatpush1.msra.mxu0 %v518
    %1447 = vmatprep.subr.mxu0 0.0
    %1448 = vmatpush1.msra.mxu0 %v519
    %1449 = vmatprep.subr.mxu0 0.0
    %1450 = vmatpush1.msra.mxu0 %v520
    %1451 = vmatprep.subr.mxu0 0.0
    %1452 = vmatpush1.msra.mxu0 %v521
    %1453 = vmatprep.subr.mxu0 0.0
    %1454 = vmatpush1.msra.mxu0 %v522
    %1455 = vmatprep.subr.mxu0 0.0
    %1456 = vmatpush1.msra.mxu0 0.0
    %1457 = vmatprep.subr.mxu0 0.0
    %1458 = vmatpush1.msra.mxu0 0.0
    %1459 = vmatprep.subr.mxu0 0.0
    %1460 = vmatpush1.msra.mxu0 0.0
    %1461 = vmatprep.subr.mxu0 0.0
    %1462 = vmatpush1.msra.mxu0 0.0
    %1463 = vmatprep.subr.mxu0 0.0
    %1464 = vmatpush1.msra.mxu0 0.0
    %1465 = vmatprep.subr.mxu0 0.0
    %1466 = vmatpush1.msra.mxu0 0.0
    %1467 = vmatprep.subr.mxu0 0.0
    %1468 = vmatpush1.msra.mxu0 0.0
    %1469 = vmatprep.subr.mxu0 0.0
    %1470 = vmatpush1.msra.mxu0 0.0
    %1471 = vmatprep.subr.mxu0 0.0
    %1472 = vmatpush1.msra.mxu0 0.0
    %1473 = vmatprep.subr.mxu0 0.0
    %1474 = vmatpush1.msra.mxu0 0.0
    %1475 = vmatprep.subr.mxu0 0.0
    %1476 = vmatpush1.msra.mxu0 0.0
    %1477 = vmatprep.subr.mxu0 0.0
    %1478 = vmatpush1.msra.mxu0 0.0
    %1479 = vmatprep.subr.mxu0 0.0
    %1480 = vmatpush1.msra.mxu0 0.0
    %1481 = vmatprep.subr.mxu0 0.0
    %1482 = vmatpush1.msra.mxu0 0.0
    %1483 = vmatprep.subr.mxu0 0.0
    %1484 = vmatpush1.msra.mxu0 0.0
    %1485 = vmatprep.subr.mxu0 0.0
    %1486 = vmatpush1.msra.mxu0 0.0
    %1487 = vmatprep.mubr.f32.mxu0 0.0
    %1488 = vmatmul.mubr.f32.gmra.mrb[0].mxu0 %v324
    %v1489 = vpop.f32.mrb[0].mxu0
    %v1490 = vadd.f32 %v1265, %v1489
    %v1491 = vpop.f32.mrb[0].mxu0
    %1492 = vmatprep.mubr.f32.mxu0 0.0
    %1493 = vmatmul.mubr.f32.gmra.mrb[0].mxu0 %v325
    %v1494 = vpop.f32.mrb[0].mxu0
    %v1495 = vadd.f32 %v1270, %v1494
    %v1496 = vpop.f32.mrb[0].mxu0
    %1497 = vmatprep.mubr.f32.mxu0 0.0
    %1498 = vmatmul.mubr.f32.gmra.mrb[0].mxu0 %v326
    %v1499 = vpop.f32.mrb[0].mxu0
    %v1500 = vadd.f32 %v1275, %v1499
    %v1501 = vpop.f32.mrb[0].mxu0
    %1502 = vmatprep.mubr.f32.mxu0 0.0
    %1503 = vmatmul.mubr.f32.gmra.mrb[0].mxu0 %v327
    %v1504 = vpop.f32.mrb[0].mxu0
    %v1505 = vadd.f32 %v1280, %v1504
    %v1506 = vpop.f32.mrb[0].mxu0
    %1507 = vmatprep.mubr.f32.mxu0 0.0
    %1508 = vmatmul.mubr.f32.gmra.mrb[0].mxu0 %v328
    %v1509 = vpop.f32.mrb[0].mxu0
    %v1510 = vadd.f32 %v1285, %v1509
    %v1511 = vpop.f32.mrb[0].mxu0
    %1512 = vmatprep.mubr.f32.mxu0 0.0
    %1513 = vmatmul.mubr.f32.gmra.mrb[0].mxu0 %v329
    %v1514 = vpop.f32.mrb[0].mxu0
    %v1515 = vadd.f32 %v1290, %v1514
    %v1516 = vpop.f32.mrb[0].mxu0
    %1517 = vmatprep.mubr.f32.mxu0 0.0
    %1518 = vmatmul.mubr.f32.gmra.mrb[0].mxu0 %v375
    %v1519 = vpop.f32.mrb[0].mxu0
    %v1520 = vadd.f32 %v1295, %v1519
    %v1521 = vpop.f32.mrb[0].mxu0
    %1522 = vmatprep.mubr.f32.mxu0 0.0
    %1523 = vmatmul.mubr.f32.gmra.mrb[0].mxu0 %v322
    %v1524 = vpop.f32.mrb[0].mxu0
    %v1525 = vadd.f32 %v1300, %v1524
    %v1526 = vpop.f32.mrb[0].mxu0
    %1527 = vmatprep.mubr.f32.mxu0 0.0
    %1528 = vmatmul.mubr.f32.gmra.mrb[0].mxu0 %v331
    %v1529 = vpop.f32.mrb[0].mxu0
    %v1530 = vadd.f32 %v1305, %v1529
    %v1531 = vpop.f32.mrb[0].mxu0
    %1532 = vmatprep.mubr.f32.mxu0 0.0
    %1533 = vmatmul.mubr.f32.gmra.mrb[0].mxu0 %v332
    %v1534 = vpop.f32.mrb[0].mxu0
    %v1535 = vadd.f32 %v1310, %v1534
    %v1536 = vpop.f32.mrb[0].mxu0
    %1537 = vmatprep.mubr.f32.mxu0 0.0
    %1538 = vmatmul.mubr.f32.gmra.mrb[0].mxu0 %v333
    %v1539 = vpop.f32.mrb[0].mxu0
    %v1540 = vadd.f32 %v1315, %v1539
    %v1541 = vpop.f32.mrb[0].mxu0
    %1542 = vmatprep.mubr.f32.mxu0 0.0
    %1543 = vmatmul.mubr.f32.gmra.mrb[0].mxu0 %v334
    %v1544 = vpop.f32.mrb[0].mxu0
    %v1545 = vadd.f32 %v1320, %v1544
    %v1546 = vpop.f32.mrb[0].mxu0
    %1547 = vmatprep.mubr.f32.mxu0 0.0
    %1548 = vmatmul.mubr.f32.gmra.mrb[0].mxu0 %v335
    %v1549 = vpop.f32.mrb[0].mxu0
    %v1550 = vadd.f32 %v1325, %v1549
    %v1551 = vpop.f32.mrb[0].mxu0
    %1552 = vmatprep.mubr.f32.mxu0 0.0
    %1553 = vmatmul.mubr.f32.gmra.mrb[0].mxu0 %v336
    %v1554 = vpop.f32.mrb[0].mxu0
    %v1555 = vadd.f32 %v1330, %v1554
    %v1556 = vpop.f32.mrb[0].mxu0
    %1557 = vmatprep.mubr.f32.mxu0 0.0
    %1558 = vmatmul.mubr.f32.gmra.mrb[0].mxu0 %v376
    %v1559 = vpop.f32.mrb[0].mxu0
    %v1560 = vadd.f32 %v1335, %v1559
    %v1561 = vpop.f32.mrb[0].mxu0
    %1562 = vmatprep.mubr.f32.mxu0 0.0
    %1563 = vmatmul.mubr.f32.gmra.mrb[0].mxu0 %v322
    %v1564 = vpop.f32.mrb[0].mxu0
    %v1565 = vadd.f32 %v1340, %v1564
    %v1566 = vpop.f32.mrb[0].mxu0
    %1567 = vmatprep.mubr.f32.mxu0 0.0
    %1568 = vmatmul.mubr.f32.gmra.mrb[0].mxu0 %v338
    %v1569 = vpop.f32.mrb[0].mxu0
    %v1570 = vadd.f32 %v1345, %v1569
    %v1571 = vpop.f32.mrb[0].mxu0
    %1572 = vmatprep.mubr.f32.mxu0 0.0
    %1573 = vmatmul.mubr.f32.gmra.mrb[0].mxu0 %v339
    %v1574 = vpop.f32.mrb[0].mxu0
    %v1575 = vadd.f32 %v1350, %v1574
    %v1576 = vpop.f32.mrb[0].mxu0
    %1577 = vmatprep.mubr.f32.mxu0 0.0
    %1578 = vmatmul.mubr.f32.gmra.mrb[0].mxu0 %v340
    %v1579 = vpop.f32.mrb[0].mxu0
    %v1580 = vadd.f32 %v1355, %v1579
    %v1581 = vpop.f32.mrb[0].mxu0
    %1582 = vmatprep.mubr.f32.mxu0 0.0
    %1583 = vmatmul.mubr.f32.gmra.mrb[0].mxu0 %v341
    %v1584 = vpop.f32.mrb[0].mxu0
    %v1585 = vadd.f32 %v1360, %v1584
    %v1586 = vpop.f32.mrb[0].mxu0
    %1587 = vmatprep.mubr.f32.mxu0 0.0
    %1588 = vmatmul.mubr.f32.gmra.mrb[0].mxu0 %v342
    %v1589 = vpop.f32.mrb[0].mxu0
    %v1590 = vadd.f32 %v1365, %v1589
    %v1591 = vpop.f32.mrb[0].mxu0
    %1592 = vmatprep.mubr.f32.mxu0 0.0
    %1593 = vmatmul.mubr.f32.gmra.mrb[0].mxu0 %v343
    %v1594 = vpop.f32.mrb[0].mxu0
    %v1595 = vadd.f32 %v1370, %v1594
    %v1596 = vpop.f32.mrb[0].mxu0
    %1597 = vmatprep.mubr.f32.mxu0 0.0
    %1598 = vmatmul.mubr.f32.gmra.mrb[0].mxu0 %v377
    %v1599 = vpop.f32.mrb[0].mxu0
    %v1600 = vadd.f32 %v1375, %v1599
    %v1601 = vpop.f32.mrb[0].mxu0
    %1602 = vmatprep.mubr.f32.mxu0 0.0
    %1603 = vmatmul.mubr.f32.gmra.mrb[0].mxu0 %v322
    %v1604 = vpop.f32.mrb[0].mxu0
    %v1605 = vadd.f32 %v1380, %v1604
    %v1606 = vpop.f32.mrb[0].mxu0
    %1607 = vmatprep.mubr.f32.mxu0 0.0
    %1608 = vmatmul.mubr.f32.gmra.mrb[0].mxu0 %v345
    %v1609 = vpop.f32.mrb[0].mxu0
    %v1610 = vadd.f32 %v1385, %v1609
    %v1611 = vpop.f32.mrb[0].mxu0
    %1612 = vmatprep.mubr.f32.mxu0 0.0
    %1613 = vmatmul.mubr.f32.gmra.mrb[0].mxu0 %v346
    %v1614 = vpop.f32.mrb[0].mxu0
    %v1615 = vadd.f32 %v1390, %v1614
    %v1616 = vpop.f32.mrb[0].mxu0
    %1617 = vmatprep.mubr.f32.mxu0 0.0
    %1618 = vmatmul.mubr.f32.gmra.mrb[0].mxu0 %v347
    %v1619 = vpop.f32.mrb[0].mxu0
    %v1620 = vadd.f32 %v1395, %v1619
    %v1621 = vpop.f32.mrb[0].mxu0
    %1622 = vmatprep.mubr.f32.mxu0 0.0
    %1623 = vmatmul.mubr.f32.gmra.mrb[0].mxu0 %v348
    %v1624 = vpop.f32.mrb[0].mxu0
    %v1625 = vadd.f32 %v1400, %v1624
    %v1626 = vpop.f32.mrb[0].mxu0
    %1627 = vmatprep.mubr.f32.mxu0 0.0
    %1628 = vmatmul.mubr.f32.gmra.mrb[0].mxu0 %v349
    %v1629 = vpop.f32.mrb[0].mxu0
    %v1630 = vadd.f32 %v1405, %v1629
    %v1631 = vpop.f32.mrb[0].mxu0
    %1632 = vmatprep.mubr.f32.mxu0 0.0
    %1633 = vmatmul.mubr.f32.gmra.mrb[0].mxu0 %v350
    %v1634 = vpop.f32.mrb[0].mxu0
    %v1635 = vadd.f32 %v1410, %v1634
    %v1636 = vpop.f32.mrb[0].mxu0
    %1637 = vmatprep.mubr.f32.mxu0 0.0
    %1638 = vmatmul.mubr.f32.gmra.mrb[0].mxu0 %v378
    %v1639 = vpop.f32.mrb[0].mxu0
    %v1640 = vadd.f32 %v1415, %v1639
    %v1641 = vpop.f32.mrb[0].mxu0
    %1642 = vmatprep.mubr.f32.mxu0 0.0
    %1643 = vmatmul.mubr.f32.gmra.mrb[0].mxu0 %v322
    %v1644 = vpop.f32.mrb[0].mxu0
    %v1645 = vadd.f32 %v1420, %v1644
    %v1646 = vpop.f32.mrb[0].mxu0
    %1647 = vdwg.mxu0
    %v1648 = vadd.f32 %v1490, %v1495
    %v1649 = vadd.f32 %v1648, %v1500
    %v1650 = vadd.f32 %v1649, %v1505
    %v1651 = vadd.f32 %v1650, %v1510
    %v1652 = vadd.f32 %v1651, %v1515
    %v1653 = vadd.f32 %v1652, %v1520
    %v1654 = vadd.f32 %v1653, %v1525
    %v1655 = vadd.f32 %v1654, %v1530
    %v1656 = vadd.f32 %v1655, %v1535
    %v1657 = vadd.f32 %v1656, %v1540
    %v1658 = vadd.f32 %v1657, %v1545
    %v1659 = vadd.f32 %v1658, %v1550
    %v1660 = vadd.f32 %v1659, %v1555
    %v1661 = vadd.f32 %v1660, %v1560
    %v1662 = vadd.f32 %v1661, %v1565
    %v1663 = vadd.f32 %v1662, %v1570
    %v1664 = vadd.f32 %v1663, %v1575
    %v1665 = vadd.f32 %v1664, %v1580
    %v1666 = vadd.f32 %v1665, %v1585
    %v1667 = vadd.f32 %v1666, %v1590
    %v1668 = vadd.f32 %v1667, %v1595
    %v1669 = vadd.f32 %v1668, %v1600
    %v1670 = vadd.f32 %v1669, %v1605
    %v1671 = vadd.f32 %v1670, %v1610
    %v1672 = vadd.f32 %v1671, %v1615
    %v1673 = vadd.f32 %v1672, %v1620
    %v1674 = vadd.f32 %v1673, %v1625
    %v1675 = vadd.f32 %v1674, %v1630
    %v1676 = vadd.f32 %v1675, %v1635
    %v1677 = vadd.f32 %v1676, %v1640
    %v1678 = vadd.f32 %v1677, %v1645
    %v1679 = vrot.slane %v1678, 4
    %v1680 = vadd.f32 %v1678, %v1679
    %v1681 = vrot.slane %v1680, 2
    %v1682 = vadd.f32 %v1680, %v1681
    %v1683 = vrot.slane %v1682, 1
    %v1684 = vadd.f32 %v1682, %v1683
    %v1685 = vmul.f32 %v1490, %v1490
    %v1686 = vmul.f32 %v1495, %v1495
    %v1687 = vmul.f32 %v1500, %v1500
    %v1688 = vmul.f32 %v1505, %v1505
    %v1689 = vmul.f32 %v1510, %v1510
    %v1690 = vmul.f32 %v1515, %v1515
    %v1691 = vmul.f32 %v1520, %v1520
    %v1692 = vmul.f32 %v1525, %v1525
    %v1693 = vmul.f32 %v1530, %v1530
    %v1694 = vmul.f32 %v1535, %v1535
    %v1695 = vmul.f32 %v1540, %v1540
    %v1696 = vmul.f32 %v1545, %v1545
    %v1697 = vmul.f32 %v1550, %v1550
    %v1698 = vmul.f32 %v1555, %v1555
    %v1699 = vmul.f32 %v1560, %v1560
    %v1700 = vmul.f32 %v1565, %v1565
    %v1701 = vmul.f32 %v1570, %v1570
    %v1702 = vmul.f32 %v1575, %v1575
    %v1703 = vmul.f32 %v1580, %v1580
    %v1704 = vmul.f32 %v1585, %v1585
    %v1705 = vmul.f32 %v1590, %v1590
    %v1706 = vmul.f32 %v1595, %v1595
    %v1707 = vmul.f32 %v1600, %v1600
    %v1708 = vmul.f32 %v1605, %v1605
    %v1709 = vmul.f32 %v1610, %v1610
    %v1710 = vmul.f32 %v1615, %v1615
    %v1711 = vmul.f32 %v1620, %v1620
    %v1712 = vmul.f32 %v1625, %v1625
    %v1713 = vmul.f32 %v1630, %v1630
    %v1714 = vmul.f32 %v1635, %v1635
    %v1715 = vmul.f32 %v1640, %v1640
    %v1716 = vmul.f32 %v1645, %v1645
    %v1717 = vadd.f32 %v1685, %v1686
    %v1718 = vadd.f32 %v1717, %v1687
    %v1719 = vadd.f32 %v1718, %v1688
    %v1720 = vadd.f32 %v1719, %v1689
    %v1721 = vadd.f32 %v1720, %v1690
    %v1722 = vadd.f32 %v1721, %v1691
    %v1723 = vadd.f32 %v1722, %v1692
    %v1724 = vadd.f32 %v1723, %v1693
    %v1725 = vadd.f32 %v1724, %v1694
    %v1726 = vadd.f32 %v1725, %v1695
    %v1727 = vadd.f32 %v1726, %v1696
    %v1728 = vadd.f32 %v1727, %v1697
    %v1729 = vadd.f32 %v1728, %v1698
    %v1730 = vadd.f32 %v1729, %v1699
    %v1731 = vadd.f32 %v1730, %v1700
    %v1732 = vadd.f32 %v1731, %v1701
    %v1733 = vadd.f32 %v1732, %v1702
    %v1734 = vadd.f32 %v1733, %v1703
    %v1735 = vadd.f32 %v1734, %v1704
    %v1736 = vadd.f32 %v1735, %v1705
    %v1737 = vadd.f32 %v1736, %v1706
    %v1738 = vadd.f32 %v1737, %v1707
    %v1739 = vadd.f32 %v1738, %v1708
    %v1740 = vadd.f32 %v1739, %v1709
    %v1741 = vadd.f32 %v1740, %v1710
    %v1742 = vadd.f32 %v1741, %v1711
    %v1743 = vadd.f32 %v1742, %v1712
    %v1744 = vadd.f32 %v1743, %v1713
    %v1745 = vadd.f32 %v1744, %v1714
    %v1746 = vadd.f32 %v1745, %v1715
    %v1747 = vadd.f32 %v1746, %v1716
    %v1748 = vrot.slane %v1747, 4
    %v1749 = vadd.f32 %v1747, %v1748
    %v1750 = vrot.slane %v1749, 2
    %v1751 = vadd.f32 %v1749, %v1750
    %v1752 = vrot.slane %v1751, 1
    %v1753 = vadd.f32 %v1751, %v1752
    %v1754 = vmul.f32 %v1684, 0.00390625
    %v1755 = vmul.f32 %v1753, 0.00390625
    %v1756 = vmul.f32 %v1754, %v1754
    %v1757 = vsub.f32 %v1755, %v1756
    %v1758 = vadd.f32 %v1757, 1e-05
    %v1759 = vrsqrt.pop %v1758
    %v1760 = vld [vmem:[#allocation7] sm:$0x1]
    %v1761 = vmul.f32 %v1759, %v1760
    %v1762 = vld [vmem:[#allocation8] sm:$0x1]
    %v1763 = vmul.f32 %v1754, %v1761
    %v1764 = vsub.f32 %v1762, %v1763
    %v1765 = vlaneseq
    %v1766 = vshrl.u32 %v1765, 7
    %v1767 = vsub.s32 0, %v1766
    %v1768 = vrot.slane %v1761, %v1767
    %v1769 = vmul.f32 %v1490, %v1768
    %v1770 = vmul.f32 %v1495, %v1768
    %v1771 = vmul.f32 %v1500, %v1768
    %v1772 = vmul.f32 %v1505, %v1768
    %v1773 = vmul.f32 %v1510, %v1768
    %v1774 = vmul.f32 %v1515, %v1768
    %v1775 = vmul.f32 %v1520, %v1768
    %v1776 = vmul.f32 %v1525, %v1768
    %v1777 = vmul.f32 %v1530, %v1768
    %v1778 = vmul.f32 %v1535, %v1768
    %v1779 = vmul.f32 %v1540, %v1768
    %v1780 = vmul.f32 %v1545, %v1768
    %v1781 = vmul.f32 %v1550, %v1768
    %v1782 = vmul.f32 %v1555, %v1768
    %v1783 = vmul.f32 %v1560, %v1768
    %v1784 = vmul.f32 %v1565, %v1768
    %v1785 = vmul.f32 %v1570, %v1768
    %v1786 = vmul.f32 %v1575, %v1768
    %v1787 = vmul.f32 %v1580, %v1768
    %v1788 = vmul.f32 %v1585, %v1768
    %v1789 = vmul.f32 %v1590, %v1768
    %v1790 = vmul.f32 %v1595, %v1768
    %v1791 = vmul.f32 %v1600, %v1768
    %v1792 = vmul.f32 %v1605, %v1768
    %v1793 = vmul.f32 %v1610, %v1768
    %v1794 = vmul.f32 %v1615, %v1768
    %v1795 = vmul.f32 %v1620, %v1768
    %v1796 = vmul.f32 %v1625, %v1768
    %v1797 = vmul.f32 %v1630, %v1768
    %v1798 = vmul.f32 %v1635, %v1768
    %v1799 = vmul.f32 %v1640, %v1768
    %v1800 = vmul.f32 %v1645, %v1768
    %v1802 = vlaneseq
    %v1803 = vshrl.u32 %v1802, 7
    %v1804 = vsub.s32 0, %v1803
    %v1805 = vrot.slane %v1764, %v1804
    %v1807 = vadd.f32 %v1769, %v1805
    %v1808 = vadd.f32 %v1770, %v1805
    %v1809 = vadd.f32 %v1771, %v1805
    %v1810 = vadd.f32 %v1772, %v1805
    %v1811 = vadd.f32 %v1773, %v1805
    %v1812 = vadd.f32 %v1774, %v1805
    %v1813 = vadd.f32 %v1775, %v1805
    %v1814 = vadd.f32 %v1776, %v1805
    %v1815 = vadd.f32 %v1777, %v1805
    %v1816 = vadd.f32 %v1778, %v1805
    %v1817 = vadd.f32 %v1779, %v1805
    %v1818 = vadd.f32 %v1780, %v1805
    %v1819 = vadd.f32 %v1781, %v1805
    %v1820 = vadd.f32 %v1782, %v1805
    %v1821 = vadd.f32 %v1783, %v1805
    %v1822 = vadd.f32 %v1784, %v1805
    %v1823 = vadd.f32 %v1785, %v1805
    %v1824 = vadd.f32 %v1786, %v1805
    %v1825 = vadd.f32 %v1787, %v1805
    %v1826 = vadd.f32 %v1788, %v1805
    %v1827 = vadd.f32 %v1789, %v1805
    %v1828 = vadd.f32 %v1790, %v1805
    %v1829 = vadd.f32 %v1791, %v1805
    %v1830 = vadd.f32 %v1792, %v1805
    %v1831 = vadd.f32 %v1793, %v1805
    %v1832 = vadd.f32 %v1794, %v1805
    %v1833 = vadd.f32 %v1795, %v1805
    %v1834 = vadd.f32 %v1796, %v1805
    %v1835 = vadd.f32 %v1797, %v1805
    %v1836 = vadd.f32 %v1798, %v1805
    %v1837 = vadd.f32 %v1799, %v1805
    %v1838 = vadd.f32 %v1800, %v1805
    %v1839 = vmax.f32 %v1807, 0.0
    %v1840 = vmax.f32 %v1808, 0.0
    %v1841 = vmax.f32 %v1809, 0.0
    %v1842 = vmax.f32 %v1810, 0.0
    %v1843 = vmax.f32 %v1811, 0.0
    %v1844 = vmax.f32 %v1812, 0.0
    %v1845 = vmax.f32 %v1813, 0.0
    %v1846 = vmax.f32 %v1814, 0.0
    %v1847 = vmax.f32 %v1815, 0.0
    %v1848 = vmax.f32 %v1816, 0.0
    %v1849 = vmax.f32 %v1817, 0.0
    %v1850 = vmax.f32 %v1818, 0.0
    %v1851 = vmax.f32 %v1819, 0.0
    %v1852 = vmax.f32 %v1820, 0.0
    %v1853 = vmax.f32 %v1821, 0.0
    %v1854 = vmax.f32 %v1822, 0.0
    %v1855 = vmax.f32 %v1823, 0.0
    %v1856 = vmax.f32 %v1824, 0.0
    %v1857 = vmax.f32 %v1825, 0.0
    %v1858 = vmax.f32 %v1826, 0.0
    %v1859 = vmax.f32 %v1827, 0.0
    %v1860 = vmax.f32 %v1828, 0.0
    %v1861 = vmax.f32 %v1829, 0.0
    %v1862 = vmax.f32 %v1830, 0.0
    %v1863 = vmax.f32 %v1831, 0.0
    %v1864 = vmax.f32 %v1832, 0.0
    %v1865 = vmax.f32 %v1833, 0.0
    %v1866 = vmax.f32 %v1834, 0.0
    %v1867 = vmax.f32 %v1835, 0.0
    %v1868 = vmax.f32 %v1836, 0.0
    %v1869 = vmax.f32 %v1837, 0.0
    %v1870 = vmax.f32 %v1838, 0.0
    %v1899 = vrot.slane %v1839, 7
    %v1900 = vrot.slane %v1840, 7
    %v1901 = vrot.slane %v1841, 7
    %v1902 = vrot.slane %v1842, 7
    %v1903 = vrot.slane %v1843, 7
    %v1904 = vrot.slane %v1844, 7
    %v1905 = vrot.slane %v1845, 7
    %v1906 = vrot.slane %v1847, 7
    %v1907 = vrot.slane %v1848, 7
    %v1908 = vrot.slane %v1849, 7
    %v1909 = vrot.slane %v1850, 7
    %v1910 = vrot.slane %v1851, 7
    %v1911 = vrot.slane %v1852, 7
    %v1912 = vrot.slane %v1853, 7
    %v1913 = vrot.slane %v1855, 7
    %v1914 = vrot.slane %v1856, 7
    %v1915 = vrot.slane %v1857, 7
    %v1916 = vrot.slane %v1858, 7
    %v1917 = vrot.slane %v1859, 7
    %v1918 = vrot.slane %v1860, 7
    %v1919 = vrot.slane %v1861, 7
    %v1920 = vrot.slane %v1863, 7
    %v1921 = vrot.slane %v1864, 7
    %v1922 = vrot.slane %v1865, 7
    %v1923 = vrot.slane %v1866, 7
    %v1924 = vrot.slane %v1867, 7
    %v1925 = vrot.slane %v1868, 7
    %v1926 = vrot.slane %v1869, 7
    %v1955 = vsel %vm233, 0.0, %v1899
    %v1956 = vsel %vm233, 0.0, %v1900
    %v1957 = vsel %vm233, 0.0, %v1901
    %v1958 = vsel %vm233, 0.0, %v1902
    %v1959 = vsel %vm233, 0.0, %v1903
    %v1960 = vsel %vm233, 0.0, %v1904
    %v1961 = vsel %vm233, 0.0, %v1905
    %v1962 = vsel %vm233, 0.0, %v1906
    %v1963 = vsel %vm233, 0.0, %v1907
    %v1964 = vsel %vm233, 0.0, %v1908
    %v1965 = vsel %vm233, 0.0, %v1909
    %v1966 = vsel %vm233, 0.0, %v1910
    %v1967 = vsel %vm233, 0.0, %v1911
    %v1968 = vsel %vm233, 0.0, %v1912
    %v1969 = vsel %vm233, 0.0, %v1913
    %v1970 = vsel %vm233, 0.0, %v1914
    %v1971 = vsel %vm233, 0.0, %v1915
    %v1972 = vsel %vm233, 0.0, %v1916
    %v1973 = vsel %vm233, 0.0, %v1917
    %v1974 = vsel %vm233, 0.0, %v1918
    %v1975 = vsel %vm233, 0.0, %v1919
    %v1976 = vsel %vm233, 0.0, %v1920
    %v1977 = vsel %vm233, 0.0, %v1921
    %v1978 = vsel %vm233, 0.0, %v1922
    %v1979 = vsel %vm233, 0.0, %v1923
    %v1980 = vsel %vm233, 0.0, %v1924
    %v1981 = vsel %vm233, 0.0, %v1925
    %v1982 = vsel %vm233, 0.0, %v1926
    %v1983 = vrot.slane %v1839, 1
    %v1984 = vrot.slane %v1840, 1
    %v1985 = vrot.slane %v1841, 1
    %v1986 = vrot.slane %v1842, 1
    %v1987 = vrot.slane %v1843, 1
    %v1988 = vrot.slane %v1844, 1
    %v1989 = vrot.slane %v1845, 1
    %v1990 = vrot.slane %v1847, 1
    %v1991 = vrot.slane %v1848, 1
    %v1992 = vrot.slane %v1849, 1
    %v1993 = vrot.slane %v1850, 1
    %v1994 = vrot.slane %v1851, 1
    %v1995 = vrot.slane %v1852, 1
    %v1996 = vrot.slane %v1853, 1
    %v1997 = vrot.slane %v1855, 1
    %v1998 = vrot.slane %v1856, 1
    %v1999 = vrot.slane %v1857, 1
    %v2000 = vrot.slane %v1858, 1
    %v2001 = vrot.slane %v1859, 1
    %v2002 = vrot.slane %v1860, 1
    %v2003 = vrot.slane %v1861, 1
    %v2004 = vrot.slane %v1863, 1
    %v2005 = vrot.slane %v1864, 1
    %v2006 = vrot.slane %v1865, 1
    %v2007 = vrot.slane %v1866, 1
    %v2008 = vrot.slane %v1867, 1
    %v2009 = vrot.slane %v1868, 1
    %v2010 = vrot.slane %v1869, 1
    %v2039 = vsel %vm321, %v1983, 0.0
    %v2040 = vsel %vm321, %v1984, 0.0
    %v2041 = vsel %vm321, %v1985, 0.0
    %v2042 = vsel %vm321, %v1986, 0.0
    %v2043 = vsel %vm321, %v1987, 0.0
    %v2044 = vsel %vm321, %v1988, 0.0
    %v2045 = vsel %vm321, %v1989, 0.0
    %v2046 = vsel %vm321, %v1990, 0.0
    %v2047 = vsel %vm321, %v1991, 0.0
    %v2048 = vsel %vm321, %v1992, 0.0
    %v2049 = vsel %vm321, %v1993, 0.0
    %v2050 = vsel %vm321, %v1994, 0.0
    %v2051 = vsel %vm321, %v1995, 0.0
    %v2052 = vsel %vm321, %v1996, 0.0
    %v2053 = vsel %vm321, %v1997, 0.0
    %v2054 = vsel %vm321, %v1998, 0.0
    %v2055 = vsel %vm321, %v1999, 0.0
    %v2056 = vsel %vm321, %v2000, 0.0
    %v2057 = vsel %vm321, %v2001, 0.0
    %v2058 = vsel %vm321, %v2002, 0.0
    %v2059 = vsel %vm321, %v2003, 0.0
    %v2060 = vsel %vm321, %v2004, 0.0
    %v2061 = vsel %vm321, %v2005, 0.0
    %v2062 = vsel %vm321, %v2006, 0.0
    %v2063 = vsel %vm321, %v2007, 0.0
    %v2064 = vsel %vm321, %v2008, 0.0
    %v2065 = vsel %vm321, %v2009, 0.0
    %v2066 = vsel %vm321, %v2010, 0.0
    %v2071 = vrot.slane %v1846, 7
    %v2072 = vrot.slane %v1854, 7
    %v2073 = vrot.slane %v1862, 7
    %v2074 = vrot.slane %v1870, 7
    %v2079 = vsel %vm233, 0.0, %v2071
    %v2080 = vsel %vm233, 0.0, %v2072
    %v2081 = vsel %vm233, 0.0, %v2073
    %v2082 = vsel %vm233, 0.0, %v2074
    %v2083 = vrot.slane %v1846, 1
    %v2084 = vrot.slane %v1854, 1
    %v2085 = vrot.slane %v1862, 1
    %v2086 = vrot.slane %v1870, 1
    %v2091 = vsel %vm321, %v2083, 0.0
    %v2092 = vsel %vm321, %v2084, 0.0
    %v2093 = vsel %vm321, %v2085, 0.0
    %v2094 = vsel %vm321, %v2086, 0.0
    %v2095 = vld [vmem:[#allocation10] sm:$0xff]
    %v2096 = vld [vmem:[#allocation10 + $0x8] sm:$0xff]
    %v2097 = vld [vmem:[#allocation10 + $0x10] sm:$0xff]
    %v2098 = vld [vmem:[#allocation10 + $0x18] sm:$0xff]
    %v2099 = vld [vmem:[#allocation10 + $0x20] sm:$0xff]
    %v2100 = vld [vmem:[#allocation10 + $0x28] sm:$0xff]
    %v2101 = vld [vmem:[#allocation10 + $0x30] sm:$0xff]
    %v2102 = vld [vmem:[#allocation10 + $0x38] sm:$0xff]
    %v2103 = vld [vmem:[#allocation10 + $0x40] sm:$0xff]
    %v2104 = vld [vmem:[#allocation10 + $0x48] sm:$0xff]
    %v2105 = vld [vmem:[#allocation10 + $0x50] sm:$0xff]
    %v2106 = vld [vmem:[#allocation10 + $0x58] sm:$0xff]
    %v2107 = vld [vmem:[#allocation10 + $0x60] sm:$0xff]
    %v2108 = vld [vmem:[#allocation10 + $0x68] sm:$0xff]
    %v2109 = vld [vmem:[#allocation10 + $0x70] sm:$0xff]
    %v2110 = vld [vmem:[#allocation10 + $0x78] sm:$0xff]
    %v2111 = vld [vmem:[#allocation10 + $0x80] sm:$0xff]
    %v2112 = vld [vmem:[#allocation10 + $0x88] sm:$0xff]
    %v2113 = vld [vmem:[#allocation10 + $0x90] sm:$0xff]
    %v2114 = vld [vmem:[#allocation10 + $0x98] sm:$0xff]
    %v2115 = vld [vmem:[#allocation10 + $0xa0] sm:$0xff]
    %v2116 = vld [vmem:[#allocation10 + $0xa8] sm:$0xff]
    %v2117 = vld [vmem:[#allocation10 + $0xb0] sm:$0xff]
    %v2118 = vld [vmem:[#allocation10 + $0xb8] sm:$0xff]
    %v2119 = vld [vmem:[#allocation10 + $0xc0] sm:$0xff]
    %v2120 = vld [vmem:[#allocation10 + $0xc8] sm:$0xff]
    %v2121 = vld [vmem:[#allocation10 + $0xd0] sm:$0xff]
    %v2122 = vld [vmem:[#allocation10 + $0xd8] sm:$0xff]
    %v2123 = vld [vmem:[#allocation10 + $0xe0] sm:$0xff]
    %v2124 = vld [vmem:[#allocation10 + $0xe8] sm:$0xff]
    %v2125 = vld [vmem:[#allocation10 + $0xf0] sm:$0xff]
    %v2126 = vld [vmem:[#allocation10 + $0xf8] sm:$0xff]
    %v2127 = vld [vmem:[#allocation10 + $0x100] sm:$0xff]
    %v2128 = vld [vmem:[#allocation10 + $0x108] sm:$0xff]
    %v2129 = vld [vmem:[#allocation10 + $0x110] sm:$0xff]
    %v2130 = vld [vmem:[#allocation10 + $0x118] sm:$0xff]
    %v2131 = vld [vmem:[#allocation10 + $0x120] sm:$0xff]
    %v2132 = vld [vmem:[#allocation10 + $0x128] sm:$0xff]
    %v2133 = vld [vmem:[#allocation10 + $0x130] sm:$0xff]
    %v2134 = vld [vmem:[#allocation10 + $0x138] sm:$0xff]
    %v2135 = vld [vmem:[#allocation10 + $0x140] sm:$0xff]
    %v2136 = vld [vmem:[#allocation10 + $0x148] sm:$0xff]
    %v2137 = vld [vmem:[#allocation10 + $0x150] sm:$0xff]
    %v2138 = vld [vmem:[#allocation10 + $0x158] sm:$0xff]
    %v2139 = vld [vmem:[#allocation10 + $0x160] sm:$0xff]
    %v2140 = vld [vmem:[#allocation10 + $0x168] sm:$0xff]
    %v2141 = vld [vmem:[#allocation10 + $0x170] sm:$0xff]
    %v2142 = vld [vmem:[#allocation10 + $0x178] sm:$0xff]
    %v2143 = vld [vmem:[#allocation10 + $0x180] sm:$0xff]
    %v2144 = vld [vmem:[#allocation10 + $0x188] sm:$0xff]
    %v2145 = vld [vmem:[#allocation10 + $0x190] sm:$0xff]
    %v2146 = vld [vmem:[#allocation10 + $0x198] sm:$0xff]
    %v2147 = vld [vmem:[#allocation10 + $0x1a0] sm:$0xff]
    %v2148 = vld [vmem:[#allocation10 + $0x1a8] sm:$0xff]
    %v2149 = vld [vmem:[#allocation10 + $0x1b0] sm:$0xff]
    %v2150 = vld [vmem:[#allocation10 + $0x1b8] sm:$0xff]
    %v2151 = vld [vmem:[#allocation10 + $0x1c0] sm:$0xff]
    %v2152 = vld [vmem:[#allocation10 + $0x1c8] sm:$0xff]
    %v2153 = vld [vmem:[#allocation10 + $0x1d0] sm:$0xff]
    %v2154 = vld [vmem:[#allocation10 + $0x1d8] sm:$0xff]
    %v2155 = vld [vmem:[#allocation10 + $0x1e0] sm:$0xff]
    %v2156 = vld [vmem:[#allocation10 + $0x1e8] sm:$0xff]
    %v2157 = vld [vmem:[#allocation10 + $0x1f0] sm:$0xff]
    %v2158 = vld [vmem:[#allocation10 + $0x1f8] sm:$0xff]
    %v2159 = vld [vmem:[#allocation10 + $0x200] sm:$0xff]
    %v2160 = vld [vmem:[#allocation10 + $0x208] sm:$0xff]
    %v2161 = vld [vmem:[#allocation10 + $0x210] sm:$0xff]
    %v2162 = vld [vmem:[#allocation10 + $0x218] sm:$0xff]
    %v2163 = vld [vmem:[#allocation10 + $0x220] sm:$0xff]
    %v2164 = vld [vmem:[#allocation10 + $0x228] sm:$0xff]
    %v2165 = vld [vmem:[#allocation10 + $0x230] sm:$0xff]
    %v2166 = vld [vmem:[#allocation10 + $0x238] sm:$0xff]
    %v2167 = vld [vmem:[#allocation10 + $0x240] sm:$0xff]
    %v2168 = vld [vmem:[#allocation10 + $0x248] sm:$0xff]
    %v2169 = vld [vmem:[#allocation10 + $0x250] sm:$0xff]
    %v2170 = vld [vmem:[#allocation10 + $0x258] sm:$0xff]
    %v2171 = vld [vmem:[#allocation10 + $0x260] sm:$0xff]
    %v2172 = vld [vmem:[#allocation10 + $0x268] sm:$0xff]
    %v2173 = vld [vmem:[#allocation10 + $0x270] sm:$0xff]
    %v2174 = vld [vmem:[#allocation10 + $0x278] sm:$0xff]
    %v2175 = vld [vmem:[#allocation10 + $0x280] sm:$0xff]
    %v2176 = vld [vmem:[#allocation10 + $0x288] sm:$0xff]
    %v2177 = vld [vmem:[#allocation10 + $0x290] sm:$0xff]
    %v2178 = vld [vmem:[#allocation10 + $0x298] sm:$0xff]
    %v2179 = vld [vmem:[#allocation10 + $0x2a0] sm:$0xff]
    %v2180 = vld [vmem:[#allocation10 + $0x2a8] sm:$0xff]
    %v2181 = vld [vmem:[#allocation10 + $0x2b0] sm:$0xff]
    %v2182 = vld [vmem:[#allocation10 + $0x2b8] sm:$0xff]
    %v2183 = vld [vmem:[#allocation10 + $0x2c0] sm:$0xff]
    %v2184 = vld [vmem:[#allocation10 + $0x2c8] sm:$0xff]
    %v2185 = vld [vmem:[#allocation10 + $0x2d0] sm:$0xff]
    %v2186 = vld [vmem:[#allocation10 + $0x2d8] sm:$0xff]
    %v2187 = vld [vmem:[#allocation10 + $0x2e0] sm:$0xff]
    %v2188 = vld [vmem:[#allocation10 + $0x2e8] sm:$0xff]
    %v2189 = vld [vmem:[#allocation10 + $0x2f0] sm:$0xff]
    %v2190 = vld [vmem:[#allocation10 + $0x2f8] sm:$0xff]
    %v2191 = vld [vmem:[#allocation10 + $0x300] sm:$0xff]
    %v2192 = vld [vmem:[#allocation10 + $0x308] sm:$0xff]
    %v2193 = vld [vmem:[#allocation10 + $0x310] sm:$0xff]
    %v2194 = vld [vmem:[#allocation10 + $0x318] sm:$0xff]
    %v2195 = vld [vmem:[#allocation10 + $0x320] sm:$0xff]
    %v2196 = vld [vmem:[#allocation10 + $0x328] sm:$0xff]
    %v2197 = vld [vmem:[#allocation10 + $0x330] sm:$0xff]
    %v2198 = vld [vmem:[#allocation10 + $0x338] sm:$0xff]
    %v2199 = vld [vmem:[#allocation10 + $0x340] sm:$0xff]
    %v2200 = vld [vmem:[#allocation10 + $0x348] sm:$0xff]
    %v2201 = vld [vmem:[#allocation10 + $0x350] sm:$0xff]
    %v2202 = vld [vmem:[#allocation10 + $0x358] sm:$0xff]
    %v2203 = vld [vmem:[#allocation10 + $0x360] sm:$0xff]
    %v2204 = vld [vmem:[#allocation10 + $0x368] sm:$0xff]
    %v2205 = vld [vmem:[#allocation10 + $0x370] sm:$0xff]
    %v2206 = vld [vmem:[#allocation10 + $0x378] sm:$0xff]
    %v2207 = vld [vmem:[#allocation10 + $0x380] sm:$0xff]
    %v2208 = vld [vmem:[#allocation10 + $0x388] sm:$0xff]
    %v2209 = vld [vmem:[#allocation10 + $0x390] sm:$0xff]
    %v2210 = vld [vmem:[#allocation10 + $0x398] sm:$0xff]
    %v2211 = vld [vmem:[#allocation10 + $0x3a0] sm:$0xff]
    %v2212 = vld [vmem:[#allocation10 + $0x3a8] sm:$0xff]
    %v2213 = vld [vmem:[#allocation10 + $0x3b0] sm:$0xff]
    %v2214 = vld [vmem:[#allocation10 + $0x3b8] sm:$0xff]
    %v2215 = vld [vmem:[#allocation10 + $0x3c0] sm:$0xff]
    %v2216 = vld [vmem:[#allocation10 + $0x3c8] sm:$0xff]
    %v2217 = vld [vmem:[#allocation10 + $0x3d0] sm:$0xff]
    %v2218 = vld [vmem:[#allocation10 + $0x3d8] sm:$0xff]
    %v2219 = vld [vmem:[#allocation10 + $0x3e0] sm:$0xff]
    %v2220 = vld [vmem:[#allocation10 + $0x3e8] sm:$0xff]
    %v2221 = vld [vmem:[#allocation10 + $0x3f0] sm:$0xff]
    %v2222 = vld [vmem:[#allocation10 + $0x3f8] sm:$0xff]
    %v2223 = vld [vmem:[#allocation10 + $0x400] sm:$0xff]
    %v2224 = vld [vmem:[#allocation10 + $0x408] sm:$0xff]
    %v2225 = vld [vmem:[#allocation10 + $0x410] sm:$0xff]
    %v2226 = vld [vmem:[#allocation10 + $0x418] sm:$0xff]
    %v2227 = vld [vmem:[#allocation10 + $0x420] sm:$0xff]
    %v2228 = vld [vmem:[#allocation10 + $0x428] sm:$0xff]
    %v2229 = vld [vmem:[#allocation10 + $0x430] sm:$0xff]
    %v2230 = vld [vmem:[#allocation10 + $0x438] sm:$0xff]
    %v2231 = vld [vmem:[#allocation10 + $0x440] sm:$0xff]
    %v2232 = vld [vmem:[#allocation10 + $0x448] sm:$0xff]
    %v2233 = vld [vmem:[#allocation10 + $0x450] sm:$0xff]
    %v2234 = vld [vmem:[#allocation10 + $0x458] sm:$0xff]
    %v2235 = vld [vmem:[#allocation10 + $0x460] sm:$0xff]
    %v2236 = vld [vmem:[#allocation10 + $0x468] sm:$0xff]
    %v2237 = vld [vmem:[#allocation10 + $0x470] sm:$0xff]
    %v2238 = vld [vmem:[#allocation10 + $0x478] sm:$0xff]
    %2239 = vmatprep.subr.mxu0 0.0
    %2240 = vmatpush1.msra.mxu0 %v2095
    %2241 = vmatprep.subr.mxu0 0.0
    %2242 = vmatpush1.msra.mxu0 %v2096
    %2243 = vmatprep.subr.mxu0 0.0
    %2244 = vmatpush1.msra.mxu0 %v2097
    %2245 = vmatprep.subr.mxu0 0.0
    %2246 = vmatpush1.msra.mxu0 %v2098
    %2247 = vmatprep.subr.mxu0 0.0
    %2248 = vmatpush1.msra.mxu0 %v2099
    %2249 = vmatprep.subr.mxu0 0.0
    %2250 = vmatpush1.msra.mxu0 %v2100
    %2251 = vmatprep.subr.mxu0 0.0
    %2252 = vmatpush1.msra.mxu0 %v2101
    %2253 = vmatprep.subr.mxu0 0.0
    %2254 = vmatpush1.msra.mxu0 %v2102
    %2255 = vmatprep.subr.mxu0 0.0
    %2256 = vmatpush1.msra.mxu0 %v2103
    %2257 = vmatprep.subr.mxu0 0.0
    %2258 = vmatpush1.msra.mxu0 %v2104
    %2259 = vmatprep.subr.mxu0 0.0
    %2260 = vmatpush1.msra.mxu0 %v2105
    %2261 = vmatprep.subr.mxu0 0.0
    %2262 = vmatpush1.msra.mxu0 %v2106
    %2263 = vmatprep.subr.mxu0 0.0
    %2264 = vmatpush1.msra.mxu0 %v2107
    %2265 = vmatprep.subr.mxu0 0.0
    %2266 = vmatpush1.msra.mxu0 %v2108
    %2267 = vmatprep.subr.mxu0 0.0
    %2268 = vmatpush1.msra.mxu0 %v2109
    %2269 = vmatprep.subr.mxu0 0.0
    %2270 = vmatpush1.msra.mxu0 %v2110
    %2271 = vmatprep.subr.mxu0 0.0
    %2272 = vmatpush1.msra.mxu0 %v2111
    %2273 = vmatprep.subr.mxu0 0.0
    %2274 = vmatpush1.msra.mxu0 %v2112
    %2275 = vmatprep.subr.mxu0 0.0
    %2276 = vmatpush1.msra.mxu0 %v2113
    %2277 = vmatprep.subr.mxu0 0.0
    %2278 = vmatpush1.msra.mxu0 %v2114
    %2279 = vmatprep.subr.mxu0 0.0
    %2280 = vmatpush1.msra.mxu0 %v2115
    %2281 = vmatprep.subr.mxu0 0.0
    %2282 = vmatpush1.msra.mxu0 %v2116
    %2283 = vmatprep.subr.mxu0 0.0
    %2284 = vmatpush1.msra.mxu0 %v2117
    %2285 = vmatprep.subr.mxu0 0.0
    %2286 = vmatpush1.msra.mxu0 %v2118
    %2287 = vmatprep.subr.mxu0 0.0
    %2288 = vmatpush1.msra.mxu0 %v2119
    %2289 = vmatprep.subr.mxu0 0.0
    %2290 = vmatpush1.msra.mxu0 %v2120
    %2291 = vmatprep.subr.mxu0 0.0
    %2292 = vmatpush1.msra.mxu0 %v2121
    %2293 = vmatprep.subr.mxu0 0.0
    %2294 = vmatpush1.msra.mxu0 %v2122
    %2295 = vmatprep.subr.mxu0 0.0
    %2296 = vmatpush1.msra.mxu0 %v2123
    %2297 = vmatprep.subr.mxu0 0.0
    %2298 = vmatpush1.msra.mxu0 %v2124
    %2299 = vmatprep.subr.mxu0 0.0
    %2300 = vmatpush1.msra.mxu0 %v2125
    %2301 = vmatprep.subr.mxu0 0.0
    %2302 = vmatpush1.msra.mxu0 %v2126
    %2303 = vmatprep.mubr.f32.mxu0 0.0
    %2304 = vmatmul.mubr.f32.gmra.mrb[0].mxu0 %v234
    %v2305 = vpop.f32.mrb[0].mxu0
    %v2306 = vadd.f32 0.0, %v2305
    %v2307 = vpop.f32.mrb[0].mxu0
    %2308 = vmatprep.mubr.f32.mxu0 %v1839
    %2309 = vmatmul.mubr.f32.gmra.mrb[0].mxu0 %v1955
    %v2310 = vpop.f32.mrb[0].mxu0
    %v2311 = vadd.f32 0.0, %v2310
    %v2312 = vpop.f32.mrb[0].mxu0
    %2313 = vmatprep.mubr.f32.mxu0 %v1840
    %2314 = vmatmul.mubr.f32.gmra.mrb[0].mxu0 %v1956
    %v2315 = vpop.f32.mrb[0].mxu0
    %v2316 = vadd.f32 0.0, %v2315
    %v2317 = vpop.f32.mrb[0].mxu0
    %2318 = vmatprep.mubr.f32.mxu0 %v1841
    %2319 = vmatmul.mubr.f32.gmra.mrb[0].mxu0 %v1957
    %v2320 = vpop.f32.mrb[0].mxu0
    %v2321 = vadd.f32 0.0, %v2320
    %v2322 = vpop.f32.mrb[0].mxu0
    %2323 = vmatprep.mubr.f32.mxu0 %v1842
    %2324 = vmatmul.mubr.f32.gmra.mrb[0].mxu0 %v1958
    %v2325 = vpop.f32.mrb[0].mxu0
    %v2326 = vadd.f32 0.0, %v2325
    %v2327 = vpop.f32.mrb[0].mxu0
    %2328 = vmatprep.mubr.f32.mxu0 %v1843
    %2329 = vmatmul.mubr.f32.gmra.mrb[0].mxu0 %v1959
    %v2330 = vpop.f32.mrb[0].mxu0
    %v2331 = vadd.f32 0.0, %v2330
    %v2332 = vpop.f32.mrb[0].mxu0
    %2333 = vmatprep.mubr.f32.mxu0 %v1844
    %2334 = vmatmul.mubr.f32.gmra.mrb[0].mxu0 %v1960
    %v2335 = vpop.f32.mrb[0].mxu0
    %v2336 = vadd.f32 0.0, %v2335
    %v2337 = vpop.f32.mrb[0].mxu0
    %2338 = vmatprep.mubr.f32.mxu0 %v1845
    %2339 = vmatmul.mubr.f32.gmra.mrb[0].mxu0 %v1961
    %v2340 = vpop.f32.mrb[0].mxu0
    %v2341 = vadd.f32 0.0, %v2340
    %v2342 = vpop.f32.mrb[0].mxu0
    %2343 = vmatprep.mubr.f32.mxu0 0.0
    %2344 = vmatmul.mubr.f32.gmra.mrb[0].mxu0 %v234
    %v2345 = vpop.f32.mrb[0].mxu0
    %v2346 = vadd.f32 0.0, %v2345
    %v2347 = vpop.f32.mrb[0].mxu0
    %2348 = vmatprep.mubr.f32.mxu0 %v1847
    %2349 = vmatmul.mubr.f32.gmra.mrb[0].mxu0 %v1962
    %v2350 = vpop.f32.mrb[0].mxu0
    %v2351 = vadd.f32 0.0, %v2350
    %v2352 = vpop.f32.mrb[0].mxu0
    %2353 = vmatprep.mubr.f32.mxu0 %v1848
    %2354 = vmatmul.mubr.f32.gmra.mrb[0].mxu0 %v1963
    %v2355 = vpop.f32.mrb[0].mxu0
    %v2356 = vadd.f32 0.0, %v2355
    %v2357 = vpop.f32.mrb[0].mxu0
    %2358 = vmatprep.mubr.f32.mxu0 %v1849
    %2359 = vmatmul.mubr.f32.gmra.mrb[0].mxu0 %v1964
    %v2360 = vpop.f32.mrb[0].mxu0
    %v2361 = vadd.f32 0.0, %v2360
    %v2362 = vpop.f32.mrb[0].mxu0
    %2363 = vmatprep.mubr.f32.mxu0 %v1850
    %2364 = vmatmul.mubr.f32.gmra.mrb[0].mxu0 %v1965
    %v2365 = vpop.f32.mrb[0].mxu0
    %v2366 = vadd.f32 0.0, %v2365
    %v2367 = vpop.f32.mrb[0].mxu0
    %2368 = vmatprep.mubr.f32.mxu0 %v1851
    %2369 = vmatmul.mubr.f32.gmra.mrb[0].mxu0 %v1966
    %v2370 = vpop.f32.mrb[0].mxu0
    %v2371 = vadd.f32 0.0, %v2370
    %v2372 = vpop.f32.mrb[0].mxu0
    %2373 = vmatprep.mubr.f32.mxu0 %v1852
    %2374 = vmatmul.mubr.f32.gmra.mrb[0].mxu0 %v1967
    %v2375 = vpop.f32.mrb[0].mxu0
    %v2376 = vadd.f32 0.0, %v2375
    %v2377 = vpop.f32.mrb[0].mxu0
    %2378 = vmatprep.mubr.f32.mxu0 %v1853
    %2379 = vmatmul.mubr.f32.gmra.mrb[0].mxu0 %v1968
    %v2380 = vpop.f32.mrb[0].mxu0
    %v2381 = vadd.f32 0.0, %v2380
    %v2382 = vpop.f32.mrb[0].mxu0
    %2383 = vmatprep.mubr.f32.mxu0 0.0
    %2384 = vmatmul.mubr.f32.gmra.mrb[0].mxu0 %v234
    %v2385 = vpop.f32.mrb[0].mxu0
    %v2386 = vadd.f32 0.0, %v2385
    %v2387 = vpop.f32.mrb[0].mxu0
    %2388 = vmatprep.mubr.f32.mxu0 %v1855
    %2389 = vmatmul.mubr.f32.gmra.mrb[0].mxu0 %v1969
    %v2390 = vpop.f32.mrb[0].mxu0
    %v2391 = vadd.f32 0.0, %v2390
    %v2392 = vpop.f32.mrb[0].mxu0
    %2393 = vmatprep.mubr.f32.mxu0 %v1856
    %2394 = vmatmul.mubr.f32.gmra.mrb[0].mxu0 %v1970
    %v2395 = vpop.f32.mrb[0].mxu0
    %v2396 = vadd.f32 0.0, %v2395
    %v2397 = vpop.f32.mrb[0].mxu0
    %2398 = vmatprep.mubr.f32.mxu0 %v1857
    %2399 = vmatmul.mubr.f32.gmra.mrb[0].mxu0 %v1971
    %v2400 = vpop.f32.mrb[0].mxu0
    %v2401 = vadd.f32 0.0, %v2400
    %v2402 = vpop.f32.mrb[0].mxu0
    %2403 = vmatprep.mubr.f32.mxu0 %v1858
    %2404 = vmatmul.mubr.f32.gmra.mrb[0].mxu0 %v1972
    %v2405 = vpop.f32.mrb[0].mxu0
    %v2406 = vadd.f32 0.0, %v2405
    %v2407 = vpop.f32.mrb[0].mxu0
    %2408 = vmatprep.mubr.f32.mxu0 %v1859
    %2409 = vmatmul.mubr.f32.gmra.mrb[0].mxu0 %v1973
    %v2410 = vpop.f32.mrb[0].mxu0
    %v2411 = vadd.f32 0.0, %v2410
    %v2412 = vpop.f32.mrb[0].mxu0
    %2413 = vmatprep.mubr.f32.mxu0 %v1860
    %2414 = vmatmul.mubr.f32.gmra.mrb[0].mxu0 %v1974
    %v2415 = vpop.f32.mrb[0].mxu0
    %v2416 = vadd.f32 0.0, %v2415
    %v2417 = vpop.f32.mrb[0].mxu0
    %2418 = vmatprep.mubr.f32.mxu0 %v1861
    %2419 = vmatmul.mubr.f32.gmra.mrb[0].mxu0 %v1975
    %v2420 = vpop.f32.mrb[0].mxu0
    %v2421 = vadd.f32 0.0, %v2420
    %v2422 = vpop.f32.mrb[0].mxu0
    %2423 = vmatprep.mubr.f32.mxu0 0.0
    %2424 = vmatmul.mubr.f32.gmra.mrb[0].mxu0 %v234
    %v2425 = vpop.f32.mrb[0].mxu0
    %v2426 = vadd.f32 0.0, %v2425
    %v2427 = vpop.f32.mrb[0].mxu0
    %2428 = vmatprep.mubr.f32.mxu0 %v1863
    %2429 = vmatmul.mubr.f32.gmra.mrb[0].mxu0 %v1976
    %v2430 = vpop.f32.mrb[0].mxu0
    %v2431 = vadd.f32 0.0, %v2430
    %v2432 = vpop.f32.mrb[0].mxu0
    %2433 = vmatprep.mubr.f32.mxu0 %v1864
    %2434 = vmatmul.mubr.f32.gmra.mrb[0].mxu0 %v1977
    %v2435 = vpop.f32.mrb[0].mxu0
    %v2436 = vadd.f32 0.0, %v2435
    %v2437 = vpop.f32.mrb[0].mxu0
    %2438 = vmatprep.mubr.f32.mxu0 %v1865
    %2439 = vmatmul.mubr.f32.gmra.mrb[0].mxu0 %v1978
    %v2440 = vpop.f32.mrb[0].mxu0
    %v2441 = vadd.f32 0.0, %v2440
    %v2442 = vpop.f32.mrb[0].mxu0
    %2443 = vmatprep.mubr.f32.mxu0 %v1866
    %2444 = vmatmul.mubr.f32.gmra.mrb[0].mxu0 %v1979
    %v2445 = vpop.f32.mrb[0].mxu0
    %v2446 = vadd.f32 0.0, %v2445
    %v2447 = vpop.f32.mrb[0].mxu0
    %2448 = vmatprep.mubr.f32.mxu0 %v1867
    %2449 = vmatmul.mubr.f32.gmra.mrb[0].mxu0 %v1980
    %v2450 = vpop.f32.mrb[0].mxu0
    %v2451 = vadd.f32 0.0, %v2450
    %v2452 = vpop.f32.mrb[0].mxu0
    %2453 = vmatprep.mubr.f32.mxu0 %v1868
    %2454 = vmatmul.mubr.f32.gmra.mrb[0].mxu0 %v1981
    %v2455 = vpop.f32.mrb[0].mxu0
    %v2456 = vadd.f32 0.0, %v2455
    %v2457 = vpop.f32.mrb[0].mxu0
    %2458 = vmatprep.mubr.f32.mxu0 %v1869
    %2459 = vmatmul.mubr.f32.gmra.mrb[0].mxu0 %v1982
    %v2460 = vpop.f32.mrb[0].mxu0
    %v2461 = vadd.f32 0.0, %v2460
    %v2462 = vpop.f32.mrb[0].mxu0
    %2463 = vdwg.mxu0
    %2464 = vmatprep.subr.mxu0 0.0
    %2465 = vmatpush1.msra.mxu0 %v2127
    %2466 = vmatprep.subr.mxu0 0.0
    %2467 = vmatpush1.msra.mxu0 %v2128
    %2468 = vmatprep.subr.mxu0 0.0
    %2469 = vmatpush1.msra.mxu0 %v2129
    %2470 = vmatprep.subr.mxu0 0.0
    %2471 = vmatpush1.msra.mxu0 %v2130
    %2472 = vmatprep.subr.mxu0 0.0
    %2473 = vmatpush1.msra.mxu0 %v2131
    %2474 = vmatprep.subr.mxu0 0.0
    %2475 = vmatpush1.msra.mxu0 %v2132
    %2476 = vmatprep.subr.mxu0 0.0
    %2477 = vmatpush1.msra.mxu0 %v2133
    %2478 = vmatprep.subr.mxu0 0.0
    %2479 = vmatpush1.msra.mxu0 %v2134
    %2480 = vmatprep.subr.mxu0 0.0
    %2481 = vmatpush1.msra.mxu0 %v2135
    %2482 = vmatprep.subr.mxu0 0.0
    %2483 = vmatpush1.msra.mxu0 %v2136
    %2484 = vmatprep.subr.mxu0 0.0
    %2485 = vmatpush1.msra.mxu0 %v2137
    %2486 = vmatprep.subr.mxu0 0.0
    %2487 = vmatpush1.msra.mxu0 %v2138
    %2488 = vmatprep.subr.mxu0 0.0
    %2489 = vmatpush1.msra.mxu0 %v2139
    %2490 = vmatprep.subr.mxu0 0.0
    %2491 = vmatpush1.msra.mxu0 %v2140
    %2492 = vmatprep.subr.mxu0 0.0
    %2493 = vmatpush1.msra.mxu0 %v2141
    %2494 = vmatprep.subr.mxu0 0.0
    %2495 = vmatpush1.msra.mxu0 %v2142
    %2496 = vmatprep.subr.mxu0 0.0
    %2497 = vmatpush1.msra.mxu0 %v2143
    %2498 = vmatprep.subr.mxu0 0.0
    %2499 = vmatpush1.msra.mxu0 %v2144
    %2500 = vmatprep.subr.mxu0 0.0
    %2501 = vmatpush1.msra.mxu0 %v2145
    %2502 = vmatprep.subr.mxu0 0.0
    %2503 = vmatpush1.msra.mxu0 %v2146
    %2504 = vmatprep.subr.mxu0 0.0
    %2505 = vmatpush1.msra.mxu0 %v2147
    %2506 = vmatprep.subr.mxu0 0.0
    %2507 = vmatpush1.msra.mxu0 %v2148
    %2508 = vmatprep.subr.mxu0 0.0
    %2509 = vmatpush1.msra.mxu0 %v2149
    %2510 = vmatprep.subr.mxu0 0.0
    %2511 = vmatpush1.msra.mxu0 %v2150
    %2512 = vmatprep.subr.mxu0 0.0
    %2513 = vmatpush1.msra.mxu0 %v2151
    %2514 = vmatprep.subr.mxu0 0.0
    %2515 = vmatpush1.msra.mxu0 %v2152
    %2516 = vmatprep.subr.mxu0 0.0
    %2517 = vmatpush1.msra.mxu0 %v2153
    %2518 = vmatprep.subr.mxu0 0.0
    %2519 = vmatpush1.msra.mxu0 %v2154
    %2520 = vmatprep.subr.mxu0 0.0
    %2521 = vmatpush1.msra.mxu0 %v2155
    %2522 = vmatprep.subr.mxu0 0.0
    %2523 = vmatpush1.msra.mxu0 %v2156
    %2524 = vmatprep.subr.mxu0 0.0
    %2525 = vmatpush1.msra.mxu0 %v2157
    %2526 = vmatprep.subr.mxu0 0.0
    %2527 = vmatpush1.msra.mxu0 %v2158
    %2528 = vmatprep.mubr.f32.mxu0 %v1955
    %2529 = vmatmul.mubr.f32.gmra.mrb[0].mxu0 %v322
    %v2530 = vpop.f32.mrb[0].mxu0
    %v2531 = vadd.f32 %v2306, %v2530
    %v2532 = vpop.f32.mrb[0].mxu0
    %2533 = vmatprep.mubr.f32.mxu0 %v1956
    %2534 = vmatmul.mubr.f32.gmra.mrb[0].mxu0 %v2039
    %v2535 = vpop.f32.mrb[0].mxu0
    %v2536 = vadd.f32 %v2311, %v2535
    %v2537 = vpop.f32.mrb[0].mxu0
    %2538 = vmatprep.mubr.f32.mxu0 %v1957
    %2539 = vmatmul.mubr.f32.gmra.mrb[0].mxu0 %v2040
    %v2540 = vpop.f32.mrb[0].mxu0
    %v2541 = vadd.f32 %v2316, %v2540
    %v2542 = vpop.f32.mrb[0].mxu0
    %2543 = vmatprep.mubr.f32.mxu0 %v1958
    %2544 = vmatmul.mubr.f32.gmra.mrb[0].mxu0 %v2041
    %v2545 = vpop.f32.mrb[0].mxu0
    %v2546 = vadd.f32 %v2321, %v2545
    %v2547 = vpop.f32.mrb[0].mxu0
    %2548 = vmatprep.mubr.f32.mxu0 %v1959
    %2549 = vmatmul.mubr.f32.gmra.mrb[0].mxu0 %v2042
    %v2550 = vpop.f32.mrb[0].mxu0
    %v2551 = vadd.f32 %v2326, %v2550
    %v2552 = vpop.f32.mrb[0].mxu0
    %2553 = vmatprep.mubr.f32.mxu0 %v1960
    %2554 = vmatmul.mubr.f32.gmra.mrb[0].mxu0 %v2043
    %v2555 = vpop.f32.mrb[0].mxu0
    %v2556 = vadd.f32 %v2331, %v2555
    %v2557 = vpop.f32.mrb[0].mxu0
    %2558 = vmatprep.mubr.f32.mxu0 %v1961
    %2559 = vmatmul.mubr.f32.gmra.mrb[0].mxu0 %v2044
    %v2560 = vpop.f32.mrb[0].mxu0
    %v2561 = vadd.f32 %v2336, %v2560
    %v2562 = vpop.f32.mrb[0].mxu0
    %2563 = vmatprep.mubr.f32.mxu0 %v2079
    %2564 = vmatmul.mubr.f32.gmra.mrb[0].mxu0 %v2045
    %v2565 = vpop.f32.mrb[0].mxu0
    %v2566 = vadd.f32 %v2341, %v2565
    %v2567 = vpop.f32.mrb[0].mxu0
    %2568 = vmatprep.mubr.f32.mxu0 %v1962
    %2569 = vmatmul.mubr.f32.gmra.mrb[0].mxu0 %v322
    %v2570 = vpop.f32.mrb[0].mxu0
    %v2571 = vadd.f32 %v2346, %v2570
    %v2572 = vpop.f32.mrb[0].mxu0
    %2573 = vmatprep.mubr.f32.mxu0 %v1963
    %2574 = vmatmul.mubr.f32.gmra.mrb[0].mxu0 %v2046
    %v2575 = vpop.f32.mrb[0].mxu0
    %v2576 = vadd.f32 %v2351, %v2575
    %v2577 = vpop.f32.mrb[0].mxu0
    %2578 = vmatprep.mubr.f32.mxu0 %v1964
    %2579 = vmatmul.mubr.f32.gmra.mrb[0].mxu0 %v2047
    %v2580 = vpop.f32.mrb[0].mxu0
    %v2581 = vadd.f32 %v2356, %v2580
    %v2582 = vpop.f32.mrb[0].mxu0
    %2583 = vmatprep.mubr.f32.mxu0 %v1965
    %2584 = vmatmul.mubr.f32.gmra.mrb[0].mxu0 %v2048
    %v2585 = vpop.f32.mrb[0].mxu0
    %v2586 = vadd.f32 %v2361, %v2585
    %v2587 = vpop.f32.mrb[0].mxu0
    %2588 = vmatprep.mubr.f32.mxu0 %v1966
    %2589 = vmatmul.mubr.f32.gmra.mrb[0].mxu0 %v2049
    %v2590 = vpop.f32.mrb[0].mxu0
    %v2591 = vadd.f32 %v2366, %v2590
    %v2592 = vpop.f32.mrb[0].mxu0
    %2593 = vmatprep.mubr.f32.mxu0 %v1967
    %2594 = vmatmul.mubr.f32.gmra.mrb[0].mxu0 %v2050
    %v2595 = vpop.f32.mrb[0].mxu0
    %v2596 = vadd.f32 %v2371, %v2595
    %v2597 = vpop.f32.mrb[0].mxu0
    %2598 = vmatprep.mubr.f32.mxu0 %v1968
    %2599 = vmatmul.mubr.f32.gmra.mrb[0].mxu0 %v2051
    %v2600 = vpop.f32.mrb[0].mxu0
    %v2601 = vadd.f32 %v2376, %v2600
    %v2602 = vpop.f32.mrb[0].mxu0
    %2603 = vmatprep.mubr.f32.mxu0 %v2080
    %2604 = vmatmul.mubr.f32.gmra.mrb[0].mxu0 %v2052
    %v2605 = vpop.f32.mrb[0].mxu0
    %v2606 = vadd.f32 %v2381, %v2605
    %v2607 = vpop.f32.mrb[0].mxu0
    %2608 = vmatprep.mubr.f32.mxu0 %v1969
    %2609 = vmatmul.mubr.f32.gmra.mrb[0].mxu0 %v322
    %v2610 = vpop.f32.mrb[0].mxu0
    %v2611 = vadd.f32 %v2386, %v2610
    %v2612 = vpop.f32.mrb[0].mxu0
    %2613 = vmatprep.mubr.f32.mxu0 %v1970
    %2614 = vmatmul.mubr.f32.gmra.mrb[0].mxu0 %v2053
    %v2615 = vpop.f32.mrb[0].mxu0
    %v2616 = vadd.f32 %v2391, %v2615
    %v2617 = vpop.f32.mrb[0].mxu0
    %2618 = vmatprep.mubr.f32.mxu0 %v1971
    %2619 = vmatmul.mubr.f32.gmra.mrb[0].mxu0 %v2054
    %v2620 = vpop.f32.mrb[0].mxu0
    %v2621 = vadd.f32 %v2396, %v2620
    %v2622 = vpop.f32.mrb[0].mxu0
    %2623 = vmatprep.mubr.f32.mxu0 %v1972
    %2624 = vmatmul.mubr.f32.gmra.mrb[0].mxu0 %v2055
    %v2625 = vpop.f32.mrb[0].mxu0
    %v2626 = vadd.f32 %v2401, %v2625
    %v2627 = vpop.f32.mrb[0].mxu0
    %2628 = vmatprep.mubr.f32.mxu0 %v1973
    %2629 = vmatmul.mubr.f32.gmra.mrb[0].mxu0 %v2056
    %v2630 = vpop.f32.mrb[0].mxu0
    %v2631 = vadd.f32 %v2406, %v2630
    %v2632 = vpop.f32.mrb[0].mxu0
    %2633 = vmatprep.mubr.f32.mxu0 %v1974
    %2634 = vmatmul.mubr.f32.gmra.mrb[0].mxu0 %v2057
    %v2635 = vpop.f32.mrb[0].mxu0
    %v2636 = vadd.f32 %v2411, %v2635
    %v2637 = vpop.f32.mrb[0].mxu0
    %2638 = vmatprep.mubr.f32.mxu0 %v1975
    %2639 = vmatmul.mubr.f32.gmra.mrb[0].mxu0 %v2058
    %v2640 = vpop.f32.mrb[0].mxu0
    %v2641 = vadd.f32 %v2416, %v2640
    %v2642 = vpop.f32.mrb[0].mxu0
    %2643 = vmatprep.mubr.f32.mxu0 %v2081
    %2644 = vmatmul.mubr.f32.gmra.mrb[0].mxu0 %v2059
    %v2645 = vpop.f32.mrb[0].mxu0
    %v2646 = vadd.f32 %v2421, %v2645
    %v2647 = vpop.f32.mrb[0].mxu0
    %2648 = vmatprep.mubr.f32.mxu0 %v1976
    %2649 = vmatmul.mubr.f32.gmra.mrb[0].mxu0 %v322
    %v2650 = vpop.f32.mrb[0].mxu0
    %v2651 = vadd.f32 %v2426, %v2650
    %v2652 = vpop.f32.mrb[0].mxu0
    %2653 = vmatprep.mubr.f32.mxu0 %v1977
    %2654 = vmatmul.mubr.f32.gmra.mrb[0].mxu0 %v2060
    %v2655 = vpop.f32.mrb[0].mxu0
    %v2656 = vadd.f32 %v2431, %v2655
    %v2657 = vpop.f32.mrb[0].mxu0
    %2658 = vmatprep.mubr.f32.mxu0 %v1978
    %2659 = vmatmul.mubr.f32.gmra.mrb[0].mxu0 %v2061
    %v2660 = vpop.f32.mrb[0].mxu0
    %v2661 = vadd.f32 %v2436, %v2660
    %v2662 = vpop.f32.mrb[0].mxu0
    %2663 = vmatprep.mubr.f32.mxu0 %v1979
    %2664 = vmatmul.mubr.f32.gmra.mrb[0].mxu0 %v2062
    %v2665 = vpop.f32.mrb[0].mxu0
    %v2666 = vadd.f32 %v2441, %v2665
    %v2667 = vpop.f32.mrb[0].mxu0
    %2668 = vmatprep.mubr.f32.mxu0 %v1980
    %2669 = vmatmul.mubr.f32.gmra.mrb[0].mxu0 %v2063
    %v2670 = vpop.f32.mrb[0].mxu0
    %v2671 = vadd.f32 %v2446, %v2670
    %v2672 = vpop.f32.mrb[0].mxu0
    %2673 = vmatprep.mubr.f32.mxu0 %v1981
    %2674 = vmatmul.mubr.f32.gmra.mrb[0].mxu0 %v2064
    %v2675 = vpop.f32.mrb[0].mxu0
    %v2676 = vadd.f32 %v2451, %v2675
    %v2677 = vpop.f32.mrb[0].mxu0
    %2678 = vmatprep.mubr.f32.mxu0 %v1982
    %2679 = vmatmul.mubr.f32.gmra.mrb[0].mxu0 %v2065
    %v2680 = vpop.f32.mrb[0].mxu0
    %v2681 = vadd.f32 %v2456, %v2680
    %v2682 = vpop.f32.mrb[0].mxu0
    %2683 = vmatprep.mubr.f32.mxu0 %v2082
    %2684 = vmatmul.mubr.f32.gmra.mrb[0].mxu0 %v2066
    %v2685 = vpop.f32.mrb[0].mxu0
    %v2686 = vadd.f32 %v2461, %v2685
    %v2687 = vpop.f32.mrb[0].mxu0
    %2688 = vdwg.mxu0
    %2689 = vmatprep.subr.mxu0 0.0
    %2690 = vmatpush1.msra.mxu0 %v2159
    %2691 = vmatprep.subr.mxu0 0.0
    %2692 = vmatpush1.msra.mxu0 %v2160
    %2693 = vmatprep.subr.mxu0 0.0
    %2694 = vmatpush1.msra.mxu0 %v2161
    %2695 = vmatprep.subr.mxu0 0.0
    %2696 = vmatpush1.msra.mxu0 %v2162
    %2697 = vmatprep.subr.mxu0 0.0
    %2698 = vmatpush1.msra.mxu0 %v2163
    %2699 = vmatprep.subr.mxu0 0.0
    %2700 = vmatpush1.msra.mxu0 %v2164
    %2701 = vmatprep.subr.mxu0 0.0
    %2702 = vmatpush1.msra.mxu0 %v2165
    %2703 = vmatprep.subr.mxu0 0.0
    %2704 = vmatpush1.msra.mxu0 %v2166
    %2705 = vmatprep.subr.mxu0 0.0
    %2706 = vmatpush1.msra.mxu0 %v2167
    %2707 = vmatprep.subr.mxu0 0.0
    %2708 = vmatpush1.msra.mxu0 %v2168
    %2709 = vmatprep.subr.mxu0 0.0
    %2710 = vmatpush1.msra.mxu0 %v2169
    %2711 = vmatprep.subr.mxu0 0.0
    %2712 = vmatpush1.msra.mxu0 %v2170
    %2713 = vmatprep.subr.mxu0 0.0
    %2714 = vmatpush1.msra.mxu0 %v2171
    %2715 = vmatprep.subr.mxu0 0.0
    %2716 = vmatpush1.msra.mxu0 %v2172
    %2717 = vmatprep.subr.mxu0 0.0
    %2718 = vmatpush1.msra.mxu0 %v2173
    %2719 = vmatprep.subr.mxu0 0.0
    %2720 = vmatpush1.msra.mxu0 %v2174
    %2721 = vmatprep.subr.mxu0 0.0
    %2722 = vmatpush1.msra.mxu0 %v2175
    %2723 = vmatprep.subr.mxu0 0.0
    %2724 = vmatpush1.msra.mxu0 %v2176
    %2725 = vmatprep.subr.mxu0 0.0
    %2726 = vmatpush1.msra.mxu0 %v2177
    %2727 = vmatprep.subr.mxu0 0.0
    %2728 = vmatpush1.msra.mxu0 %v2178
    %2729 = vmatprep.subr.mxu0 0.0
    %2730 = vmatpush1.msra.mxu0 %v2179
    %2731 = vmatprep.subr.mxu0 0.0
    %2732 = vmatpush1.msra.mxu0 %v2180
    %2733 = vmatprep.subr.mxu0 0.0
    %2734 = vmatpush1.msra.mxu0 %v2181
    %2735 = vmatprep.subr.mxu0 0.0
    %2736 = vmatpush1.msra.mxu0 %v2182
    %2737 = vmatprep.subr.mxu0 0.0
    %2738 = vmatpush1.msra.mxu0 %v2183
    %2739 = vmatprep.subr.mxu0 0.0
    %2740 = vmatpush1.msra.mxu0 %v2184
    %2741 = vmatprep.subr.mxu0 0.0
    %2742 = vmatpush1.msra.mxu0 %v2185
    %2743 = vmatprep.subr.mxu0 0.0
    %2744 = vmatpush1.msra.mxu0 %v2186
    %2745 = vmatprep.subr.mxu0 0.0
    %2746 = vmatpush1.msra.mxu0 %v2187
    %2747 = vmatprep.subr.mxu0 0.0
    %2748 = vmatpush1.msra.mxu0 %v2188
    %2749 = vmatprep.subr.mxu0 0.0
    %2750 = vmatpush1.msra.mxu0 %v2189
    %2751 = vmatprep.subr.mxu0 0.0
    %2752 = vmatpush1.msra.mxu0 %v2190
    %2753 = vmatprep.mubr.f32.mxu0 %v2039
    %2754 = vmatmul.mubr.f32.gmra.mrb[0].mxu0 %v1839
    %v2755 = vpop.f32.mrb[0].mxu0
    %v2756 = vadd.f32 %v2531, %v2755
    %v2757 = vpop.f32.mrb[0].mxu0
    %2758 = vmatprep.mubr.f32.mxu0 %v2040
    %2759 = vmatmul.mubr.f32.gmra.mrb[0].mxu0 %v1840
    %v2760 = vpop.f32.mrb[0].mxu0
    %v2761 = vadd.f32 %v2536, %v2760
    %v2762 = vpop.f32.mrb[0].mxu0
    %2763 = vmatprep.mubr.f32.mxu0 %v2041
    %2764 = vmatmul.mubr.f32.gmra.mrb[0].mxu0 %v1841
    %v2765 = vpop.f32.mrb[0].mxu0
    %v2766 = vadd.f32 %v2541, %v2765
    %v2767 = vpop.f32.mrb[0].mxu0
    %2768 = vmatprep.mubr.f32.mxu0 %v2042
    %2769 = vmatmul.mubr.f32.gmra.mrb[0].mxu0 %v1842
    %v2770 = vpop.f32.mrb[0].mxu0
    %v2771 = vadd.f32 %v2546, %v2770
    %v2772 = vpop.f32.mrb[0].mxu0
    %2773 = vmatprep.mubr.f32.mxu0 %v2043
    %2774 = vmatmul.mubr.f32.gmra.mrb[0].mxu0 %v1843
    %v2775 = vpop.f32.mrb[0].mxu0
    %v2776 = vadd.f32 %v2551, %v2775
    %v2777 = vpop.f32.mrb[0].mxu0
    %2778 = vmatprep.mubr.f32.mxu0 %v2044
    %2779 = vmatmul.mubr.f32.gmra.mrb[0].mxu0 %v1844
    %v2780 = vpop.f32.mrb[0].mxu0
    %v2781 = vadd.f32 %v2556, %v2780
    %v2782 = vpop.f32.mrb[0].mxu0
    %2783 = vmatprep.mubr.f32.mxu0 %v2045
    %2784 = vmatmul.mubr.f32.gmra.mrb[0].mxu0 %v1845
    %v2785 = vpop.f32.mrb[0].mxu0
    %v2786 = vadd.f32 %v2561, %v2785
    %v2787 = vpop.f32.mrb[0].mxu0
    %2788 = vmatprep.mubr.f32.mxu0 %v2091
    %2789 = vmatmul.mubr.f32.gmra.mrb[0].mxu0 %v1846
    %v2790 = vpop.f32.mrb[0].mxu0
    %v2791 = vadd.f32 %v2566, %v2790
    %v2792 = vpop.f32.mrb[0].mxu0
    %2793 = vmatprep.mubr.f32.mxu0 %v2046
    %2794 = vmatmul.mubr.f32.gmra.mrb[0].mxu0 %v1847
    %v2795 = vpop.f32.mrb[0].mxu0
    %v2796 = vadd.f32 %v2571, %v2795
    %v2797 = vpop.f32.mrb[0].mxu0
    %2798 = vmatprep.mubr.f32.mxu0 %v2047
    %2799 = vmatmul.mubr.f32.gmra.mrb[0].mxu0 %v1848
    %v2800 = vpop.f32.mrb[0].mxu0
    %v2801 = vadd.f32 %v2576, %v2800
    %v2802 = vpop.f32.mrb[0].mxu0
    %2803 = vmatprep.mubr.f32.mxu0 %v2048
    %2804 = vmatmul.mubr.f32.gmra.mrb[0].mxu0 %v1849
    %v2805 = vpop.f32.mrb[0].mxu0
    %v2806 = vadd.f32 %v2581, %v2805
    %v2807 = vpop.f32.mrb[0].mxu0
    %2808 = vmatprep.mubr.f32.mxu0 %v2049
    %2809 = vmatmul.mubr.f32.gmra.mrb[0].mxu0 %v1850
    %v2810 = vpop.f32.mrb[0].mxu0
    %v2811 = vadd.f32 %v2586, %v2810
    %v2812 = vpop.f32.mrb[0].mxu0
    %2813 = vmatprep.mubr.f32.mxu0 %v2050
    %2814 = vmatmul.mubr.f32.gmra.mrb[0].mxu0 %v1851
    %v2815 = vpop.f32.mrb[0].mxu0
    %v2816 = vadd.f32 %v2591, %v2815
    %v2817 = vpop.f32.mrb[0].mxu0
    %2818 = vmatprep.mubr.f32.mxu0 %v2051
    %2819 = vmatmul.mubr.f32.gmra.mrb[0].mxu0 %v1852
    %v2820 = vpop.f32.mrb[0].mxu0
    %v2821 = vadd.f32 %v2596, %v2820
    %v2822 = vpop.f32.mrb[0].mxu0
    %2823 = vmatprep.mubr.f32.mxu0 %v2052
    %2824 = vmatmul.mubr.f32.gmra.mrb[0].mxu0 %v1853
    %v2825 = vpop.f32.mrb[0].mxu0
    %v2826 = vadd.f32 %v2601, %v2825
    %v2827 = vpop.f32.mrb[0].mxu0
    %2828 = vmatprep.mubr.f32.mxu0 %v2092
    %2829 = vmatmul.mubr.f32.gmra.mrb[0].mxu0 %v1854
    %v2830 = vpop.f32.mrb[0].mxu0
    %v2831 = vadd.f32 %v2606, %v2830
    %v2832 = vpop.f32.mrb[0].mxu0
    %2833 = vmatprep.mubr.f32.mxu0 %v2053
    %2834 = vmatmul.mubr.f32.gmra.mrb[0].mxu0 %v1855
    %v2835 = vpop.f32.mrb[0].mxu0
    %v2836 = vadd.f32 %v2611, %v2835
    %v2837 = vpop.f32.mrb[0].mxu0
    %2838 = vmatprep.mubr.f32.mxu0 %v2054
    %2839 = vmatmul.mubr.f32.gmra.mrb[0].mxu0 %v1856
    %v2840 = vpop.f32.mrb[0].mxu0
    %v2841 = vadd.f32 %v2616, %v2840
    %v2842 = vpop.f32.mrb[0].mxu0
    %2843 = vmatprep.mubr.f32.mxu0 %v2055
    %2844 = vmatmul.mubr.f32.gmra.mrb[0].mxu0 %v1857
    %v2845 = vpop.f32.mrb[0].mxu0
    %v2846 = vadd.f32 %v2621, %v2845
    %v2847 = vpop.f32.mrb[0].mxu0
    %2848 = vmatprep.mubr.f32.mxu0 %v2056
    %2849 = vmatmul.mubr.f32.gmra.mrb[0].mxu0 %v1858
    %v2850 = vpop.f32.mrb[0].mxu0
    %v2851 = vadd.f32 %v2626, %v2850
    %v2852 = vpop.f32.mrb[0].mxu0
    %2853 = vmatprep.mubr.f32.mxu0 %v2057
    %2854 = vmatmul.mubr.f32.gmra.mrb[0].mxu0 %v1859
    %v2855 = vpop.f32.mrb[0].mxu0
    %v2856 = vadd.f32 %v2631, %v2855
    %v2857 = vpop.f32.mrb[0].mxu0
    %2858 = vmatprep.mubr.f32.mxu0 %v2058
    %2859 = vmatmul.mubr.f32.gmra.mrb[0].mxu0 %v1860
    %v2860 = vpop.f32.mrb[0].mxu0
    %v2861 = vadd.f32 %v2636, %v2860
    %v2862 = vpop.f32.mrb[0].mxu0
    %2863 = vmatprep.mubr.f32.mxu0 %v2059
    %2864 = vmatmul.mubr.f32.gmra.mrb[0].mxu0 %v1861
    %v2865 = vpop.f32.mrb[0].mxu0
    %v2866 = vadd.f32 %v2641, %v2865
    %v2867 = vpop.f32.mrb[0].mxu0
    %2868 = vmatprep.mubr.f32.mxu0 %v2093
    %2869 = vmatmul.mubr.f32.gmra.mrb[0].mxu0 %v1862
    %v2870 = vpop.f32.mrb[0].mxu0
    %v2871 = vadd.f32 %v2646, %v2870
    %v2872 = vpop.f32.mrb[0].mxu0
    %2873 = vmatprep.mubr.f32.mxu0 %v2060
    %2874 = vmatmul.mubr.f32.gmra.mrb[0].mxu0 %v1863
    %v2875 = vpop.f32.mrb[0].mxu0
    %v2876 = vadd.f32 %v2651, %v2875
    %v2877 = vpop.f32.mrb[0].mxu0
    %2878 = vmatprep.mubr.f32.mxu0 %v2061
    %2879 = vmatmul.mubr.f32.gmra.mrb[0].mxu0 %v1864
    %v2880 = vpop.f32.mrb[0].mxu0
    %v2881 = vadd.f32 %v2656, %v2880
    %v2882 = vpop.f32.mrb[0].mxu0
    %2883 = vmatprep.mubr.f32.mxu0 %v2062
    %2884 = vmatmul.mubr.f32.gmra.mrb[0].mxu0 %v1865
    %v2885 = vpop.f32.mrb[0].mxu0
    %v2886 = vadd.f32 %v2661, %v2885
    %v2887 = vpop.f32.mrb[0].mxu0
    %2888 = vmatprep.mubr.f32.mxu0 %v2063
    %2889 = vmatmul.mubr.f32.gmra.mrb[0].mxu0 %v1866
    %v2890 = vpop.f32.mrb[0].mxu0
    %v2891 = vadd.f32 %v2666, %v2890
    %v2892 = vpop.f32.mrb[0].mxu0
    %2893 = vmatprep.mubr.f32.mxu0 %v2064
    %2894 = vmatmul.mubr.f32.gmra.mrb[0].mxu0 %v1867
    %v2895 = vpop.f32.mrb[0].mxu0
    %v2896 = vadd.f32 %v2671, %v2895
    %v2897 = vpop.f32.mrb[0].mxu0
    %2898 = vmatprep.mubr.f32.mxu0 %v2065
    %2899 = vmatmul.mubr.f32.gmra.mrb[0].mxu0 %v1868
    %v2900 = vpop.f32.mrb[0].mxu0
    %v2901 = vadd.f32 %v2676, %v2900
    %v2902 = vpop.f32.mrb[0].mxu0
    %2903 = vmatprep.mubr.f32.mxu0 %v2066
    %2904 = vmatmul.mubr.f32.gmra.mrb[0].mxu0 %v1869
    %v2905 = vpop.f32.mrb[0].mxu0
    %v2906 = vadd.f32 %v2681, %v2905
    %v2907 = vpop.f32.mrb[0].mxu0
    %2908 = vmatprep.mubr.f32.mxu0 %v2094
    %2909 = vmatmul.mubr.f32.gmra.mrb[0].mxu0 %v1870
    %v2910 = vpop.f32.mrb[0].mxu0
    %v2911 = vadd.f32 %v2686, %v2910
    %v2912 = vpop.f32.mrb[0].mxu0
    %2913 = vdwg.mxu0
    %2914 = vmatprep.subr.mxu0 0.0
    %2915 = vmatpush1.msra.mxu0 %v2191
    %2916 = vmatprep.subr.mxu0 0.0
    %2917 = vmatpush1.msra.mxu0 %v2192
    %2918 = vmatprep.subr.mxu0 0.0
    %2919 = vmatpush1.msra.mxu0 %v2193
    %2920 = vmatprep.subr.mxu0 0.0
    %2921 = vmatpush1.msra.mxu0 %v2194
    %2922 = vmatprep.subr.mxu0 0.0
    %2923 = vmatpush1.msra.mxu0 %v2195
    %2924 = vmatprep.subr.mxu0 0.0
    %2925 = vmatpush1.msra.mxu0 %v2196
    %2926 = vmatprep.subr.mxu0 0.0
    %2927 = vmatpush1.msra.mxu0 %v2197
    %2928 = vmatprep.subr.mxu0 0.0
    %2929 = vmatpush1.msra.mxu0 %v2198
    %2930 = vmatprep.subr.mxu0 0.0
    %2931 = vmatpush1.msra.mxu0 %v2199
    %2932 = vmatprep.subr.mxu0 0.0
    %2933 = vmatpush1.msra.mxu0 %v2200
    %2934 = vmatprep.subr.mxu0 0.0
    %2935 = vmatpush1.msra.mxu0 %v2201
    %2936 = vmatprep.subr.mxu0 0.0
    %2937 = vmatpush1.msra.mxu0 %v2202
    %2938 = vmatprep.subr.mxu0 0.0
    %2939 = vmatpush1.msra.mxu0 %v2203
    %2940 = vmatprep.subr.mxu0 0.0
    %2941 = vmatpush1.msra.mxu0 %v2204
    %2942 = vmatprep.subr.mxu0 0.0
    %2943 = vmatpush1.msra.mxu0 %v2205
    %2944 = vmatprep.subr.mxu0 0.0
    %2945 = vmatpush1.msra.mxu0 %v2206
    %2946 = vmatprep.subr.mxu0 0.0
    %2947 = vmatpush1.msra.mxu0 %v2207
    %2948 = vmatprep.subr.mxu0 0.0
    %2949 = vmatpush1.msra.mxu0 %v2208
    %2950 = vmatprep.subr.mxu0 0.0
    %2951 = vmatpush1.msra.mxu0 %v2209
    %2952 = vmatprep.subr.mxu0 0.0
    %2953 = vmatpush1.msra.mxu0 %v2210
    %2954 = vmatprep.subr.mxu0 0.0
    %2955 = vmatpush1.msra.mxu0 %v2211
    %2956 = vmatprep.subr.mxu0 0.0
    %2957 = vmatpush1.msra.mxu0 %v2212
    %2958 = vmatprep.subr.mxu0 0.0
    %2959 = vmatpush1.msra.mxu0 %v2213
    %2960 = vmatprep.subr.mxu0 0.0
    %2961 = vmatpush1.msra.mxu0 %v2214
    %2962 = vmatprep.subr.mxu0 0.0
    %2963 = vmatpush1.msra.mxu0 %v2215
    %2964 = vmatprep.subr.mxu0 0.0
    %2965 = vmatpush1.msra.mxu0 %v2216
    %2966 = vmatprep.subr.mxu0 0.0
    %2967 = vmatpush1.msra.mxu0 %v2217
    %2968 = vmatprep.subr.mxu0 0.0
    %2969 = vmatpush1.msra.mxu0 %v2218
    %2970 = vmatprep.subr.mxu0 0.0
    %2971 = vmatpush1.msra.mxu0 %v2219
    %2972 = vmatprep.subr.mxu0 0.0
    %2973 = vmatpush1.msra.mxu0 %v2220
    %2974 = vmatprep.subr.mxu0 0.0
    %2975 = vmatpush1.msra.mxu0 %v2221
    %2976 = vmatprep.subr.mxu0 0.0
    %2977 = vmatpush1.msra.mxu0 %v2222
    %2978 = vmatprep.mubr.f32.mxu0 %v1840
    %2979 = vmatmul.mubr.f32.gmra.mrb[0].mxu0 %v1956
    %v2980 = vpop.f32.mrb[0].mxu0
    %v2981 = vadd.f32 %v2756, %v2980
    %v2982 = vpop.f32.mrb[0].mxu0
    %2983 = vmatprep.mubr.f32.mxu0 %v1841
    %2984 = vmatmul.mubr.f32.gmra.mrb[0].mxu0 %v1957
    %v2985 = vpop.f32.mrb[0].mxu0
    %v2986 = vadd.f32 %v2761, %v2985
    %v2987 = vpop.f32.mrb[0].mxu0
    %2988 = vmatprep.mubr.f32.mxu0 %v1842
    %2989 = vmatmul.mubr.f32.gmra.mrb[0].mxu0 %v1958
    %v2990 = vpop.f32.mrb[0].mxu0
    %v2991 = vadd.f32 %v2766, %v2990
    %v2992 = vpop.f32.mrb[0].mxu0
    %2993 = vmatprep.mubr.f32.mxu0 %v1843
    %2994 = vmatmul.mubr.f32.gmra.mrb[0].mxu0 %v1959
    %v2995 = vpop.f32.mrb[0].mxu0
    %v2996 = vadd.f32 %v2771, %v2995
    %v2997 = vpop.f32.mrb[0].mxu0
    %2998 = vmatprep.mubr.f32.mxu0 %v1844
    %2999 = vmatmul.mubr.f32.gmra.mrb[0].mxu0 %v1960
    %v3000 = vpop.f32.mrb[0].mxu0
    %v3001 = vadd.f32 %v2776, %v3000
    %v3002 = vpop.f32.mrb[0].mxu0
    %3003 = vmatprep.mubr.f32.mxu0 %v1845
    %3004 = vmatmul.mubr.f32.gmra.mrb[0].mxu0 %v1961
    %v3005 = vpop.f32.mrb[0].mxu0
    %v3006 = vadd.f32 %v2781, %v3005
    %v3007 = vpop.f32.mrb[0].mxu0
    %3008 = vmatprep.mubr.f32.mxu0 %v1846
    %3009 = vmatmul.mubr.f32.gmra.mrb[0].mxu0 %v2079
    %v3010 = vpop.f32.mrb[0].mxu0
    %v3011 = vadd.f32 %v2786, %v3010
    %v3012 = vpop.f32.mrb[0].mxu0
    %3013 = vmatprep.mubr.f32.mxu0 0.0
    %3014 = vmatmul.mubr.f32.gmra.mrb[0].mxu0 %v234
    %v3015 = vpop.f32.mrb[0].mxu0
    %v3016 = vadd.f32 %v2791, %v3015
    %v3017 = vpop.f32.mrb[0].mxu0
    %3018 = vmatprep.mubr.f32.mxu0 %v1848
    %3019 = vmatmul.mubr.f32.gmra.mrb[0].mxu0 %v1963
    %v3020 = vpop.f32.mrb[0].mxu0
    %v3021 = vadd.f32 %v2796, %v3020
    %v3022 = vpop.f32.mrb[0].mxu0
    %3023 = vmatprep.mubr.f32.mxu0 %v1849
    %3024 = vmatmul.mubr.f32.gmra.mrb[0].mxu0 %v1964
    %v3025 = vpop.f32.mrb[0].mxu0
    %v3026 = vadd.f32 %v2801, %v3025
    %v3027 = vpop.f32.mrb[0].mxu0
    %3028 = vmatprep.mubr.f32.mxu0 %v1850
    %3029 = vmatmul.mubr.f32.gmra.mrb[0].mxu0 %v1965
    %v3030 = vpop.f32.mrb[0].mxu0
    %v3031 = vadd.f32 %v2806, %v3030
    %v3032 = vpop.f32.mrb[0].mxu0
    %3033 = vmatprep.mubr.f32.mxu0 %v1851
    %3034 = vmatmul.mubr.f32.gmra.mrb[0].mxu0 %v1966
    %v3035 = vpop.f32.mrb[0].mxu0
    %v3036 = vadd.f32 %v2811, %v3035
    %v3037 = vpop.f32.mrb[0].mxu0
    %3038 = vmatprep.mubr.f32.mxu0 %v1852
    %3039 = vmatmul.mubr.f32.gmra.mrb[0].mxu0 %v1967
    %v3040 = vpop.f32.mrb[0].mxu0
    %v3041 = vadd.f32 %v2816, %v3040
    %v3042 = vpop.f32.mrb[0].mxu0
    %3043 = vmatprep.mubr.f32.mxu0 %v1853
    %3044 = vmatmul.mubr.f32.gmra.mrb[0].mxu0 %v1968
    %v3045 = vpop.f32.mrb[0].mxu0
    %v3046 = vadd.f32 %v2821, %v3045
    %v3047 = vpop.f32.mrb[0].mxu0
    %3048 = vmatprep.mubr.f32.mxu0 %v1854
    %3049 = vmatmul.mubr.f32.gmra.mrb[0].mxu0 %v2080
    %v3050 = vpop.f32.mrb[0].mxu0
    %v3051 = vadd.f32 %v2826, %v3050
    %v3052 = vpop.f32.mrb[0].mxu0
    %3053 = vmatprep.mubr.f32.mxu0 0.0
    %3054 = vmatmul.mubr.f32.gmra.mrb[0].mxu0 %v234
    %v3055 = vpop.f32.mrb[0].mxu0
    %v3056 = vadd.f32 %v2831, %v3055
    %v3057 = vpop.f32.mrb[0].mxu0
    %3058 = vmatprep.mubr.f32.mxu0 %v1856
    %3059 = vmatmul.mubr.f32.gmra.mrb[0].mxu0 %v1970
    %v3060 = vpop.f32.mrb[0].mxu0
    %v3061 = vadd.f32 %v2836, %v3060
    %v3062 = vpop.f32.mrb[0].mxu0
    %3063 = vmatprep.mubr.f32.mxu0 %v1857
    %3064 = vmatmul.mubr.f32.gmra.mrb[0].mxu0 %v1971
    %v3065 = vpop.f32.mrb[0].mxu0
    %v3066 = vadd.f32 %v2841, %v3065
    %v3067 = vpop.f32.mrb[0].mxu0
    %3068 = vmatprep.mubr.f32.mxu0 %v1858
    %3069 = vmatmul.mubr.f32.gmra.mrb[0].mxu0 %v1972
    %v3070 = vpop.f32.mrb[0].mxu0
    %v3071 = vadd.f32 %v2846, %v3070
    %v3072 = vpop.f32.mrb[0].mxu0
    %3073 = vmatprep.mubr.f32.mxu0 %v1859
    %3074 = vmatmul.mubr.f32.gmra.mrb[0].mxu0 %v1973
    %v3075 = vpop.f32.mrb[0].mxu0
    %v3076 = vadd.f32 %v2851, %v3075
    %v3077 = vpop.f32.mrb[0].mxu0
    %3078 = vmatprep.mubr.f32.mxu0 %v1860
    %3079 = vmatmul.mubr.f32.gmra.mrb[0].mxu0 %v1974
    %v3080 = vpop.f32.mrb[0].mxu0
    %v3081 = vadd.f32 %v2856, %v3080
    %v3082 = vpop.f32.mrb[0].mxu0
    %3083 = vmatprep.mubr.f32.mxu0 %v1861
    %3084 = vmatmul.mubr.f32.gmra.mrb[0].mxu0 %v1975
    %v3085 = vpop.f32.mrb[0].mxu0
    %v3086 = vadd.f32 %v2861, %v3085
    %v3087 = vpop.f32.mrb[0].mxu0
    %3088 = vmatprep.mubr.f32.mxu0 %v1862
    %3089 = vmatmul.mubr.f32.gmra.mrb[0].mxu0 %v2081
    %v3090 = vpop.f32.mrb[0].mxu0
    %v3091 = vadd.f32 %v2866, %v3090
    %v3092 = vpop.f32.mrb[0].mxu0
    %3093 = vmatprep.mubr.f32.mxu0 0.0
    %3094 = vmatmul.mubr.f32.gmra.mrb[0].mxu0 %v234
    %v3095 = vpop.f32.mrb[0].mxu0
    %v3096 = vadd.f32 %v2871, %v3095
    %v3097 = vpop.f32.mrb[0].mxu0
    %3098 = vmatprep.mubr.f32.mxu0 %v1864
    %3099 = vmatmul.mubr.f32.gmra.mrb[0].mxu0 %v1977
    %v3100 = vpop.f32.mrb[0].mxu0
    %v3101 = vadd.f32 %v2876, %v3100
    %v3102 = vpop.f32.mrb[0].mxu0
    %3103 = vmatprep.mubr.f32.mxu0 %v1865
    %3104 = vmatmul.mubr.f32.gmra.mrb[0].mxu0 %v1978
    %v3105 = vpop.f32.mrb[0].mxu0
    %v3106 = vadd.f32 %v2881, %v3105
    %v3107 = vpop.f32.mrb[0].mxu0
    %3108 = vmatprep.mubr.f32.mxu0 %v1866
    %3109 = vmatmul.mubr.f32.gmra.mrb[0].mxu0 %v1979
    %v3110 = vpop.f32.mrb[0].mxu0
    %v3111 = vadd.f32 %v2886, %v3110
    %v3112 = vpop.f32.mrb[0].mxu0
    %3113 = vmatprep.mubr.f32.mxu0 %v1867
    %3114 = vmatmul.mubr.f32.gmra.mrb[0].mxu0 %v1980
    %v3115 = vpop.f32.mrb[0].mxu0
    %v3116 = vadd.f32 %v2891, %v3115
    %v3117 = vpop.f32.mrb[0].mxu0
    %3118 = vmatprep.mubr.f32.mxu0 %v1868
    %3119 = vmatmul.mubr.f32.gmra.mrb[0].mxu0 %v1981
    %v3120 = vpop.f32.mrb[0].mxu0
    %v3121 = vadd.f32 %v2896, %v3120
    %v3122 = vpop.f32.mrb[0].mxu0
    %3123 = vmatprep.mubr.f32.mxu0 %v1869
    %3124 = vmatmul.mubr.f32.gmra.mrb[0].mxu0 %v1982
    %v3125 = vpop.f32.mrb[0].mxu0
    %v3126 = vadd.f32 %v2901, %v3125
    %v3127 = vpop.f32.mrb[0].mxu0
    %3128 = vmatprep.mubr.f32.mxu0 %v1870
    %3129 = vmatmul.mubr.f32.gmra.mrb[0].mxu0 %v2082
    %v3130 = vpop.f32.mrb[0].mxu0
    %v3131 = vadd.f32 %v2906, %v3130
    %v3132 = vpop.f32.mrb[0].mxu0
    %3133 = vmatprep.mubr.f32.mxu0 0.0
    %3134 = vmatmul.mubr.f32.gmra.mrb[0].mxu0 %v234
    %v3135 = vpop.f32.mrb[0].mxu0
    %v3136 = vadd.f32 %v2911, %v3135
    %v3137 = vpop.f32.mrb[0].mxu0
    %3138 = vdwg.mxu0
    %3139 = vmatprep.subr.mxu0 0.0
    %3140 = vmatpush1.msra.mxu0 %v2223
    %3141 = vmatprep.subr.mxu0 0.0
    %3142 = vmatpush1.msra.mxu0 %v2224
    %3143 = vmatprep.subr.mxu0 0.0
    %3144 = vmatpush1.msra.mxu0 %v2225
    %3145 = vmatprep.subr.mxu0 0.0
    %3146 = vmatpush1.msra.mxu0 %v2226
    %3147 = vmatprep.subr.mxu0 0.0
    %3148 = vmatpush1.msra.mxu0 %v2227
    %3149 = vmatprep.subr.mxu0 0.0
    %3150 = vmatpush1.msra.mxu0 %v2228
    %3151 = vmatprep.subr.mxu0 0.0
    %3152 = vmatpush1.msra.mxu0 %v2229
    %3153 = vmatprep.subr.mxu0 0.0
    %3154 = vmatpush1.msra.mxu0 %v2230
    %3155 = vmatprep.subr.mxu0 0.0
    %3156 = vmatpush1.msra.mxu0 %v2231
    %3157 = vmatprep.subr.mxu0 0.0
    %3158 = vmatpush1.msra.mxu0 %v2232
    %3159 = vmatprep.subr.mxu0 0.0
    %3160 = vmatpush1.msra.mxu0 %v2233
    %3161 = vmatprep.subr.mxu0 0.0
    %3162 = vmatpush1.msra.mxu0 %v2234
    %3163 = vmatprep.subr.mxu0 0.0
    %3164 = vmatpush1.msra.mxu0 %v2235
    %3165 = vmatprep.subr.mxu0 0.0
    %3166 = vmatpush1.msra.mxu0 %v2236
    %3167 = vmatprep.subr.mxu0 0.0
    %3168 = vmatpush1.msra.mxu0 %v2237
    %3169 = vmatprep.subr.mxu0 0.0
    %3170 = vmatpush1.msra.mxu0 %v2238
    %3171 = vmatprep.subr.mxu0 0.0
    %3172 = vmatpush1.msra.mxu0 0.0
    %3173 = vmatprep.subr.mxu0 0.0
    %3174 = vmatpush1.msra.mxu0 0.0
    %3175 = vmatprep.subr.mxu0 0.0
    %3176 = vmatpush1.msra.mxu0 0.0
    %3177 = vmatprep.subr.mxu0 0.0
    %3178 = vmatpush1.msra.mxu0 0.0
    %3179 = vmatprep.subr.mxu0 0.0
    %3180 = vmatpush1.msra.mxu0 0.0
    %3181 = vmatprep.subr.mxu0 0.0
    %3182 = vmatpush1.msra.mxu0 0.0
    %3183 = vmatprep.subr.mxu0 0.0
    %3184 = vmatpush1.msra.mxu0 0.0
    %3185 = vmatprep.subr.mxu0 0.0
    %3186 = vmatpush1.msra.mxu0 0.0
    %3187 = vmatprep.subr.mxu0 0.0
    %3188 = vmatpush1.msra.mxu0 0.0
    %3189 = vmatprep.subr.mxu0 0.0
    %3190 = vmatpush1.msra.mxu0 0.0
    %3191 = vmatprep.subr.mxu0 0.0
    %3192 = vmatpush1.msra.mxu0 0.0
    %3193 = vmatprep.subr.mxu0 0.0
    %3194 = vmatpush1.msra.mxu0 0.0
    %3195 = vmatprep.subr.mxu0 0.0
    %3196 = vmatpush1.msra.mxu0 0.0
    %3197 = vmatprep.subr.mxu0 0.0
    %3198 = vmatpush1.msra.mxu0 0.0
    %3199 = vmatprep.subr.mxu0 0.0
    %3200 = vmatpush1.msra.mxu0 0.0
    %3201 = vmatprep.subr.mxu0 0.0
    %3202 = vmatpush1.msra.mxu0 0.0
    %3203 = vmatprep.mubr.f32.mxu0 0.0
    %3204 = vmatmul.mubr.f32.gmra.mrb[0].mxu0 %v2040
    %v3205 = vpop.f32.mrb[0].mxu0
    %v3206 = vadd.f32 %v2981, %v3205
    %v3207 = vpop.f32.mrb[0].mxu0
    %3208 = vmatprep.mubr.f32.mxu0 0.0
    %3209 = vmatmul.mubr.f32.gmra.mrb[0].mxu0 %v2041
    %v3210 = vpop.f32.mrb[0].mxu0
    %v3211 = vadd.f32 %v2986, %v3210
    %v3212 = vpop.f32.mrb[0].mxu0
    %3213 = vmatprep.mubr.f32.mxu0 0.0
    %3214 = vmatmul.mubr.f32.gmra.mrb[0].mxu0 %v2042
    %v3215 = vpop.f32.mrb[0].mxu0
    %v3216 = vadd.f32 %v2991, %v3215
    %v3217 = vpop.f32.mrb[0].mxu0
    %3218 = vmatprep.mubr.f32.mxu0 0.0
    %3219 = vmatmul.mubr.f32.gmra.mrb[0].mxu0 %v2043
    %v3220 = vpop.f32.mrb[0].mxu0
    %v3221 = vadd.f32 %v2996, %v3220
    %v3222 = vpop.f32.mrb[0].mxu0
    %3223 = vmatprep.mubr.f32.mxu0 0.0
    %3224 = vmatmul.mubr.f32.gmra.mrb[0].mxu0 %v2044
    %v3225 = vpop.f32.mrb[0].mxu0
    %v3226 = vadd.f32 %v3001, %v3225
    %v3227 = vpop.f32.mrb[0].mxu0
    %3228 = vmatprep.mubr.f32.mxu0 0.0
    %3229 = vmatmul.mubr.f32.gmra.mrb[0].mxu0 %v2045
    %v3230 = vpop.f32.mrb[0].mxu0
    %v3231 = vadd.f32 %v3006, %v3230
    %v3232 = vpop.f32.mrb[0].mxu0
    %3233 = vmatprep.mubr.f32.mxu0 0.0
    %3234 = vmatmul.mubr.f32.gmra.mrb[0].mxu0 %v2091
    %v3235 = vpop.f32.mrb[0].mxu0
    %v3236 = vadd.f32 %v3011, %v3235
    %v3237 = vpop.f32.mrb[0].mxu0
    %3238 = vmatprep.mubr.f32.mxu0 0.0
    %3239 = vmatmul.mubr.f32.gmra.mrb[0].mxu0 %v322
    %v3240 = vpop.f32.mrb[0].mxu0
    %v3241 = vadd.f32 %v3016, %v3240
    %v3242 = vpop.f32.mrb[0].mxu0
    %3243 = vmatprep.mubr.f32.mxu0 0.0
    %3244 = vmatmul.mubr.f32.gmra.mrb[0].mxu0 %v2047
    %v3245 = vpop.f32.mrb[0].mxu0
    %v3246 = vadd.f32 %v3021, %v3245
    %v3247 = vpop.f32.mrb[0].mxu0
    %3248 = vmatprep.mubr.f32.mxu0 0.0
    %3249 = vmatmul.mubr.f32.gmra.mrb[0].mxu0 %v2048
    %v3250 = vpop.f32.mrb[0].mxu0
    %v3251 = vadd.f32 %v3026, %v3250
    %v3252 = vpop.f32.mrb[0].mxu0
    %3253 = vmatprep.mubr.f32.mxu0 0.0
    %3254 = vmatmul.mubr.f32.gmra.mrb[0].mxu0 %v2049
    %v3255 = vpop.f32.mrb[0].mxu0
    %v3256 = vadd.f32 %v3031, %v3255
    %v3257 = vpop.f32.mrb[0].mxu0
    %3258 = vmatprep.mubr.f32.mxu0 0.0
    %3259 = vmatmul.mubr.f32.gmra.mrb[0].mxu0 %v2050
    %v3260 = vpop.f32.mrb[0].mxu0
    %v3261 = vadd.f32 %v3036, %v3260
    %v3262 = vpop.f32.mrb[0].mxu0
    %3263 = vmatprep.mubr.f32.mxu0 0.0
    %3264 = vmatmul.mubr.f32.gmra.mrb[0].mxu0 %v2051
    %v3265 = vpop.f32.mrb[0].mxu0
    %v3266 = vadd.f32 %v3041, %v3265
    %v3267 = vpop.f32.mrb[0].mxu0
    %3268 = vmatprep.mubr.f32.mxu0 0.0
    %3269 = vmatmul.mubr.f32.gmra.mrb[0].mxu0 %v2052
    %v3270 = vpop.f32.mrb[0].mxu0
    %v3271 = vadd.f32 %v3046, %v3270
    %v3272 = vpop.f32.mrb[0].mxu0
    %3273 = vmatprep.mubr.f32.mxu0 0.0
    %3274 = vmatmul.mubr.f32.gmra.mrb[0].mxu0 %v2092
    %v3275 = vpop.f32.mrb[0].mxu0
    %v3276 = vadd.f32 %v3051, %v3275
    %v3277 = vpop.f32.mrb[0].mxu0
    %3278 = vmatprep.mubr.f32.mxu0 0.0
    %3279 = vmatmul.mubr.f32.gmra.mrb[0].mxu0 %v322
    %v3280 = vpop.f32.mrb[0].mxu0
    %v3281 = vadd.f32 %v3056, %v3280
    %v3282 = vpop.f32.mrb[0].mxu0
    %3283 = vmatprep.mubr.f32.mxu0 0.0
    %3284 = vmatmul.mubr.f32.gmra.mrb[0].mxu0 %v2054
    %v3285 = vpop.f32.mrb[0].mxu0
    %v3286 = vadd.f32 %v3061, %v3285
    %v3287 = vpop.f32.mrb[0].mxu0
    %3288 = vmatprep.mubr.f32.mxu0 0.0
    %3289 = vmatmul.mubr.f32.gmra.mrb[0].mxu0 %v2055
    %v3290 = vpop.f32.mrb[0].mxu0
    %v3291 = vadd.f32 %v3066, %v3290
    %v3292 = vpop.f32.mrb[0].mxu0
    %3293 = vmatprep.mubr.f32.mxu0 0.0
    %3294 = vmatmul.mubr.f32.gmra.mrb[0].mxu0 %v2056
    %v3295 = vpop.f32.mrb[0].mxu0
    %v3296 = vadd.f32 %v3071, %v3295
    %v3297 = vpop.f32.mrb[0].mxu0
    %3298 = vmatprep.mubr.f32.mxu0 0.0
    %3299 = vmatmul.mubr.f32.gmra.mrb[0].mxu0 %v2057
    %v3300 = vpop.f32.mrb[0].mxu0
    %v3301 = vadd.f32 %v3076, %v3300
    %v3302 = vpop.f32.mrb[0].mxu0
    %3303 = vmatprep.mubr.f32.mxu0 0.0
    %3304 = vmatmul.mubr.f32.gmra.mrb[0].mxu0 %v2058
    %v3305 = vpop.f32.mrb[0].mxu0
    %v3306 = vadd.f32 %v3081, %v3305
    %v3307 = vpop.f32.mrb[0].mxu0
    %3308 = vmatprep.mubr.f32.mxu0 0.0
    %3309 = vmatmul.mubr.f32.gmra.mrb[0].mxu0 %v2059
    %v3310 = vpop.f32.mrb[0].mxu0
    %v3311 = vadd.f32 %v3086, %v3310
    %v3312 = vpop.f32.mrb[0].mxu0
    %3313 = vmatprep.mubr.f32.mxu0 0.0
    %3314 = vmatmul.mubr.f32.gmra.mrb[0].mxu0 %v2093
    %v3315 = vpop.f32.mrb[0].mxu0
    %v3316 = vadd.f32 %v3091, %v3315
    %v3317 = vpop.f32.mrb[0].mxu0
    %3318 = vmatprep.mubr.f32.mxu0 0.0
    %3319 = vmatmul.mubr.f32.gmra.mrb[0].mxu0 %v322
    %v3320 = vpop.f32.mrb[0].mxu0
    %v3321 = vadd.f32 %v3096, %v3320
    %v3322 = vpop.f32.mrb[0].mxu0
    %3323 = vmatprep.mubr.f32.mxu0 0.0
    %3324 = vmatmul.mubr.f32.gmra.mrb[0].mxu0 %v2061
    %v3325 = vpop.f32.mrb[0].mxu0
    %v3326 = vadd.f32 %v3101, %v3325
    %v3327 = vpop.f32.mrb[0].mxu0
    %3328 = vmatprep.mubr.f32.mxu0 0.0
    %3329 = vmatmul.mubr.f32.gmra.mrb[0].mxu0 %v2062
    %v3330 = vpop.f32.mrb[0].mxu0
    %v3331 = vadd.f32 %v3106, %v3330
    %v3332 = vpop.f32.mrb[0].mxu0
    %3333 = vmatprep.mubr.f32.mxu0 0.0
    %3334 = vmatmul.mubr.f32.gmra.mrb[0].mxu0 %v2063
    %v3335 = vpop.f32.mrb[0].mxu0
    %v3336 = vadd.f32 %v3111, %v3335
    %v3337 = vpop.f32.mrb[0].mxu0
    %3338 = vmatprep.mubr.f32.mxu0 0.0
    %3339 = vmatmul.mubr.f32.gmra.mrb[0].mxu0 %v2064
    %v3340 = vpop.f32.mrb[0].mxu0
    %v3341 = vadd.f32 %v3116, %v3340
    %v3342 = vpop.f32.mrb[0].mxu0
    %3343 = vmatprep.mubr.f32.mxu0 0.0
    %3344 = vmatmul.mubr.f32.gmra.mrb[0].mxu0 %v2065
    %v3345 = vpop.f32.mrb[0].mxu0
    %v3346 = vadd.f32 %v3121, %v3345
    %v3347 = vpop.f32.mrb[0].mxu0
    %3348 = vmatprep.mubr.f32.mxu0 0.0
    %3349 = vmatmul.mubr.f32.gmra.mrb[0].mxu0 %v2066
    %v3350 = vpop.f32.mrb[0].mxu0
    %v3351 = vadd.f32 %v3126, %v3350
    %v3352 = vpop.f32.mrb[0].mxu0
    %3353 = vmatprep.mubr.f32.mxu0 0.0
    %3354 = vmatmul.mubr.f32.gmra.mrb[0].mxu0 %v2094
    %v3355 = vpop.f32.mrb[0].mxu0
    %v3356 = vadd.f32 %v3131, %v3355
    %v3357 = vpop.f32.mrb[0].mxu0
    %3358 = vmatprep.mubr.f32.mxu0 0.0
    %3359 = vmatmul.mubr.f32.gmra.mrb[0].mxu0 %v322
    %v3360 = vpop.f32.mrb[0].mxu0
    %v3361 = vadd.f32 %v3136, %v3360
    %v3362 = vpop.f32.mrb[0].mxu0
    %3363 = vdwg.mxu0
    %v3364 = vadd.f32 %v3206, %v3211
    %v3365 = vadd.f32 %v3364, %v3216
    %v3366 = vadd.f32 %v3365, %v3221
    %v3367 = vadd.f32 %v3366, %v3226
    %v3368 = vadd.f32 %v3367, %v3231
    %v3369 = vadd.f32 %v3368, %v3236
    %v3370 = vadd.f32 %v3369, %v3241
    %v3371 = vadd.f32 %v3370, %v3246
    %v3372 = vadd.f32 %v3371, %v3251
    %v3373 = vadd.f32 %v3372, %v3256
    %v3374 = vadd.f32 %v3373, %v3261
    %v3375 = vadd.f32 %v3374, %v3266
    %v3376 = vadd.f32 %v3375, %v3271
    %v3377 = vadd.f32 %v3376, %v3276
    %v3378 = vadd.f32 %v3377, %v3281
    %v3379 = vadd.f32 %v3378, %v3286
    %v3380 = vadd.f32 %v3379, %v3291
    %v3381 = vadd.f32 %v3380, %v3296
    %v3382 = vadd.f32 %v3381, %v3301
    %v3383 = vadd.f32 %v3382, %v3306
    %v3384 = vadd.f32 %v3383, %v3311
    %v3385 = vadd.f32 %v3384, %v3316
    %v3386 = vadd.f32 %v3385, %v3321
    %v3387 = vadd.f32 %v3386, %v3326
    %v3388 = vadd.f32 %v3387, %v3331
    %v3389 = vadd.f32 %v3388, %v3336
    %v3390 = vadd.f32 %v3389, %v3341
    %v3391 = vadd.f32 %v3390, %v3346
    %v3392 = vadd.f32 %v3391, %v3351
    %v3393 = vadd.f32 %v3392, %v3356
    %v3394 = vadd.f32 %v3393, %v3361
    %v3395 = vrot.slane %v3394, 4
    %v3396 = vadd.f32 %v3394, %v3395
    %v3397 = vrot.slane %v3396, 2
    %v3398 = vadd.f32 %v3396, %v3397
    %v3399 = vrot.slane %v3398, 1
    %v3400 = vadd.f32 %v3398, %v3399
    %v3401 = vmul.f32 %v3206, %v3206
    %v3402 = vmul.f32 %v3211, %v3211
    %v3403 = vmul.f32 %v3216, %v3216
    %v3404 = vmul.f32 %v3221, %v3221
    %v3405 = vmul.f32 %v3226, %v3226
    %v3406 = vmul.f32 %v3231, %v3231
    %v3407 = vmul.f32 %v3236, %v3236
    %v3408 = vmul.f32 %v3241, %v3241
    %v3409 = vmul.f32 %v3246, %v3246
    %v3410 = vmul.f32 %v3251, %v3251
    %v3411 = vmul.f32 %v3256, %v3256
    %v3412 = vmul.f32 %v3261, %v3261
    %v3413 = vmul.f32 %v3266, %v3266
    %v3414 = vmul.f32 %v3271, %v3271
    %v3415 = vmul.f32 %v3276, %v3276
    %v3416 = vmul.f32 %v3281, %v3281
    %v3417 = vmul.f32 %v3286, %v3286
    %v3418 = vmul.f32 %v3291, %v3291
    %v3419 = vmul.f32 %v3296, %v3296
    %v3420 = vmul.f32 %v3301, %v3301
    %v3421 = vmul.f32 %v3306, %v3306
    %v3422 = vmul.f32 %v3311, %v3311
    %v3423 = vmul.f32 %v3316, %v3316
    %v3424 = vmul.f32 %v3321, %v3321
    %v3425 = vmul.f32 %v3326, %v3326
    %v3426 = vmul.f32 %v3331, %v3331
    %v3427 = vmul.f32 %v3336, %v3336
    %v3428 = vmul.f32 %v3341, %v3341
    %v3429 = vmul.f32 %v3346, %v3346
    %v3430 = vmul.f32 %v3351, %v3351
    %v3431 = vmul.f32 %v3356, %v3356
    %v3432 = vmul.f32 %v3361, %v3361
    %v3433 = vadd.f32 %v3401, %v3402
    %v3434 = vadd.f32 %v3433, %v3403
    %v3435 = vadd.f32 %v3434, %v3404
    %v3436 = vadd.f32 %v3435, %v3405
    %v3437 = vadd.f32 %v3436, %v3406
    %v3438 = vadd.f32 %v3437, %v3407
    %v3439 = vadd.f32 %v3438, %v3408
    %v3440 = vadd.f32 %v3439, %v3409
    %v3441 = vadd.f32 %v3440, %v3410
    %v3442 = vadd.f32 %v3441, %v3411
    %v3443 = vadd.f32 %v3442, %v3412
    %v3444 = vadd.f32 %v3443, %v3413
    %v3445 = vadd.f32 %v3444, %v3414
    %v3446 = vadd.f32 %v3445, %v3415
    %v3447 = vadd.f32 %v3446, %v3416
    %v3448 = vadd.f32 %v3447, %v3417
    %v3449 = vadd.f32 %v3448, %v3418
    %v3450 = vadd.f32 %v3449, %v3419
    %v3451 = vadd.f32 %v3450, %v3420
    %v3452 = vadd.f32 %v3451, %v3421
    %v3453 = vadd.f32 %v3452, %v3422
    %v3454 = vadd.f32 %v3453, %v3423
    %v3455 = vadd.f32 %v3454, %v3424
    %v3456 = vadd.f32 %v3455, %v3425
    %v3457 = vadd.f32 %v3456, %v3426
    %v3458 = vadd.f32 %v3457, %v3427
    %v3459 = vadd.f32 %v3458, %v3428
    %v3460 = vadd.f32 %v3459, %v3429
    %v3461 = vadd.f32 %v3460, %v3430
    %v3462 = vadd.f32 %v3461, %v3431
    %v3463 = vadd.f32 %v3462, %v3432
    %v3464 = vrot.slane %v3463, 4
    %v3465 = vadd.f32 %v3463, %v3464
    %v3466 = vrot.slane %v3465, 2
    %v3467 = vadd.f32 %v3465, %v3466
    %v3468 = vrot.slane %v3467, 1
    %v3469 = vadd.f32 %v3467, %v3468
    %v3470 = vmul.f32 %v3400, 0.00390625
    %v3471 = vmul.f32 %v3469, 0.00390625
    %v3472 = vmul.f32 %v3470, %v3470
    %v3473 = vsub.f32 %v3471, %v3472
    %v3474 = vadd.f32 %v3473, 1e-05
    %v3475 = vrsqrt.pop %v3474
    %v3476 = vld [vmem:[#allocation11] sm:$0x1]
    %v3477 = vmul.f32 %v3475, %v3476
    %v3478 = vld [vmem:[#allocation13] sm:$0x1]
    %v3479 = vmul.f32 %v3470, %v3477
    %v3480 = vsub.f32 %v3478, %v3479
    %v3481 = vlaneseq
    %v3482 = vshrl.u32 %v3481, 7
    %v3483 = vsub.s32 0, %v3482
    %v3484 = vrot.slane %v3477, %v3483
    %v3485 = vmul.f32 %v3206, %v3484
    %v3486 = vmul.f32 %v3211, %v3484
    %v3487 = vmul.f32 %v3216, %v3484
    %v3488 = vmul.f32 %v3221, %v3484
    %v3489 = vmul.f32 %v3226, %v3484
    %v3490 = vmul.f32 %v3231, %v3484
    %v3491 = vmul.f32 %v3236, %v3484
    %v3492 = vmul.f32 %v3241, %v3484
    %v3493 = vmul.f32 %v3246, %v3484
    %v3494 = vmul.f32 %v3251, %v3484
    %v3495 = vmul.f32 %v3256, %v3484
    %v3496 = vmul.f32 %v3261, %v3484
    %v3497 = vmul.f32 %v3266, %v3484
    %v3498 = vmul.f32 %v3271, %v3484
    %v3499 = vmul.f32 %v3276, %v3484
    %v3500 = vmul.f32 %v3281, %v3484
    %v3501 = vmul.f32 %v3286, %v3484
    %v3502 = vmul.f32 %v3291, %v3484
    %v3503 = vmul.f32 %v3296, %v3484
    %v3504 = vmul.f32 %v3301, %v3484
    %v3505 = vmul.f32 %v3306, %v3484
    %v3506 = vmul.f32 %v3311, %v3484
    %v3507 = vmul.f32 %v3316, %v3484
    %v3508 = vmul.f32 %v3321, %v3484
    %v3509 = vmul.f32 %v3326, %v3484
    %v3510 = vmul.f32 %v3331, %v3484
    %v3511 = vmul.f32 %v3336, %v3484
    %v3512 = vmul.f32 %v3341, %v3484
    %v3513 = vmul.f32 %v3346, %v3484
    %v3514 = vmul.f32 %v3351, %v3484
    %v3515 = vmul.f32 %v3356, %v3484
    %v3516 = vmul.f32 %v3361, %v3484
    %v3518 = vlaneseq
    %v3519 = vshrl.u32 %v3518, 7
    %v3520 = vsub.s32 0, %v3519
    %v3521 = vrot.slane %v3480, %v3520
    %v3523 = vadd.f32 %v3485, %v3521
    %v3524 = vadd.f32 %v3486, %v3521
    %v3525 = vadd.f32 %v3487, %v3521
    %v3526 = vadd.f32 %v3488, %v3521
    %v3527 = vadd.f32 %v3489, %v3521
    %v3528 = vadd.f32 %v3490, %v3521
    %v3529 = vadd.f32 %v3491, %v3521
    %v3530 = vadd.f32 %v3492, %v3521
    %v3531 = vadd.f32 %v3493, %v3521
    %v3532 = vadd.f32 %v3494, %v3521
    %v3533 = vadd.f32 %v3495, %v3521
    %v3534 = vadd.f32 %v3496, %v3521
    %v3535 = vadd.f32 %v3497, %v3521
    %v3536 = vadd.f32 %v3498, %v3521
    %v3537 = vadd.f32 %v3499, %v3521
    %v3538 = vadd.f32 %v3500, %v3521
    %v3539 = vadd.f32 %v3501, %v3521
    %v3540 = vadd.f32 %v3502, %v3521
    %v3541 = vadd.f32 %v3503, %v3521
    %v3542 = vadd.f32 %v3504, %v3521
    %v3543 = vadd.f32 %v3505, %v3521
    %v3544 = vadd.f32 %v3506, %v3521
    %v3545 = vadd.f32 %v3507, %v3521
    %v3546 = vadd.f32 %v3508, %v3521
    %v3547 = vadd.f32 %v3509, %v3521
    %v3548 = vadd.f32 %v3510, %v3521
    %v3549 = vadd.f32 %v3511, %v3521
    %v3550 = vadd.f32 %v3512, %v3521
    %v3551 = vadd.f32 %v3513, %v3521
    %v3552 = vadd.f32 %v3514, %v3521
    %v3553 = vadd.f32 %v3515, %v3521
    %v3554 = vadd.f32 %v3516, %v3521
    %v3555 = vadd.f32 %v3523, %v114
    %v3556 = vadd.f32 %v3524, %v115
    %v3557 = vadd.f32 %v3525, %v116
    %v3558 = vadd.f32 %v3526, %v117
    %v3559 = vadd.f32 %v3527, %v118
    %v3560 = vadd.f32 %v3528, %v119
    %v3561 = vadd.f32 %v3529, %v120
    %v3562 = vadd.f32 %v3530, %v121
    %v3563 = vadd.f32 %v3531, %v122
    %v3564 = vadd.f32 %v3532, %v123
    %v3565 = vadd.f32 %v3533, %v124
    %v3566 = vadd.f32 %v3534, %v125
    %v3567 = vadd.f32 %v3535, %v126
    %v3568 = vadd.f32 %v3536, %v127
    %v3569 = vadd.f32 %v3537, %v128
    %v3570 = vadd.f32 %v3538, %v129
    %v3571 = vadd.f32 %v3539, %v130
    %v3572 = vadd.f32 %v3540, %v131
    %v3573 = vadd.f32 %v3541, %v132
    %v3574 = vadd.f32 %v3542, %v133
    %v3575 = vadd.f32 %v3543, %v134
    %v3576 = vadd.f32 %v3544, %v135
    %v3577 = vadd.f32 %v3545, %v136
    %v3578 = vadd.f32 %v3546, %v137
    %v3579 = vadd.f32 %v3547, %v138
    %v3580 = vadd.f32 %v3548, %v139
    %v3581 = vadd.f32 %v3549, %v140
    %v3582 = vadd.f32 %v3550, %v141
    %v3583 = vadd.f32 %v3551, %v142
    %v3584 = vadd.f32 %v3552, %v143
    %v3585 = vadd.f32 %v3553, %v144
    %v3586 = vadd.f32 %v3554, %v145
    %v3587 = vmax.f32 %v3555, 0.0
    %v3588 = vmax.f32 %v3556, 0.0
    %v3589 = vmax.f32 %v3557, 0.0
    %v3590 = vmax.f32 %v3558, 0.0
    %v3591 = vmax.f32 %v3559, 0.0
    %v3592 = vmax.f32 %v3560, 0.0
    %v3593 = vmax.f32 %v3561, 0.0
    %v3594 = vmax.f32 %v3562, 0.0
    %v3595 = vmax.f32 %v3563, 0.0
    %v3596 = vmax.f32 %v3564, 0.0
    %v3597 = vmax.f32 %v3565, 0.0
    %v3598 = vmax.f32 %v3566, 0.0
    %v3599 = vmax.f32 %v3567, 0.0
    %v3600 = vmax.f32 %v3568, 0.0
    %v3601 = vmax.f32 %v3569, 0.0
    %v3602 = vmax.f32 %v3570, 0.0
    %v3603 = vmax.f32 %v3571, 0.0
    %v3604 = vmax.f32 %v3572, 0.0
    %v3605 = vmax.f32 %v3573, 0.0
    %v3606 = vmax.f32 %v3574, 0.0
    %v3607 = vmax.f32 %v3575, 0.0
    %v3608 = vmax.f32 %v3576, 0.0
    %v3609 = vmax.f32 %v3577, 0.0
    %v3610 = vmax.f32 %v3578, 0.0
    %v3611 = vmax.f32 %v3579, 0.0
    %v3612 = vmax.f32 %v3580, 0.0
    %v3613 = vmax.f32 %v3581, 0.0
    %v3614 = vmax.f32 %v3582, 0.0
    %v3615 = vmax.f32 %v3583, 0.0
    %v3616 = vmax.f32 %v3584, 0.0
    %v3617 = vmax.f32 %v3585, 0.0
    %v3618 = vmax.f32 %v3586, 0.0
    %3619 = vst [vmem:[#allocation14] sm:$0xff] %v3587
    %3620 = vst [vmem:[#allocation14 + $0x8] sm:$0xff] %v3588
    %3621 = vst [vmem:[#allocation14 + $0x10] sm:$0xff] %v3589
    %3622 = vst [vmem:[#allocation14 + $0x18] sm:$0xff] %v3590
    %3623 = vst [vmem:[#allocation14 + $0x20] sm:$0xff] %v3591
    %3624 = vst [vmem:[#allocation14 + $0x28] sm:$0xff] %v3592
    %3625 = vst [vmem:[#allocation14 + $0x30] sm:$0xff] %v3593
    %3626 = vst [vmem:[#allocation14 + $0x38] sm:$0xff] %v3594
    %3627 = vst [vmem:[#allocation14 + $0x40] sm:$0xff] %v3595
    %3628 = vst [vmem:[#allocation14 + $0x48] sm:$0xff] %v3596
    %3629 = vst [vmem:[#allocation14 + $0x50] sm:$0xff] %v3597
    %3630 = vst [vmem:[#allocation14 + $0x58] sm:$0xff] %v3598
    %3631 = vst [vmem:[#allocation14 + $0x60] sm:$0xff] %v3599
    %3632 = vst [vmem:[#allocation14 + $0x68] sm:$0xff] %v3600
    %3633 = vst [vmem:[#allocation14 + $0x70] sm:$0xff] %v3601
    %3634 = vst [vmem:[#allocation14 + $0x78] sm:$0xff] %v3602
    %3635 = vst [vmem:[#allocation14 + $0x80] sm:$0xff] %v3603
    %3636 = vst [vmem:[#allocation14 + $0x88] sm:$0xff] %v3604
    %3637 = vst [vmem:[#allocation14 + $0x90] sm:$0xff] %v3605
    %3638 = vst [vmem:[#allocation14 + $0x98] sm:$0xff] %v3606
    %3639 = vst [vmem:[#allocation14 + $0xa0] sm:$0xff] %v3607
    %3640 = vst [vmem:[#allocation14 + $0xa8] sm:$0xff] %v3608
    %3641 = vst [vmem:[#allocation14 + $0xb0] sm:$0xff] %v3609
    %3642 = vst [vmem:[#allocation14 + $0xb8] sm:$0xff] %v3610
    %3643 = vst [vmem:[#allocation14 + $0xc0] sm:$0xff] %v3611
    %3644 = vst [vmem:[#allocation14 + $0xc8] sm:$0xff] %v3612
    %3645 = vst [vmem:[#allocation14 + $0xd0] sm:$0xff] %v3613
    %3646 = vst [vmem:[#allocation14 + $0xd8] sm:$0xff] %v3614
    %3647 = vst [vmem:[#allocation14 + $0xe0] sm:$0xff] %v3615
    %3648 = vst [vmem:[#allocation14 + $0xe8] sm:$0xff] %v3616
    %3649 = vst [vmem:[#allocation14 + $0xf0] sm:$0xff] %v3617
    %3650 = vst [vmem:[#allocation14 + $0xf8] sm:$0xff] %v3618
    // Predicated region
    $region58: #{resblock_forward.1} parent=1 // pred_check
      _
    $region59: #{resblock_forward.1} parent=1 // pred_check_branch
      %3652 = sbr.rel (0) target = $region61
    $region60: #{resblock_forward.1} parent=1 // pred_region
      %s3654 = ssub.s32 4096, 4096
      %3655 = vsyncadd [#allocation4], %s3654
      %s3656 = sshll.u32 [#allocation14], 4
      %s3657 = int_to_ptr.vmem [resolvable:$true] %s3656
      %3662 = dma.vmem_to_hbm [thread:$0]  %s3657, 4096, %s7, [#allocation4], 128, 128, 8
    $region61: #{resblock_forward.1} parent=1 // pred_fallthru
      _
    // Predicated region
    $region62: #{resblock_forward.1} parent=1 // pred_check
      _
    $region63: #{resblock_forward.1} parent=1 // pred_check_branch
      %3664 = sbr.rel (0) target = $region65
    $region64: #{resblock_forward.1} parent=1 // pred_region
      %3665 = dma.done [#allocation4], 4096
    $region65: #{resblock_forward.1} parent=1 // pred_fallthru
      _
    %3666 = vsyncpa [#allocation3], 1
    %3667 = vsyncpa [#allocation6], 1
    %3668 = vsyncpa [#allocation9], 1
    %3669 = vsyncpa [#allocation12], 1
    %3670 = vsyncpa [#allocation4], 1

</llo_original>
